<compile_context>
chip_gen: v5e
topology: v5e:2x2
jax: 0.10.0
libtpu: 0.0.40
codegen_flags: <defaults>
</compile_context>

<pallas_src>
import functools

import jax
import jax.numpy as jnp
from jax.experimental import pallas as pl
from jax.experimental.pallas import tpu as pltpu

EPS = 1e-5
C_IN, C_MID, C_OUT = 192, 64, 384


def _fused_kernel(xph_ref, mask_ref, wdw_ref, g1_ref, b1_ref, wpw1_ref,
                  g2_ref, b2_ref, wpw2_ref, out_ref, ph_ref, *,
                  next_n, woe, inv_count):
    # ---- Stage: ReLU6 each stride-2 phase plane exactly once (clip hoisted out of
    # the 9-tap loop; per-tap work below is a single mul+add on the VPU).
    for p in range(4):
        ph_ref[p] = jnp.clip(xph_ref[p], 0.0, 6.0)

    mask = mask_ref[...]                                     # (next_n, 1) valid rows

    # ---- Depthwise 3x3 stride-2: unrolled 9-tap MAC over the staged phase planes.
    # Tap (kh, kw) of extended output row e lives in phase 2*(kh%2)+(kw%2) at
    # flattened row e + (kh//2)*woe + (kw//2).  Offsets {0, woe} are sublane
    # aligned; the three +1 offsets are shifted VMEM loads of the staged plane.
    acc = None
    for kh in range(3):
        for kw in range(3):
            p = 2 * (kh % 2) + (kw % 2)
            s = (kh // 2) * woe + (kw // 2)
            k = kh * 3 + kw
            tap = ph_ref[p, s:s + next_n, :]                 # (next_n, 192)
            contrib = tap * wdw_ref[k:k + 1, :]              # (1,192) sublane bcast
            acc = contrib if acc is None else acc + contrib
    dw = acc * mask                                          # zero dummy-column rows

    # ---- BatchNorm2d(192), training mode: single-pass batch stats + fused affine.
    s1 = jnp.sum(dw, axis=0, keepdims=True)
    s2 = jnp.sum(dw * dw, axis=0, keepdims=True)
    m1 = s1 * inv_count
    v1 = jnp.maximum(s2 * inv_count - m1 * m1, 0.0)          # cancellation insurance
    a1 = g1_ref[...] * jax.lax.rsqrt(v1 + EPS)
    y = jnp.clip(dw * a1 + (b1_ref[...] - m1 * a1), 0.0, 6.0)   # BN1 affine + ReLU6

    # ---- 1x1 conv 192 -> 64 on the MXU (f32; see bf16 TODO at top).
    z = jnp.dot(y, wpw1_ref[...], preferred_element_type=jnp.float32)   # (next_n, 64)

    # ---- BatchNorm2d(64): masked single-pass batch stats + fused affine.
    zm = z * mask
    t1 = jnp.sum(zm, axis=0, keepdims=True)
    t2 = jnp.sum(zm * zm, axis=0, keepdims=True)
    m2 = t1 * inv_count
    v2 = jnp.maximum(t2 * inv_count - m2 * m2, 0.0)
    a2 = g2_ref[...] * jax.lax.rsqrt(v2 + EPS)
    y2 = z * a2 + (b2_ref[...] - m2 * a2)

    # ---- 1x1 conv 64 -> 384 on the MXU; (224, 384) store is fully tile aligned.
    out_ref[...] = jnp.dot(y2, wpw2_ref[...], preferred_element_type=jnp.float32)


def _spec2(shape):
    return pl.BlockSpec(shape, lambda i: (0, 0))


def _spec3(shape):
    return pl.BlockSpec(shape, lambda i: (0, 0, 0))


def forward(x_nchw, params):
    """x_nchw: (1, 192, H, W) float32 -> (1, 384, H//2, W//2) float32."""
    wdw, g1, b1, wpw1, g2, b2, wpw2 = params
    N, C, H, W = x_nchw.shape
    assert N == 1 and C == C_IN and H % 2 == 0 and W % 2 == 0
    Ho, Wo = H // 2, W // 2
    hoe, woe = Ho + 2, Wo + 2           # per-phase plane dims (halo + alignment)
    next_n = Ho * woe                   # extended output rows (224 for 28x28)
    pr = hoe * woe                      # rows per phase plane (>= next_n + woe + 2)
    count = Ho * Wo

    # ---- glue (2 HBM passes): pad while still in NCHW, then ONE transpose that both
    # moves channels to the minor axis and splits the plane into its 4 stride-2
    # phases.  ReLU6(0) == 0, so zero-padding before the in-kernel clip is exact.
    xp = jnp.pad(x_nchw[0], ((0, 0), (1, 2 * hoe - H - 1), (1, 2 * woe - W - 1)))
    xph = xp.reshape(C, hoe, 2, woe, 2).transpose(2, 4, 1, 3, 0).reshape(4, pr, C)

    # validity mask over the extended (Ho, woe) grid (dummy columns discarded)
    mask = jnp.broadcast_to(jnp.arange(woe) < Wo, (Ho, woe))
    mask = mask.reshape(next_n, 1).astype(jnp.float32)

    kernel = functools.partial(_fused_kernel, next_n=next_n, woe=woe,
                               inv_count=1.0 / count)

    out_ext = pl.pallas_call(
        kernel,
        grid=(1,),
        in_specs=[
            _spec3(xph.shape), _spec2(mask.shape), _spec2(wdw.shape),
            _spec2(g1.shape), _spec2(b1.shape), _spec2(wpw1.shape),
            _spec2(g2.shape), _spec2(b2.shape), _spec2(wpw2.shape),
        ],
        out_specs=_spec2((next_n, C_OUT)),
        out_shape=jax.ShapeDtypeStruct((next_n, C_OUT), jnp.float32),
        scratch_shapes=[pltpu.VMEM((4, pr, C_IN), jnp.float32)],   # clipped phases
        compiler_params=pltpu.CompilerParams(
            dimension_semantics=("arbitrary",),
            vmem_limit_bytes=8 * 1024 * 1024),
    )(xph, mask, wdw, g1, b1, wpw1, g2, b2, wpw2)

    # NCHW is the module contract; an NHWC consumer could take out_ext directly and
    # skip this slice+transpose pass.
    out = out_ext.reshape(Ho, woe, C_OUT)[:, :Wo, :]
    return jnp.transpose(out, (2, 0, 1))[None]


def init_params(key):
    ks = jax.random.split(key, 7)
    wdw = 0.10 * jax.random.normal(ks[0], (9, C_IN), jnp.float32)        # depthwise 3x3, (kh*3+kw, c)
    g1 = 1.0 + 0.10 * jax.random.normal(ks[1], (1, C_IN), jnp.float32)   # BN1 gamma
    b1 = 0.10 * jax.random.normal(ks[2], (1, C_IN), jnp.float32)         # BN1 beta
    wpw1 = 0.05 * jax.random.normal(ks[3], (C_IN, C_MID), jnp.float32)   # 1x1 conv (c_in, c_out)
    g2 = 1.0 + 0.10 * jax.random.normal(ks[4], (1, C_MID), jnp.float32)
    b2 = 0.10 * jax.random.normal(ks[5], (1, C_MID), jnp.float32)
    wpw2 = 0.05 * jax.random.normal(ks[6], (C_MID, C_OUT), jnp.float32)
    return (wdw, g1, b1, wpw1, g2, b2, wpw2)


def reference(x_nchw, params):
    """Pure-JAX reference (independent depthwise conv via lax.conv)."""
    wdw, g1, b1, wpw1, g2, b2, wpw2 = params
    x = jnp.clip(x_nchw, 0.0, 6.0)
    xh = jnp.transpose(x, (0, 2, 3, 1))                       # NHWC
    wk = wdw.reshape(3, 3, 1, C_IN)                           # HWIO (grouped)
    dw = jax.lax.conv_general_dilated(
        xh, wk, window_strides=(2, 2), padding=((1, 1), (1, 1)),
        dimension_numbers=("NHWC", "HWIO", "NHWC"),
        feature_group_count=C_IN, precision=jax.lax.Precision.HIGHEST)

    def bn(t, g, b):
        m = jnp.mean(t, axis=(0, 1, 2), keepdims=True)
        v = jnp.mean((t - m) ** 2, axis=(0, 1, 2), keepdims=True)
        return (t - m) / jnp.sqrt(v + EPS) * g.reshape(1, 1, 1, -1) + b.reshape(1, 1, 1, -1)

    y = jnp.clip(bn(dw, g1, b1), 0.0, 6.0)
    z = bn(jnp.einsum("nhwc,co->nhwo", y, wpw1,
                      precision=jax.lax.Precision.HIGHEST), g2, b2)
    o = jnp.einsum("nhwc,co->nhwo", z, wpw2,
                   precision=jax.lax.Precision.HIGHEST)
    return jnp.transpose(o, (0, 3, 1, 2))


if __name__ == "__main__":
    key = jax.random.PRNGKey(0)
    kx, kp = jax.random.split(key)
    # Matches the module spec: (1, 192, 28, 28) -> (1, 384, 14, 14).
    x = jax.random.normal(kx, (1, C_IN, 28, 28), jnp.float32)
    params = init_params(kp)

    out = jax.block_until_ready(jax.jit(forward)(x, params))
    assert out.shape == (1, C_OUT, 14, 14), out.shape

    ref = reference(x, params)
    err = float(jnp.max(jnp.abs(out - ref)))
    assert jnp.allclose(out, ref, atol=2e-3, rtol=2e-3), (
        "mismatch vs reference: max abs err = %g" % err)
    print("KERNEL_OK")
</pallas_src>

<mosaic_0001>
module attributes {stable_mosaic.version = 11 : i64} {
  func.func @_fused_kernel(%arg0: i32, %arg1: memref<4x256x192xf32, #tpu.memory_space<vmem>>, %arg2: memref<224x1xf32, #tpu.memory_space<vmem>>, %arg3: memref<9x192xf32, #tpu.memory_space<vmem>>, %arg4: memref<1x192xf32, #tpu.memory_space<vmem>>, %arg5: memref<1x192xf32, #tpu.memory_space<vmem>>, %arg6: memref<192x64xf32, #tpu.memory_space<vmem>>, %arg7: memref<1x64xf32, #tpu.memory_space<vmem>>, %arg8: memref<1x64xf32, #tpu.memory_space<vmem>>, %arg9: memref<64x384xf32, #tpu.memory_space<vmem>>, %arg10: memref<224x384xf32, #tpu.memory_space<vmem>>, %arg11: memref<4x256x192xf32, #tpu.memory_space<vmem>>) attributes {dimension_semantics = [#tpu.dimension_semantics<arbitrary>], iteration_bounds = array<i64: 1>, scalar_prefetch = 0 : i64, scratch_operands = 1 : i64, tpu.core_type = #tpu.core_type<tc>, window_params = [{pipeline_mode = #tpu.pipeline_mode<synchronous>, transform_indices = @transform_0, window_bounds = array<i64: 4, 256, 192>}, {pipeline_mode = #tpu.pipeline_mode<synchronous>, transform_indices = @transform_1, window_bounds = array<i64: 224, 1>}, {pipeline_mode = #tpu.pipeline_mode<synchronous>, transform_indices = @transform_2, window_bounds = array<i64: 9, 192>}, {pipeline_mode = #tpu.pipeline_mode<synchronous>, transform_indices = @transform_3, window_bounds = array<i64: 1, 192>}, {pipeline_mode = #tpu.pipeline_mode<synchronous>, transform_indices = @transform_4, window_bounds = array<i64: 1, 192>}, {pipeline_mode = #tpu.pipeline_mode<synchronous>, transform_indices = @transform_5, window_bounds = array<i64: 192, 64>}, {pipeline_mode = #tpu.pipeline_mode<synchronous>, transform_indices = @transform_6, window_bounds = array<i64: 1, 64>}, {pipeline_mode = #tpu.pipeline_mode<synchronous>, transform_indices = @transform_7, window_bounds = array<i64: 1, 64>}, {pipeline_mode = #tpu.pipeline_mode<synchronous>, transform_indices = @transform_8, window_bounds = array<i64: 64, 384>}, {pipeline_mode = #tpu.pipeline_mode<synchronous>, transform_indices = @transform_9, window_bounds = array<i64: 224, 384>}]} {
    %c0 = arith.constant 0 : index
    %c0_0 = arith.constant 0 : index
    %c0_1 = arith.constant 0 : index
    %0 = vector.load %arg1[%c0, %c0_0, %c0_1] : memref<4x256x192xf32, #tpu.memory_space<vmem>>, vector<1x256x192xf32>
    %1 = vector.shape_cast %0 : vector<1x256x192xf32> to vector<256x192xf32>
    %cst = arith.constant 0.000000e+00 : f32
    %cst_2 = arith.constant 6.000000e+00 : f32
    %2 = vector.broadcast %cst : f32 to vector<256x192xf32>
    %3 = arith.maximumf %2, %1 : vector<256x192xf32>
    %4 = vector.broadcast %cst_2 : f32 to vector<256x192xf32>
    %5 = arith.minimumf %4, %3 : vector<256x192xf32>
    %c0_3 = arith.constant 0 : index
    %c0_4 = arith.constant 0 : index
    %c0_5 = arith.constant 0 : index
    %6 = vector.load %arg11[%c0_3, %c0_4, %c0_5] : memref<4x256x192xf32, #tpu.memory_space<vmem>>, vector<1x256x192xf32>
    %7 = vector.shape_cast %6 : vector<1x256x192xf32> to vector<256x192xf32>
    %8 = vector.shape_cast %5 : vector<256x192xf32> to vector<1x256x192xf32>
    tpu.vector_store %arg11[%c0_3, %c0_4, %c0_5], %8 {strides = array<i32>} : memref<4x256x192xf32, #tpu.memory_space<vmem>>, vector<1x256x192xf32>,
    %c1 = arith.constant 1 : index
    %c0_6 = arith.constant 0 : index
    %c0_7 = arith.constant 0 : index
    %9 = vector.load %arg1[%c1, %c0_6, %c0_7] : memref<4x256x192xf32, #tpu.memory_space<vmem>>, vector<1x256x192xf32>
    %10 = vector.shape_cast %9 : vector<1x256x192xf32> to vector<256x192xf32>
    %cst_8 = arith.constant 0.000000e+00 : f32
    %cst_9 = arith.constant 6.000000e+00 : f32
    %11 = vector.broadcast %cst_8 : f32 to vector<256x192xf32>
    %12 = arith.maximumf %11, %10 : vector<256x192xf32>
    %13 = vector.broadcast %cst_9 : f32 to vector<256x192xf32>
    %14 = arith.minimumf %13, %12 : vector<256x192xf32>
    %c1_10 = arith.constant 1 : index
    %c0_11 = arith.constant 0 : index
    %c0_12 = arith.constant 0 : index
    %15 = vector.load %arg11[%c1_10, %c0_11, %c0_12] : memref<4x256x192xf32, #tpu.memory_space<vmem>>, vector<1x256x192xf32>
    %16 = vector.shape_cast %15 : vector<1x256x192xf32> to vector<256x192xf32>
    %17 = vector.shape_cast %14 : vector<256x192xf32> to vector<1x256x192xf32>
    tpu.vector_store %arg11[%c1_10, %c0_11, %c0_12], %17 {strides = array<i32>} : memref<4x256x192xf32, #tpu.memory_space<vmem>>, vector<1x256x192xf32>,
    %c2 = arith.constant 2 : index
    %c0_13 = arith.constant 0 : index
    %c0_14 = arith.constant 0 : index
    %18 = vector.load %arg1[%c2, %c0_13, %c0_14] : memref<4x256x192xf32, #tpu.memory_space<vmem>>, vector<1x256x192xf32>
    %19 = vector.shape_cast %18 : vector<1x256x192xf32> to vector<256x192xf32>
    %cst_15 = arith.constant 0.000000e+00 : f32
    %cst_16 = arith.constant 6.000000e+00 : f32
    %20 = vector.broadcast %cst_15 : f32 to vector<256x192xf32>
    %21 = arith.maximumf %20, %19 : vector<256x192xf32>
    %22 = vector.broadcast %cst_16 : f32 to vector<256x192xf32>
    %23 = arith.minimumf %22, %21 : vector<256x192xf32>
    %c2_17 = arith.constant 2 : index
    %c0_18 = arith.constant 0 : index
    %c0_19 = arith.constant 0 : index
    %24 = vector.load %arg11[%c2_17, %c0_18, %c0_19] : memref<4x256x192xf32, #tpu.memory_space<vmem>>, vector<1x256x192xf32>
    %25 = vector.shape_cast %24 : vector<1x256x192xf32> to vector<256x192xf32>
    %26 = vector.shape_cast %23 : vector<256x192xf32> to vector<1x256x192xf32>
    tpu.vector_store %arg11[%c2_17, %c0_18, %c0_19], %26 {strides = array<i32>} : memref<4x256x192xf32, #tpu.memory_space<vmem>>, vector<1x256x192xf32>,
    %c3 = arith.constant 3 : index
    %c0_20 = arith.constant 0 : index
    %c0_21 = arith.constant 0 : index
    %27 = vector.load %arg1[%c3, %c0_20, %c0_21] : memref<4x256x192xf32, #tpu.memory_space<vmem>>, vector<1x256x192xf32>
    %28 = vector.shape_cast %27 : vector<1x256x192xf32> to vector<256x192xf32>
    %cst_22 = arith.constant 0.000000e+00 : f32
    %cst_23 = arith.constant 6.000000e+00 : f32
    %29 = vector.broadcast %cst_22 : f32 to vector<256x192xf32>
    %30 = arith.maximumf %29, %28 : vector<256x192xf32>
    %31 = vector.broadcast %cst_23 : f32 to vector<256x192xf32>
    %32 = arith.minimumf %31, %30 : vector<256x192xf32>
    %c3_24 = arith.constant 3 : index
    %c0_25 = arith.constant 0 : index
    %c0_26 = arith.constant 0 : index
    %33 = vector.load %arg11[%c3_24, %c0_25, %c0_26] : memref<4x256x192xf32, #tpu.memory_space<vmem>>, vector<1x256x192xf32>
    %34 = vector.shape_cast %33 : vector<1x256x192xf32> to vector<256x192xf32>
    %35 = vector.shape_cast %32 : vector<256x192xf32> to vector<1x256x192xf32>
    tpu.vector_store %arg11[%c3_24, %c0_25, %c0_26], %35 {strides = array<i32>} : memref<4x256x192xf32, #tpu.memory_space<vmem>>, vector<1x256x192xf32>,
    %c0_27 = arith.constant 0 : index
    %c0_28 = arith.constant 0 : index
    %36 = vector.load %arg2[%c0_27, %c0_28] : memref<224x1xf32, #tpu.memory_space<vmem>>, vector<224x1xf32>
    %c0_29 = arith.constant 0 : index
    %c0_30 = arith.constant 0 : index
    %c0_31 = arith.constant 0 : index
    %37 = vector.load %arg11[%c0_29, %c0_30, %c0_31] : memref<4x256x192xf32, #tpu.memory_space<vmem>>, vector<1x224x192xf32>
    %38 = vector.shape_cast %37 : vector<1x224x192xf32> to vector<224x192xf32>
    %c0_32 = arith.constant 0 : index
    %c0_33 = arith.constant 0 : index
    %39 = vector.load %arg3[%c0_32, %c0_33] : memref<9x192xf32, #tpu.memory_space<vmem>>, vector<1x192xf32>
    %40 = vector.broadcast %39 : vector<1x192xf32> to vector<224x192xf32>
    %41 = arith.mulf %38, %40 : vector<224x192xf32>
    %c1_34 = arith.constant 1 : index
    %c0_35 = arith.constant 0 : index
    %c0_36 = arith.constant 0 : index
    %42 = vector.load %arg11[%c1_34, %c0_35, %c0_36] : memref<4x256x192xf32, #tpu.memory_space<vmem>>, vector<1x224x192xf32>
    %43 = vector.shape_cast %42 : vector<1x224x192xf32> to vector<224x192xf32>
    %c1_37 = arith.constant 1 : index
    %c0_38 = arith.constant 0 : index
    %44 = vector.load %arg3[%c1_37, %c0_38] : memref<9x192xf32, #tpu.memory_space<vmem>>, vector<1x192xf32>
    %45 = vector.broadcast %44 : vector<1x192xf32> to vector<224x192xf32>
    %46 = arith.mulf %43, %45 : vector<224x192xf32>
    %47 = arith.addf %41, %46 : vector<224x192xf32>
    %c0_39 = arith.constant 0 : index
    %c1_40 = arith.constant 1 : index
    %c0_41 = arith.constant 0 : index
    %48 = vector.load %arg11[%c0_39, %c1_40, %c0_41] : memref<4x256x192xf32, #tpu.memory_space<vmem>>, vector<1x224x192xf32>
    %49 = vector.shape_cast %48 : vector<1x224x192xf32> to vector<224x192xf32>
    %c2_42 = arith.constant 2 : index
    %c0_43 = arith.constant 0 : index
    %50 = vector.load %arg3[%c2_42, %c0_43] : memref<9x192xf32, #tpu.memory_space<vmem>>, vector<1x192xf32>
    %51 = vector.broadcast %50 : vector<1x192xf32> to vector<224x192xf32>
    %52 = arith.mulf %49, %51 : vector<224x192xf32>
    %53 = arith.addf %47, %52 : vector<224x192xf32>
    %c2_44 = arith.constant 2 : index
    %c0_45 = arith.constant 0 : index
    %c0_46 = arith.constant 0 : index
    %54 = vector.load %arg11[%c2_44, %c0_45, %c0_46] : memref<4x256x192xf32, #tpu.memory_space<vmem>>, vector<1x224x192xf32>
    %55 = vector.shape_cast %54 : vector<1x224x192xf32> to vector<224x192xf32>
    %c3_47 = arith.constant 3 : index
    %c0_48 = arith.constant 0 : index
    %56 = vector.load %arg3[%c3_47, %c0_48] : memref<9x192xf32, #tpu.memory_space<vmem>>, vector<1x192xf32>
    %57 = vector.broadcast %56 : vector<1x192xf32> to vector<224x192xf32>
    %58 = arith.mulf %55, %57 : vector<224x192xf32>
    %59 = arith.addf %53, %58 : vector<224x192xf32>
    %c3_49 = arith.constant 3 : index
    %c0_50 = arith.constant 0 : index
    %c0_51 = arith.constant 0 : index
    %60 = vector.load %arg11[%c3_49, %c0_50, %c0_51] : memref<4x256x192xf32, #tpu.memory_space<vmem>>, vector<1x224x192xf32>
    %61 = vector.shape_cast %60 : vector<1x224x192xf32> to vector<224x192xf32>
    %c4 = arith.constant 4 : index
    %c0_52 = arith.constant 0 : index
    %62 = vector.load %arg3[%c4, %c0_52] : memref<9x192xf32, #tpu.memory_space<vmem>>, vector<1x192xf32>
    %63 = vector.broadcast %62 : vector<1x192xf32> to vector<224x192xf32>
    %64 = arith.mulf %61, %63 : vector<224x192xf32>
    %65 = arith.addf %59, %64 : vector<224x192xf32>
    %c2_53 = arith.constant 2 : index
    %c1_54 = arith.constant 1 : index
    %c0_55 = arith.constant 0 : index
    %66 = vector.load %arg11[%c2_53, %c1_54, %c0_55] : memref<4x256x192xf32, #tpu.memory_space<vmem>>, vector<1x224x192xf32>
    %67 = vector.shape_cast %66 : vector<1x224x192xf32> to vector<224x192xf32>
    %c5 = arith.constant 5 : index
    %c0_56 = arith.constant 0 : index
    %68 = vector.load %arg3[%c5, %c0_56] : memref<9x192xf32, #tpu.memory_space<vmem>>, vector<1x192xf32>
    %69 = vector.broadcast %68 : vector<1x192xf32> to vector<224x192xf32>
    %70 = arith.mulf %67, %69 : vector<224x192xf32>
    %71 = arith.addf %65, %70 : vector<224x192xf32>
    %c0_57 = arith.constant 0 : index
    %c16 = arith.constant 16 : index
    %c0_58 = arith.constant 0 : index
    %72 = vector.load %arg11[%c0_57, %c16, %c0_58] : memref<4x256x192xf32, #tpu.memory_space<vmem>>, vector<1x224x192xf32>
    %73 = vector.shape_cast %72 : vector<1x224x192xf32> to vector<224x192xf32>
    %c6 = arith.constant 6 : index
    %c0_59 = arith.constant 0 : index
    %74 = vector.load %arg3[%c6, %c0_59] : memref<9x192xf32, #tpu.memory_space<vmem>>, vector<1x192xf32>
    %75 = vector.broadcast %74 : vector<1x192xf32> to vector<224x192xf32>
    %76 = arith.mulf %73, %75 : vector<224x192xf32>
    %77 = arith.addf %71, %76 : vector<224x192xf32>
    %c1_60 = arith.constant 1 : index
    %c16_61 = arith.constant 16 : index
    %c0_62 = arith.constant 0 : index
    %78 = vector.load %arg11[%c1_60, %c16_61, %c0_62] : memref<4x256x192xf32, #tpu.memory_space<vmem>>, vector<1x224x192xf32>
    %79 = vector.shape_cast %78 : vector<1x224x192xf32> to vector<224x192xf32>
    %c7 = arith.constant 7 : index
    %c0_63 = arith.constant 0 : index
    %80 = vector.load %arg3[%c7, %c0_63] : memref<9x192xf32, #tpu.memory_space<vmem>>, vector<1x192xf32>
    %81 = vector.broadcast %80 : vector<1x192xf32> to vector<224x192xf32>
    %82 = arith.mulf %79, %81 : vector<224x192xf32>
    %83 = arith.addf %77, %82 : vector<224x192xf32>
    %c0_64 = arith.constant 0 : index
    %c17 = arith.constant 17 : index
    %c0_65 = arith.constant 0 : index
    %84 = vector.load %arg11[%c0_64, %c17, %c0_65] : memref<4x256x192xf32, #tpu.memory_space<vmem>>, vector<1x224x192xf32>
    %85 = vector.shape_cast %84 : vector<1x224x192xf32> to vector<224x192xf32>
    %c8 = arith.constant 8 : index
    %c0_66 = arith.constant 0 : index
    %86 = vector.load %arg3[%c8, %c0_66] : memref<9x192xf32, #tpu.memory_space<vmem>>, vector<1x192xf32>
    %87 = vector.broadcast %86 : vector<1x192xf32> to vector<224x192xf32>
    %88 = arith.mulf %85, %87 : vector<224x192xf32>
    %89 = arith.addf %83, %88 : vector<224x192xf32>
    %90 = vector.broadcast %36 : vector<224x1xf32> to vector<224x192xf32>
    %91 = arith.mulf %89, %90 : vector<224x192xf32>
    %cst_67 = arith.constant dense<0.000000e+00> : vector<192xf32>
    %92 = vector.multi_reduction <add>, %91, %cst_67 [0] : vector<224x192xf32> to vector<192xf32>
    %93 = vector.shape_cast %92 : vector<192xf32> to vector<1x192xf32>
    %94 = arith.mulf %91, %91 : vector<224x192xf32>
    %cst_68 = arith.constant dense<0.000000e+00> : vector<192xf32>
    %95 = vector.multi_reduction <add>, %94, %cst_68 [0] : vector<224x192xf32> to vector<192xf32>
    %96 = vector.shape_cast %95 : vector<192xf32> to vector<1x192xf32>
    %cst_69 = arith.constant 0.00510204071 : f32
    %97 = vector.broadcast %cst_69 : f32 to vector<1x192xf32>
    %98 = arith.mulf %93, %97 : vector<1x192xf32>
    %cst_70 = arith.constant 0.00510204071 : f32
    %99 = vector.broadcast %cst_70 : f32 to vector<1x192xf32>
    %100 = arith.mulf %96, %99 : vector<1x192xf32>
    %101 = arith.mulf %98, %98 : vector<1x192xf32>
    %102 = arith.subf %100, %101 : vector<1x192xf32>
    %cst_71 = arith.constant 0.000000e+00 : f32
    %103 = vector.broadcast %cst_71 : f32 to vector<1x192xf32>
    %104 = arith.maximumf %102, %103 : vector<1x192xf32>
    %c0_72 = arith.constant 0 : index
    %c0_73 = arith.constant 0 : index
    %105 = vector.load %arg4[%c0_72, %c0_73] : memref<1x192xf32, #tpu.memory_space<vmem>>, vector<1x192xf32>
    %cst_74 = arith.constant 9.99999974E-6 : f32
    %106 = vector.broadcast %cst_74 : f32 to vector<1x192xf32>
    %107 = arith.addf %104, %106 : vector<1x192xf32>
    %108 = math.rsqrt %107 : vector<1x192xf32>
    %109 = arith.mulf %105, %108 : vector<1x192xf32>
    %110 = vector.broadcast %109 : vector<1x192xf32> to vector<224x192xf32>
    %111 = arith.mulf %91, %110 : vector<224x192xf32>
    %c0_75 = arith.constant 0 : index
    %c0_76 = arith.constant 0 : index
    %112 = vector.load %arg5[%c0_75, %c0_76] : memref<1x192xf32, #tpu.memory_space<vmem>>, vector<1x192xf32>
    %113 = arith.mulf %98, %109 : vector<1x192xf32>
    %114 = arith.subf %112, %113 : vector<1x192xf32>
    %115 = vector.broadcast %114 : vector<1x192xf32> to vector<224x192xf32>
    %116 = arith.addf %111, %115 : vector<224x192xf32>
    %cst_77 = arith.constant 0.000000e+00 : f32
    %cst_78 = arith.constant 6.000000e+00 : f32
    %117 = vector.broadcast %cst_77 : f32 to vector<224x192xf32>
    %118 = arith.maximumf %117, %116 : vector<224x192xf32>
    %119 = vector.broadcast %cst_78 : f32 to vector<224x192xf32>
    %120 = arith.minimumf %119, %118 : vector<224x192xf32>
    %c0_79 = arith.constant 0 : index
    %c0_80 = arith.constant 0 : index
    %121 = vector.load %arg6[%c0_79, %c0_80] : memref<192x64xf32, #tpu.memory_space<vmem>>, vector<192x64xf32>
    %cst_81 = arith.constant dense<0.000000e+00> : vector<224x64xf32>
    %122 = tpu.matmul %120, %121, %cst_81 {dimension_numbers = #tpu.dot_dimension_numbers<[1], [0], [0], [1], [0, 0, 1, 1], [], []>} : vector<224x192xf32>, vector<192x64xf32>, vector<224x64xf32> -> vector<224x64xf32>
    %123 = vector.broadcast %36 : vector<224x1xf32> to vector<224x64xf32>
    %124 = arith.mulf %122, %123 : vector<224x64xf32>
    %cst_82 = arith.constant dense<0.000000e+00> : vector<64xf32>
    %125 = vector.multi_reduction <add>, %124, %cst_82 [0] : vector<224x64xf32> to vector<64xf32>
    %126 = vector.shape_cast %125 : vector<64xf32> to vector<1x64xf32>
    %127 = arith.mulf %124, %124 : vector<224x64xf32>
    %cst_83 = arith.constant dense<0.000000e+00> : vector<64xf32>
    %128 = vector.multi_reduction <add>, %127, %cst_83 [0] : vector<224x64xf32> to vector<64xf32>
    %129 = vector.shape_cast %128 : vector<64xf32> to vector<1x64xf32>
    %cst_84 = arith.constant 0.00510204071 : f32
    %130 = vector.broadcast %cst_84 : f32 to vector<1x64xf32>
    %131 = arith.mulf %126, %130 : vector<1x64xf32>
    %cst_85 = arith.constant 0.00510204071 : f32
    %132 = vector.broadcast %cst_85 : f32 to vector<1x64xf32>
    %133 = arith.mulf %129, %132 : vector<1x64xf32>
    %134 = arith.mulf %131, %131 : vector<1x64xf32>
    %135 = arith.subf %133, %134 : vector<1x64xf32>
    %cst_86 = arith.constant 0.000000e+00 : f32
    %136 = vector.broadcast %cst_86 : f32 to vector<1x64xf32>
    %137 = arith.maximumf %135, %136 : vector<1x64xf32>
    %c0_87 = arith.constant 0 : index
    %c0_88 = arith.constant 0 : index
    %138 = vector.load %arg7[%c0_87, %c0_88] : memref<1x64xf32, #tpu.memory_space<vmem>>, vector<1x64xf32>
    %cst_89 = arith.constant 9.99999974E-6 : f32
    %139 = vector.broadcast %cst_89 : f32 to vector<1x64xf32>
    %140 = arith.addf %137, %139 : vector<1x64xf32>
    %141 = math.rsqrt %140 : vector<1x64xf32>
    %142 = arith.mulf %138, %141 : vector<1x64xf32>
    %143 = vector.broadcast %142 : vector<1x64xf32> to vector<224x64xf32>
    %144 = arith.mulf %122, %143 : vector<224x64xf32>
    %c0_90 = arith.constant 0 : index
    %c0_91 = arith.constant 0 : index
    %145 = vector.load %arg8[%c0_90, %c0_91] : memref<1x64xf32, #tpu.memory_space<vmem>>, vector<1x64xf32>
    %146 = arith.mulf %131, %142 : vector<1x64xf32>
    %147 = arith.subf %145, %146 : vector<1x64xf32>
    %148 = vector.broadcast %147 : vector<1x64xf32> to vector<224x64xf32>
    %149 = arith.addf %144, %148 : vector<224x64xf32>
    %c0_92 = arith.constant 0 : index
    %c0_93 = arith.constant 0 : index
    %150 = vector.load %arg9[%c0_92, %c0_93] : memref<64x384xf32, #tpu.memory_space<vmem>>, vector<64x384xf32>
    %cst_94 = arith.constant dense<0.000000e+00> : vector<224x384xf32>
    %151 = tpu.matmul %149, %150, %cst_94 {dimension_numbers = #tpu.dot_dimension_numbers<[1], [0], [0], [1], [0, 0, 1, 1], [], []>} : vector<224x64xf32>, vector<64x384xf32>, vector<224x384xf32> -> vector<224x384xf32>
    %c0_95 = arith.constant 0 : index
    %c0_96 = arith.constant 0 : index
    %152 = vector.load %arg10[%c0_95, %c0_96] : memref<224x384xf32, #tpu.memory_space<vmem>>, vector<224x384xf32>
    tpu.vector_store %arg10[%c0_95, %c0_96], %151 {strides = array<i32>} : memref<224x384xf32, #tpu.memory_space<vmem>>, vector<224x384xf32>,
    return
  }
  func.func @transform_0(%arg0: i32) -> (i32, i32, i32) {
    %c0_i32 = arith.constant 0 : i32
    %c0_i32_0 = arith.constant 0 : i32
    %c0_i32_1 = arith.constant 0 : i32
    %c0_i32_2 = arith.constant 0 : i32
    return %c0_i32, %c0_i32_0, %c0_i32_1 : i32, i32, i32
  }
  func.func @transform_1(%arg0: i32) -> (i32, i32) {
    %c0_i32 = arith.constant 0 : i32
    %c0_i32_0 = arith.constant 0 : i32
    %c0_i32_1 = arith.constant 0 : i32
    return %c0_i32, %c0_i32_0 : i32, i32
  }
  func.func @transform_2(%arg0: i32) -> (i32, i32) {
    %c0_i32 = arith.constant 0 : i32
    %c0_i32_0 = arith.constant 0 : i32
    %c0_i32_1 = arith.constant 0 : i32
    return %c0_i32, %c0_i32_0 : i32, i32
  }
  func.func @transform_3(%arg0: i32) -> (i32, i32) {
    %c0_i32 = arith.constant 0 : i32
    %c0_i32_0 = arith.constant 0 : i32
    %c0_i32_1 = arith.constant 0 : i32
    return %c0_i32, %c0_i32_0 : i32, i32
  }
  func.func @transform_4(%arg0: i32) -> (i32, i32) {
    %c0_i32 = arith.constant 0 : i32
    %c0_i32_0 = arith.constant 0 : i32
    %c0_i32_1 = arith.constant 0 : i32
    return %c0_i32, %c0_i32_0 : i32, i32
  }
  func.func @transform_5(%arg0: i32) -> (i32, i32) {
    %c0_i32 = arith.constant 0 : i32
    %c0_i32_0 = arith.constant 0 : i32
    %c0_i32_1 = arith.constant 0 : i32
    return %c0_i32, %c0_i32_0 : i32, i32
  }
  func.func @transform_6(%arg0: i32) -> (i32, i32) {
    %c0_i32 = arith.constant 0 : i32
    %c0_i32_0 = arith.constant 0 : i32
    %c0_i32_1 = arith.constant 0 : i32
    return %c0_i32, %c0_i32_0 : i32, i32
  }
  func.func @transform_7(%arg0: i32) -> (i32, i32) {
    %c0_i32 = arith.constant 0 : i32
    %c0_i32_0 = arith.constant 0 : i32
    %c0_i32_1 = arith.constant 0 : i32
    return %c0_i32, %c0_i32_0 : i32, i32
  }
  func.func @transform_8(%arg0: i32) -> (i32, i32) {
    %c0_i32 = arith.constant 0 : i32
    %c0_i32_0 = arith.constant 0 : i32
    %c0_i32_1 = arith.constant 0 : i32
    return %c0_i32, %c0_i32_0 : i32, i32
  }
  func.func @transform_9(%arg0: i32) -> (i32, i32) {
    %c0_i32 = arith.constant 0 : i32
    %c0_i32_0 = arith.constant 0 : i32
    %c0_i32_1 = arith.constant 0 : i32
    return %c0_i32, %c0_i32_0 : i32, i32
  }
}

</mosaic_0001>

<llo_original>
// kernel: forward.1
$region0: #{forward.1}
  #allocation0 [shape = 'u32[]', space=smem, size = 0x4, offset = 0x4, fixed_abs, tag = 'smem constant byte address 0x4 - core index']
  #allocation1 [shape = 'u32[72,128]{1,0:T(1,128)}', space=vmem, size = 0x9000, scoped, tag = 'internal scratch']
  #allocation2 [shape = 'f32[4,256,192]{2,1,0:T(8,128)}', space=vmem, size = 0x100000, scoped, tag = 'scratch operand']
  %s0 = inlined_call_operand.vmem [shape: f32[4,256,192], index: 0, kind: input, shape index: {}]
  %s1 = inlined_call_operand.vmem [shape: f32[224,1], index: 1, kind: input, shape index: {}]
  %s2 = inlined_call_operand.vmem [shape: f32[9,192], index: 2, kind: input, shape index: {}]
  %s3 = inlined_call_operand.vmem [shape: f32[1,192], index: 3, kind: input, shape index: {}]
  %s4 = inlined_call_operand.vmem [shape: f32[1,192], index: 4, kind: input, shape index: {}]
  %s5 = inlined_call_operand.vmem [shape: f32[192,64], index: 5, kind: input, shape index: {}]
  %s6 = inlined_call_operand.vmem [shape: f32[1,64], index: 6, kind: input, shape index: {}]
  %s7 = inlined_call_operand.vmem [shape: f32[1,64], index: 7, kind: input, shape index: {}]
  %s8 = inlined_call_operand.vmem [shape: f32[64,384], index: 8, kind: input, shape index: {}]
  %s9 = inlined_call_operand.vmem [shape: f32[224,384], index: 9, kind: output, shape index: {}]
  %s10 = sld [smem:[#allocation0]]
  $region46: #{forward.1} parent=0
    _
  %s12 = ssub.s32 1, %s10
  %s13 = scalar_select 0, %s12, %s10
  // Predicated region
  $region2: #{forward.1} parent=0 // pred_check
    _
  $region3: #{forward.1} parent=0 // pred_check_branch
    %15 = sbr.rel (0) target = $region5
  $region4: #{forward.1} parent=0 // pred_region
    _
  $region5: #{forward.1} parent=0 // pred_fallthru
    _
  // Predicated region
  $region6: #{forward.1} parent=0 // pred_check
    _
  $region7: #{forward.1} parent=0 // pred_check_branch
    %17 = sbr.rel (0) target = $region9
  $region8: #{forward.1} parent=0 // pred_region
    _
  $region9: #{forward.1} parent=0 // pred_fallthru
    _
  // Predicated region
  $region10: #{forward.1} parent=0 // pred_check
    _
  $region11: #{forward.1} parent=0 // pred_check_branch
    %19 = sbr.rel (0) target = $region13
  $region12: #{forward.1} parent=0 // pred_region
    _
  $region13: #{forward.1} parent=0 // pred_fallthru
    _
  // Predicated region
  $region14: #{forward.1} parent=0 // pred_check
    _
  $region15: #{forward.1} parent=0 // pred_check_branch
    %21 = sbr.rel (0) target = $region17
  $region16: #{forward.1} parent=0 // pred_region
    _
  $region17: #{forward.1} parent=0 // pred_fallthru
    _
  // Predicated region
  $region18: #{forward.1} parent=0 // pred_check
    _
  $region19: #{forward.1} parent=0 // pred_check_branch
    %23 = sbr.rel (0) target = $region21
  $region20: #{forward.1} parent=0 // pred_region
    _
  $region21: #{forward.1} parent=0 // pred_fallthru
    _
  // Predicated region
  $region22: #{forward.1} parent=0 // pred_check
    _
  $region23: #{forward.1} parent=0 // pred_check_branch
    %25 = sbr.rel (0) target = $region25
  $region24: #{forward.1} parent=0 // pred_region
    _
  $region25: #{forward.1} parent=0 // pred_fallthru
    _
  // Predicated region
  $region26: #{forward.1} parent=0 // pred_check
    _
  $region27: #{forward.1} parent=0 // pred_check_branch
    %27 = sbr.rel (0) target = $region29
  $region28: #{forward.1} parent=0 // pred_region
    _
  $region29: #{forward.1} parent=0 // pred_fallthru
    _
  // Predicated region
  $region30: #{forward.1} parent=0 // pred_check
    _
  $region31: #{forward.1} parent=0 // pred_check_branch
    %29 = sbr.rel (0) target = $region33
  $region32: #{forward.1} parent=0 // pred_region
    _
  $region33: #{forward.1} parent=0 // pred_fallthru
    _
  // Predicated region
  $region34: #{forward.1} parent=0 // pred_check
    _
  $region35: #{forward.1} parent=0 // pred_check_branch
    %31 = sbr.rel (0) target = $region37
  $region36: #{forward.1} parent=0 // pred_region
    _
  $region37: #{forward.1} parent=0 // pred_fallthru
    _
  %v32 = vld [vmem:[%s0] sm:$0xff]
  %v33 = vld [vmem:[%s0 + $0x8] sm:$0xff]
  %v34 = vld [vmem:[%s0 + $0x10] sm:$0xff]
  %v35 = vld [vmem:[%s0 + $0x18] sm:$0xff]
  %v36 = vld [vmem:[%s0 + $0x20] sm:$0xff]
  %v37 = vld [vmem:[%s0 + $0x28] sm:$0xff]
  %v38 = vld [vmem:[%s0 + $0x30] sm:$0xff]
  %v39 = vld [vmem:[%s0 + $0x38] sm:$0xff]
  %v40 = vld [vmem:[%s0 + $0x40] sm:$0xff]
  %v41 = vld [vmem:[%s0 + $0x48] sm:$0xff]
  %v42 = vld [vmem:[%s0 + $0x50] sm:$0xff]
  %v43 = vld [vmem:[%s0 + $0x58] sm:$0xff]
  %v44 = vld [vmem:[%s0 + $0x60] sm:$0xff]
  %v45 = vld [vmem:[%s0 + $0x68] sm:$0xff]
  %v46 = vld [vmem:[%s0 + $0x70] sm:$0xff]
  %v47 = vld [vmem:[%s0 + $0x78] sm:$0xff]
  %v48 = vld [vmem:[%s0 + $0x80] sm:$0xff]
  %v49 = vld [vmem:[%s0 + $0x88] sm:$0xff]
  %v50 = vld [vmem:[%s0 + $0x90] sm:$0xff]
  %v51 = vld [vmem:[%s0 + $0x98] sm:$0xff]
  %v52 = vld [vmem:[%s0 + $0xa0] sm:$0xff]
  %v53 = vld [vmem:[%s0 + $0xa8] sm:$0xff]
  %v54 = vld [vmem:[%s0 + $0xb0] sm:$0xff]
  %v55 = vld [vmem:[%s0 + $0xb8] sm:$0xff]
  %v56 = vld [vmem:[%s0 + $0xc0] sm:$0xff]
  %v57 = vld [vmem:[%s0 + $0xc8] sm:$0xff]
  %v58 = vld [vmem:[%s0 + $0xd0] sm:$0xff]
  %v59 = vld [vmem:[%s0 + $0xd8] sm:$0xff]
  %v60 = vld [vmem:[%s0 + $0xe0] sm:$0xff]
  %v61 = vld [vmem:[%s0 + $0xe8] sm:$0xff]
  %v62 = vld [vmem:[%s0 + $0xf0] sm:$0xff]
  %v63 = vld [vmem:[%s0 + $0xf8] sm:$0xff]
  %v64 = vld [vmem:[%s0 + $0x100] sm:$0xff]
  %v65 = vld [vmem:[%s0 + $0x108] sm:$0xff]
  %v66 = vld [vmem:[%s0 + $0x110] sm:$0xff]
  %v67 = vld [vmem:[%s0 + $0x118] sm:$0xff]
  %v68 = vld [vmem:[%s0 + $0x120] sm:$0xff]
  %v69 = vld [vmem:[%s0 + $0x128] sm:$0xff]
  %v70 = vld [vmem:[%s0 + $0x130] sm:$0xff]
  %v71 = vld [vmem:[%s0 + $0x138] sm:$0xff]
  %v72 = vld [vmem:[%s0 + $0x140] sm:$0xff]
  %v73 = vld [vmem:[%s0 + $0x148] sm:$0xff]
  %v74 = vld [vmem:[%s0 + $0x150] sm:$0xff]
  %v75 = vld [vmem:[%s0 + $0x158] sm:$0xff]
  %v76 = vld [vmem:[%s0 + $0x160] sm:$0xff]
  %v77 = vld [vmem:[%s0 + $0x168] sm:$0xff]
  %v78 = vld [vmem:[%s0 + $0x170] sm:$0xff]
  %v79 = vld [vmem:[%s0 + $0x178] sm:$0xff]
  %v80 = vld [vmem:[%s0 + $0x180] sm:$0xff]
  %v81 = vld [vmem:[%s0 + $0x188] sm:$0xff]
  %v82 = vld [vmem:[%s0 + $0x190] sm:$0xff]
  %v83 = vld [vmem:[%s0 + $0x198] sm:$0xff]
  %v84 = vld [vmem:[%s0 + $0x1a0] sm:$0xff]
  %v85 = vld [vmem:[%s0 + $0x1a8] sm:$0xff]
  %v86 = vld [vmem:[%s0 + $0x1b0] sm:$0xff]
  %v87 = vld [vmem:[%s0 + $0x1b8] sm:$0xff]
  %v88 = vld [vmem:[%s0 + $0x1c0] sm:$0xff]
  %v89 = vld [vmem:[%s0 + $0x1c8] sm:$0xff]
  %v90 = vld [vmem:[%s0 + $0x1d0] sm:$0xff]
  %v91 = vld [vmem:[%s0 + $0x1d8] sm:$0xff]
  %v92 = vld [vmem:[%s0 + $0x1e0] sm:$0xff]
  %v93 = vld [vmem:[%s0 + $0x1e8] sm:$0xff]
  %v94 = vld [vmem:[%s0 + $0x1f0] sm:$0xff]
  %v95 = vld [vmem:[%s0 + $0x1f8] sm:$0xff]
  %v96 = vmax.f32 %v32, 0.0
  %v97 = vmax.f32 %v33, 0.0
  %v98 = vmax.f32 %v34, 0.0
  %v99 = vmax.f32 %v35, 0.0
  %v100 = vmax.f32 %v36, 0.0
  %v101 = vmax.f32 %v37, 0.0
  %v102 = vmax.f32 %v38, 0.0
  %v103 = vmax.f32 %v39, 0.0
  %v104 = vmax.f32 %v40, 0.0
  %v105 = vmax.f32 %v41, 0.0
  %v106 = vmax.f32 %v42, 0.0
  %v107 = vmax.f32 %v43, 0.0
  %v108 = vmax.f32 %v44, 0.0
  %v109 = vmax.f32 %v45, 0.0
  %v110 = vmax.f32 %v46, 0.0
  %v111 = vmax.f32 %v47, 0.0
  %v112 = vmax.f32 %v48, 0.0
  %v113 = vmax.f32 %v49, 0.0
  %v114 = vmax.f32 %v50, 0.0
  %v115 = vmax.f32 %v51, 0.0
  %v116 = vmax.f32 %v52, 0.0
  %v117 = vmax.f32 %v53, 0.0
  %v118 = vmax.f32 %v54, 0.0
  %v119 = vmax.f32 %v55, 0.0
  %v120 = vmax.f32 %v56, 0.0
  %v121 = vmax.f32 %v57, 0.0
  %v122 = vmax.f32 %v58, 0.0
  %v123 = vmax.f32 %v59, 0.0
  %v124 = vmax.f32 %v60, 0.0
  %v125 = vmax.f32 %v61, 0.0
  %v126 = vmax.f32 %v62, 0.0
  %v127 = vmax.f32 %v63, 0.0
  %v128 = vmax.f32 %v64, 0.0
  %v129 = vmax.f32 %v65, 0.0
  %v130 = vmax.f32 %v66, 0.0
  %v131 = vmax.f32 %v67, 0.0
  %v132 = vmax.f32 %v68, 0.0
  %v133 = vmax.f32 %v69, 0.0
  %v134 = vmax.f32 %v70, 0.0
  %v135 = vmax.f32 %v71, 0.0
  %v136 = vmax.f32 %v72, 0.0
  %v137 = vmax.f32 %v73, 0.0
  %v138 = vmax.f32 %v74, 0.0
  %v139 = vmax.f32 %v75, 0.0
  %v140 = vmax.f32 %v76, 0.0
  %v141 = vmax.f32 %v77, 0.0
  %v142 = vmax.f32 %v78, 0.0
  %v143 = vmax.f32 %v79, 0.0
  %v144 = vmax.f32 %v80, 0.0
  %v145 = vmax.f32 %v81, 0.0
  %v146 = vmax.f32 %v82, 0.0
  %v147 = vmax.f32 %v83, 0.0
  %v148 = vmax.f32 %v84, 0.0
  %v149 = vmax.f32 %v85, 0.0
  %v150 = vmax.f32 %v86, 0.0
  %v151 = vmax.f32 %v87, 0.0
  %v152 = vmax.f32 %v88, 0.0
  %v153 = vmax.f32 %v89, 0.0
  %v154 = vmax.f32 %v90, 0.0
  %v155 = vmax.f32 %v91, 0.0
  %v156 = vmax.f32 %v92, 0.0
  %v157 = vmax.f32 %v93, 0.0
  %v158 = vmax.f32 %v94, 0.0
  %v159 = vmax.f32 %v95, 0.0
  %v160 = vmin.f32 %v96, 6.0
  %v161 = vmin.f32 %v97, 6.0
  %v162 = vmin.f32 %v98, 6.0
  %v163 = vmin.f32 %v99, 6.0
  %v164 = vmin.f32 %v100, 6.0
  %v165 = vmin.f32 %v101, 6.0
  %v166 = vmin.f32 %v102, 6.0
  %v167 = vmin.f32 %v103, 6.0
  %v168 = vmin.f32 %v104, 6.0
  %v169 = vmin.f32 %v105, 6.0
  %v170 = vmin.f32 %v106, 6.0
  %v171 = vmin.f32 %v107, 6.0
  %v172 = vmin.f32 %v108, 6.0
  %v173 = vmin.f32 %v109, 6.0
  %v174 = vmin.f32 %v110, 6.0
  %v175 = vmin.f32 %v111, 6.0
  %v176 = vmin.f32 %v112, 6.0
  %v177 = vmin.f32 %v113, 6.0
  %v178 = vmin.f32 %v114, 6.0
  %v179 = vmin.f32 %v115, 6.0
  %v180 = vmin.f32 %v116, 6.0
  %v181 = vmin.f32 %v117, 6.0
  %v182 = vmin.f32 %v118, 6.0
  %v183 = vmin.f32 %v119, 6.0
  %v184 = vmin.f32 %v120, 6.0
  %v185 = vmin.f32 %v121, 6.0
  %v186 = vmin.f32 %v122, 6.0
  %v187 = vmin.f32 %v123, 6.0
  %v188 = vmin.f32 %v124, 6.0
  %v189 = vmin.f32 %v125, 6.0
  %v190 = vmin.f32 %v126, 6.0
  %v191 = vmin.f32 %v127, 6.0
  %v192 = vmin.f32 %v128, 6.0
  %v193 = vmin.f32 %v129, 6.0
  %v194 = vmin.f32 %v130, 6.0
  %v195 = vmin.f32 %v131, 6.0
  %v196 = vmin.f32 %v132, 6.0
  %v197 = vmin.f32 %v133, 6.0
  %v198 = vmin.f32 %v134, 6.0
  %v199 = vmin.f32 %v135, 6.0
  %v200 = vmin.f32 %v136, 6.0
  %v201 = vmin.f32 %v137, 6.0
  %v202 = vmin.f32 %v138, 6.0
  %v203 = vmin.f32 %v139, 6.0
  %v204 = vmin.f32 %v140, 6.0
  %v205 = vmin.f32 %v141, 6.0
  %v206 = vmin.f32 %v142, 6.0
  %v207 = vmin.f32 %v143, 6.0
  %v208 = vmin.f32 %v144, 6.0
  %v209 = vmin.f32 %v145, 6.0
  %v210 = vmin.f32 %v146, 6.0
  %v211 = vmin.f32 %v147, 6.0
  %v212 = vmin.f32 %v148, 6.0
  %v213 = vmin.f32 %v149, 6.0
  %v214 = vmin.f32 %v150, 6.0
  %v215 = vmin.f32 %v151, 6.0
  %v216 = vmin.f32 %v152, 6.0
  %v217 = vmin.f32 %v153, 6.0
  %v218 = vmin.f32 %v154, 6.0
  %v219 = vmin.f32 %v155, 6.0
  %v220 = vmin.f32 %v156, 6.0
  %v221 = vmin.f32 %v157, 6.0
  %v222 = vmin.f32 %v158, 6.0
  %v223 = vmin.f32 %v159, 6.0
  %224 = vst [vmem:[#allocation2] sm:$0xff] %v160
  %vm225 = vcmask 523264
  %226 = vst.msk [vmem:[#allocation2 + $0x8] sm:$0xff] %vm225, %v161
  %227 = vst [vmem:[#allocation2 + $0x10] sm:$0xff] %v162
  %228 = vst.msk [vmem:[#allocation2 + $0x18] sm:$0xff] %vm225, %v163
  %229 = vst [vmem:[#allocation2 + $0x20] sm:$0xff] %v164
  %230 = vst.msk [vmem:[#allocation2 + $0x28] sm:$0xff] %vm225, %v165
  %231 = vst [vmem:[#allocation2 + $0x30] sm:$0xff] %v166
  %232 = vst.msk [vmem:[#allocation2 + $0x38] sm:$0xff] %vm225, %v167
  %233 = vst [vmem:[#allocation2 + $0x40] sm:$0xff] %v168
  %234 = vst.msk [vmem:[#allocation2 + $0x48] sm:$0xff] %vm225, %v169
  %235 = vst [vmem:[#allocation2 + $0x50] sm:$0xff] %v170
  %236 = vst.msk [vmem:[#allocation2 + $0x58] sm:$0xff] %vm225, %v171
  %237 = vst [vmem:[#allocation2 + $0x60] sm:$0xff] %v172
  %238 = vst.msk [vmem:[#allocation2 + $0x68] sm:$0xff] %vm225, %v173
  %239 = vst [vmem:[#allocation2 + $0x70] sm:$0xff] %v174
  %240 = vst.msk [vmem:[#allocation2 + $0x78] sm:$0xff] %vm225, %v175
  %241 = vst [vmem:[#allocation2 + $0x80] sm:$0xff] %v176
  %242 = vst.msk [vmem:[#allocation2 + $0x88] sm:$0xff] %vm225, %v177
  %243 = vst [vmem:[#allocation2 + $0x90] sm:$0xff] %v178
  %244 = vst.msk [vmem:[#allocation2 + $0x98] sm:$0xff] %vm225, %v179
  %245 = vst [vmem:[#allocation2 + $0xa0] sm:$0xff] %v180
  %246 = vst.msk [vmem:[#allocation2 + $0xa8] sm:$0xff] %vm225, %v181
  %247 = vst [vmem:[#allocation2 + $0xb0] sm:$0xff] %v182
  %248 = vst.msk [vmem:[#allocation2 + $0xb8] sm:$0xff] %vm225, %v183
  %249 = vst [vmem:[#allocation2 + $0xc0] sm:$0xff] %v184
  %250 = vst.msk [vmem:[#allocation2 + $0xc8] sm:$0xff] %vm225, %v185
  %251 = vst [vmem:[#allocation2 + $0xd0] sm:$0xff] %v186
  %252 = vst.msk [vmem:[#allocation2 + $0xd8] sm:$0xff] %vm225, %v187
  %253 = vst [vmem:[#allocation2 + $0xe0] sm:$0xff] %v188
  %254 = vst.msk [vmem:[#allocation2 + $0xe8] sm:$0xff] %vm225, %v189
  %255 = vst [vmem:[#allocation2 + $0xf0] sm:$0xff] %v190
  %256 = vst.msk [vmem:[#allocation2 + $0xf8] sm:$0xff] %vm225, %v191
  %257 = vst [vmem:[#allocation2 + $0x100] sm:$0xff] %v192
  %258 = vst.msk [vmem:[#allocation2 + $0x108] sm:$0xff] %vm225, %v193
  %259 = vst [vmem:[#allocation2 + $0x110] sm:$0xff] %v194
  %260 = vst.msk [vmem:[#allocation2 + $0x118] sm:$0xff] %vm225, %v195
  %261 = vst [vmem:[#allocation2 + $0x120] sm:$0xff] %v196
  %262 = vst.msk [vmem:[#allocation2 + $0x128] sm:$0xff] %vm225, %v197
  %263 = vst [vmem:[#allocation2 + $0x130] sm:$0xff] %v198
  %264 = vst.msk [vmem:[#allocation2 + $0x138] sm:$0xff] %vm225, %v199
  %265 = vst [vmem:[#allocation2 + $0x140] sm:$0xff] %v200
  %266 = vst.msk [vmem:[#allocation2 + $0x148] sm:$0xff] %vm225, %v201
  %267 = vst [vmem:[#allocation2 + $0x150] sm:$0xff] %v202
  %268 = vst.msk [vmem:[#allocation2 + $0x158] sm:$0xff] %vm225, %v203
  %269 = vst [vmem:[#allocation2 + $0x160] sm:$0xff] %v204
  %270 = vst.msk [vmem:[#allocation2 + $0x168] sm:$0xff] %vm225, %v205
  %271 = vst [vmem:[#allocation2 + $0x170] sm:$0xff] %v206
  %272 = vst.msk [vmem:[#allocation2 + $0x178] sm:$0xff] %vm225, %v207
  %273 = vst [vmem:[#allocation2 + $0x180] sm:$0xff] %v208
  %274 = vst.msk [vmem:[#allocation2 + $0x188] sm:$0xff] %vm225, %v209
  %275 = vst [vmem:[#allocation2 + $0x190] sm:$0xff] %v210
  %276 = vst.msk [vmem:[#allocation2 + $0x198] sm:$0xff] %vm225, %v211
  %277 = vst [vmem:[#allocation2 + $0x1a0] sm:$0xff] %v212
  %278 = vst.msk [vmem:[#allocation2 + $0x1a8] sm:$0xff] %vm225, %v213
  %279 = vst [vmem:[#allocation2 + $0x1b0] sm:$0xff] %v214
  %280 = vst.msk [vmem:[#allocation2 + $0x1b8] sm:$0xff] %vm225, %v215
  %281 = vst [vmem:[#allocation2 + $0x1c0] sm:$0xff] %v216
  %282 = vst.msk [vmem:[#allocation2 + $0x1c8] sm:$0xff] %vm225, %v217
  %283 = vst [vmem:[#allocation2 + $0x1d0] sm:$0xff] %v218
  %284 = vst.msk [vmem:[#allocation2 + $0x1d8] sm:$0xff] %vm225, %v219
  %285 = vst [vmem:[#allocation2 + $0x1e0] sm:$0xff] %v220
  %286 = vst.msk [vmem:[#allocation2 + $0x1e8] sm:$0xff] %vm225, %v221
  %287 = vst [vmem:[#allocation2 + $0x1f0] sm:$0xff] %v222
  %288 = vst.msk [vmem:[#allocation2 + $0x1f8] sm:$0xff] %vm225, %v223
  %s289 = scalar_lea.vmem %s0, 512
  %v290 = vld [vmem:[%s289] sm:$0xff]
  %v291 = vld [vmem:[%s289 + $0x8] sm:$0xff]
  %v292 = vld [vmem:[%s289 + $0x10] sm:$0xff]
  %v293 = vld [vmem:[%s289 + $0x18] sm:$0xff]
  %v294 = vld [vmem:[%s289 + $0x20] sm:$0xff]
  %v295 = vld [vmem:[%s289 + $0x28] sm:$0xff]
  %v296 = vld [vmem:[%s289 + $0x30] sm:$0xff]
  %v297 = vld [vmem:[%s289 + $0x38] sm:$0xff]
  %v298 = vld [vmem:[%s289 + $0x40] sm:$0xff]
  %v299 = vld [vmem:[%s289 + $0x48] sm:$0xff]
  %v300 = vld [vmem:[%s289 + $0x50] sm:$0xff]
  %v301 = vld [vmem:[%s289 + $0x58] sm:$0xff]
  %v302 = vld [vmem:[%s289 + $0x60] sm:$0xff]
  %v303 = vld [vmem:[%s289 + $0x68] sm:$0xff]
  %v304 = vld [vmem:[%s289 + $0x70] sm:$0xff]
  %v305 = vld [vmem:[%s289 + $0x78] sm:$0xff]
  %v306 = vld [vmem:[%s289 + $0x80] sm:$0xff]
  %v307 = vld [vmem:[%s289 + $0x88] sm:$0xff]
  %v308 = vld [vmem:[%s289 + $0x90] sm:$0xff]
  %v309 = vld [vmem:[%s289 + $0x98] sm:$0xff]
  %v310 = vld [vmem:[%s289 + $0xa0] sm:$0xff]
  %v311 = vld [vmem:[%s289 + $0xa8] sm:$0xff]
  %v312 = vld [vmem:[%s289 + $0xb0] sm:$0xff]
  %v313 = vld [vmem:[%s289 + $0xb8] sm:$0xff]
  %v314 = vld [vmem:[%s289 + $0xc0] sm:$0xff]
  %v315 = vld [vmem:[%s289 + $0xc8] sm:$0xff]
  %v316 = vld [vmem:[%s289 + $0xd0] sm:$0xff]
  %v317 = vld [vmem:[%s289 + $0xd8] sm:$0xff]
  %v318 = vld [vmem:[%s289 + $0xe0] sm:$0xff]
  %v319 = vld [vmem:[%s289 + $0xe8] sm:$0xff]
  %v320 = vld [vmem:[%s289 + $0xf0] sm:$0xff]
  %v321 = vld [vmem:[%s289 + $0xf8] sm:$0xff]
  %v322 = vld [vmem:[%s289 + $0x100] sm:$0xff]
  %v323 = vld [vmem:[%s289 + $0x108] sm:$0xff]
  %v324 = vld [vmem:[%s289 + $0x110] sm:$0xff]
  %v325 = vld [vmem:[%s289 + $0x118] sm:$0xff]
  %v326 = vld [vmem:[%s289 + $0x120] sm:$0xff]
  %v327 = vld [vmem:[%s289 + $0x128] sm:$0xff]
  %v328 = vld [vmem:[%s289 + $0x130] sm:$0xff]
  %v329 = vld [vmem:[%s289 + $0x138] sm:$0xff]
  %v330 = vld [vmem:[%s289 + $0x140] sm:$0xff]
  %v331 = vld [vmem:[%s289 + $0x148] sm:$0xff]
  %v332 = vld [vmem:[%s289 + $0x150] sm:$0xff]
  %v333 = vld [vmem:[%s289 + $0x158] sm:$0xff]
  %v334 = vld [vmem:[%s289 + $0x160] sm:$0xff]
  %v335 = vld [vmem:[%s289 + $0x168] sm:$0xff]
  %v336 = vld [vmem:[%s289 + $0x170] sm:$0xff]
  %v337 = vld [vmem:[%s289 + $0x178] sm:$0xff]
  %v338 = vld [vmem:[%s289 + $0x180] sm:$0xff]
  %v339 = vld [vmem:[%s289 + $0x188] sm:$0xff]
  %v340 = vld [vmem:[%s289 + $0x190] sm:$0xff]
  %v341 = vld [vmem:[%s289 + $0x198] sm:$0xff]
  %v342 = vld [vmem:[%s289 + $0x1a0] sm:$0xff]
  %v343 = vld [vmem:[%s289 + $0x1a8] sm:$0xff]
  %v344 = vld [vmem:[%s289 + $0x1b0] sm:$0xff]
  %v345 = vld [vmem:[%s289 + $0x1b8] sm:$0xff]
  %v346 = vld [vmem:[%s289 + $0x1c0] sm:$0xff]
  %v347 = vld [vmem:[%s289 + $0x1c8] sm:$0xff]
  %v348 = vld [vmem:[%s289 + $0x1d0] sm:$0xff]
  %v349 = vld [vmem:[%s289 + $0x1d8] sm:$0xff]
  %v350 = vld [vmem:[%s289 + $0x1e0] sm:$0xff]
  %v351 = vld [vmem:[%s289 + $0x1e8] sm:$0xff]
  %v352 = vld [vmem:[%s289 + $0x1f0] sm:$0xff]
  %v353 = vld [vmem:[%s289 + $0x1f8] sm:$0xff]
  %v354 = vmax.f32 %v290, 0.0
  %v355 = vmax.f32 %v291, 0.0
  %v356 = vmax.f32 %v292, 0.0
  %v357 = vmax.f32 %v293, 0.0
  %v358 = vmax.f32 %v294, 0.0
  %v359 = vmax.f32 %v295, 0.0
  %v360 = vmax.f32 %v296, 0.0
  %v361 = vmax.f32 %v297, 0.0
  %v362 = vmax.f32 %v298, 0.0
  %v363 = vmax.f32 %v299, 0.0
  %v364 = vmax.f32 %v300, 0.0
  %v365 = vmax.f32 %v301, 0.0
  %v366 = vmax.f32 %v302, 0.0
  %v367 = vmax.f32 %v303, 0.0
  %v368 = vmax.f32 %v304, 0.0
  %v369 = vmax.f32 %v305, 0.0
  %v370 = vmax.f32 %v306, 0.0
  %v371 = vmax.f32 %v307, 0.0
  %v372 = vmax.f32 %v308, 0.0
  %v373 = vmax.f32 %v309, 0.0
  %v374 = vmax.f32 %v310, 0.0
  %v375 = vmax.f32 %v311, 0.0
  %v376 = vmax.f32 %v312, 0.0
  %v377 = vmax.f32 %v313, 0.0
  %v378 = vmax.f32 %v314, 0.0
  %v379 = vmax.f32 %v315, 0.0
  %v380 = vmax.f32 %v316, 0.0
  %v381 = vmax.f32 %v317, 0.0
  %v382 = vmax.f32 %v318, 0.0
  %v383 = vmax.f32 %v319, 0.0
  %v384 = vmax.f32 %v320, 0.0
  %v385 = vmax.f32 %v321, 0.0
  %v386 = vmax.f32 %v322, 0.0
  %v387 = vmax.f32 %v323, 0.0
  %v388 = vmax.f32 %v324, 0.0
  %v389 = vmax.f32 %v325, 0.0
  %v390 = vmax.f32 %v326, 0.0
  %v391 = vmax.f32 %v327, 0.0
  %v392 = vmax.f32 %v328, 0.0
  %v393 = vmax.f32 %v329, 0.0
  %v394 = vmax.f32 %v330, 0.0
  %v395 = vmax.f32 %v331, 0.0
  %v396 = vmax.f32 %v332, 0.0
  %v397 = vmax.f32 %v333, 0.0
  %v398 = vmax.f32 %v334, 0.0
  %v399 = vmax.f32 %v335, 0.0
  %v400 = vmax.f32 %v336, 0.0
  %v401 = vmax.f32 %v337, 0.0
  %v402 = vmax.f32 %v338, 0.0
  %v403 = vmax.f32 %v339, 0.0
  %v404 = vmax.f32 %v340, 0.0
  %v405 = vmax.f32 %v341, 0.0
  %v406 = vmax.f32 %v342, 0.0
  %v407 = vmax.f32 %v343, 0.0
  %v408 = vmax.f32 %v344, 0.0
  %v409 = vmax.f32 %v345, 0.0
  %v410 = vmax.f32 %v346, 0.0
  %v411 = vmax.f32 %v347, 0.0
  %v412 = vmax.f32 %v348, 0.0
  %v413 = vmax.f32 %v349, 0.0
  %v414 = vmax.f32 %v350, 0.0
  %v415 = vmax.f32 %v351, 0.0
  %v416 = vmax.f32 %v352, 0.0
  %v417 = vmax.f32 %v353, 0.0
  %v418 = vmin.f32 %v354, 6.0
  %v419 = vmin.f32 %v355, 6.0
  %v420 = vmin.f32 %v356, 6.0
  %v421 = vmin.f32 %v357, 6.0
  %v422 = vmin.f32 %v358, 6.0
  %v423 = vmin.f32 %v359, 6.0
  %v424 = vmin.f32 %v360, 6.0
  %v425 = vmin.f32 %v361, 6.0
  %v426 = vmin.f32 %v362, 6.0
  %v427 = vmin.f32 %v363, 6.0
  %v428 = vmin.f32 %v364, 6.0
  %v429 = vmin.f32 %v365, 6.0
  %v430 = vmin.f32 %v366, 6.0
  %v431 = vmin.f32 %v367, 6.0
  %v432 = vmin.f32 %v368, 6.0
  %v433 = vmin.f32 %v369, 6.0
  %v434 = vmin.f32 %v370, 6.0
  %v435 = vmin.f32 %v371, 6.0
  %v436 = vmin.f32 %v372, 6.0
  %v437 = vmin.f32 %v373, 6.0
  %v438 = vmin.f32 %v374, 6.0
  %v439 = vmin.f32 %v375, 6.0
  %v440 = vmin.f32 %v376, 6.0
  %v441 = vmin.f32 %v377, 6.0
  %v442 = vmin.f32 %v378, 6.0
  %v443 = vmin.f32 %v379, 6.0
  %v444 = vmin.f32 %v380, 6.0
  %v445 = vmin.f32 %v381, 6.0
  %v446 = vmin.f32 %v382, 6.0
  %v447 = vmin.f32 %v383, 6.0
  %v448 = vmin.f32 %v384, 6.0
  %v449 = vmin.f32 %v385, 6.0
  %v450 = vmin.f32 %v386, 6.0
  %v451 = vmin.f32 %v387, 6.0
  %v452 = vmin.f32 %v388, 6.0
  %v453 = vmin.f32 %v389, 6.0
  %v454 = vmin.f32 %v390, 6.0
  %v455 = vmin.f32 %v391, 6.0
  %v456 = vmin.f32 %v392, 6.0
  %v457 = vmin.f32 %v393, 6.0
  %v458 = vmin.f32 %v394, 6.0
  %v459 = vmin.f32 %v395, 6.0
  %v460 = vmin.f32 %v396, 6.0
  %v461 = vmin.f32 %v397, 6.0
  %v462 = vmin.f32 %v398, 6.0
  %v463 = vmin.f32 %v399, 6.0
  %v464 = vmin.f32 %v400, 6.0
  %v465 = vmin.f32 %v401, 6.0
  %v466 = vmin.f32 %v402, 6.0
  %v467 = vmin.f32 %v403, 6.0
  %v468 = vmin.f32 %v404, 6.0
  %v469 = vmin.f32 %v405, 6.0
  %v470 = vmin.f32 %v406, 6.0
  %v471 = vmin.f32 %v407, 6.0
  %v472 = vmin.f32 %v408, 6.0
  %v473 = vmin.f32 %v409, 6.0
  %v474 = vmin.f32 %v410, 6.0
  %v475 = vmin.f32 %v411, 6.0
  %v476 = vmin.f32 %v412, 6.0
  %v477 = vmin.f32 %v413, 6.0
  %v478 = vmin.f32 %v414, 6.0
  %v479 = vmin.f32 %v415, 6.0
  %v480 = vmin.f32 %v416, 6.0
  %v481 = vmin.f32 %v417, 6.0
  %s482 = scalar_lea.vmem [#allocation2], 512
  %483 = vst [vmem:[%s482] sm:$0xff] %v418
  %484 = vst.msk [vmem:[%s482 + $0x8] sm:$0xff] %vm225, %v419
  %485 = vst [vmem:[%s482 + $0x10] sm:$0xff] %v420
  %486 = vst.msk [vmem:[%s482 + $0x18] sm:$0xff] %vm225, %v421
  %487 = vst [vmem:[%s482 + $0x20] sm:$0xff] %v422
  %488 = vst.msk [vmem:[%s482 + $0x28] sm:$0xff] %vm225, %v423
  %489 = vst [vmem:[%s482 + $0x30] sm:$0xff] %v424
  %490 = vst.msk [vmem:[%s482 + $0x38] sm:$0xff] %vm225, %v425
  %491 = vst [vmem:[%s482 + $0x40] sm:$0xff] %v426
  %492 = vst.msk [vmem:[%s482 + $0x48] sm:$0xff] %vm225, %v427
  %493 = vst [vmem:[%s482 + $0x50] sm:$0xff] %v428
  %494 = vst.msk [vmem:[%s482 + $0x58] sm:$0xff] %vm225, %v429
  %495 = vst [vmem:[%s482 + $0x60] sm:$0xff] %v430
  %496 = vst.msk [vmem:[%s482 + $0x68] sm:$0xff] %vm225, %v431
  %497 = vst [vmem:[%s482 + $0x70] sm:$0xff] %v432
  %498 = vst.msk [vmem:[%s482 + $0x78] sm:$0xff] %vm225, %v433
  %499 = vst [vmem:[%s482 + $0x80] sm:$0xff] %v434
  %500 = vst.msk [vmem:[%s482 + $0x88] sm:$0xff] %vm225, %v435
  %501 = vst [vmem:[%s482 + $0x90] sm:$0xff] %v436
  %502 = vst.msk [vmem:[%s482 + $0x98] sm:$0xff] %vm225, %v437
  %503 = vst [vmem:[%s482 + $0xa0] sm:$0xff] %v438
  %504 = vst.msk [vmem:[%s482 + $0xa8] sm:$0xff] %vm225, %v439
  %505 = vst [vmem:[%s482 + $0xb0] sm:$0xff] %v440
  %506 = vst.msk [vmem:[%s482 + $0xb8] sm:$0xff] %vm225, %v441
  %507 = vst [vmem:[%s482 + $0xc0] sm:$0xff] %v442
  %508 = vst.msk [vmem:[%s482 + $0xc8] sm:$0xff] %vm225, %v443
  %509 = vst [vmem:[%s482 + $0xd0] sm:$0xff] %v444
  %510 = vst.msk [vmem:[%s482 + $0xd8] sm:$0xff] %vm225, %v445
  %511 = vst [vmem:[%s482 + $0xe0] sm:$0xff] %v446
  %512 = vst.msk [vmem:[%s482 + $0xe8] sm:$0xff] %vm225, %v447
  %513 = vst [vmem:[%s482 + $0xf0] sm:$0xff] %v448
  %514 = vst.msk [vmem:[%s482 + $0xf8] sm:$0xff] %vm225, %v449
  %515 = vst [vmem:[%s482 + $0x100] sm:$0xff] %v450
  %516 = vst.msk [vmem:[%s482 + $0x108] sm:$0xff] %vm225, %v451
  %517 = vst [vmem:[%s482 + $0x110] sm:$0xff] %v452
  %518 = vst.msk [vmem:[%s482 + $0x118] sm:$0xff] %vm225, %v453
  %519 = vst [vmem:[%s482 + $0x120] sm:$0xff] %v454
  %520 = vst.msk [vmem:[%s482 + $0x128] sm:$0xff] %vm225, %v455
  %521 = vst [vmem:[%s482 + $0x130] sm:$0xff] %v456
  %522 = vst.msk [vmem:[%s482 + $0x138] sm:$0xff] %vm225, %v457
  %523 = vst [vmem:[%s482 + $0x140] sm:$0xff] %v458
  %524 = vst.msk [vmem:[%s482 + $0x148] sm:$0xff] %vm225, %v459
  %525 = vst [vmem:[%s482 + $0x150] sm:$0xff] %v460
  %526 = vst.msk [vmem:[%s482 + $0x158] sm:$0xff] %vm225, %v461
  %527 = vst [vmem:[%s482 + $0x160] sm:$0xff] %v462
  %528 = vst.msk [vmem:[%s482 + $0x168] sm:$0xff] %vm225, %v463
  %529 = vst [vmem:[%s482 + $0x170] sm:$0xff] %v464
  %530 = vst.msk [vmem:[%s482 + $0x178] sm:$0xff] %vm225, %v465
  %531 = vst [vmem:[%s482 + $0x180] sm:$0xff] %v466
  %532 = vst.msk [vmem:[%s482 + $0x188] sm:$0xff] %vm225, %v467
  %533 = vst [vmem:[%s482 + $0x190] sm:$0xff] %v468
  %534 = vst.msk [vmem:[%s482 + $0x198] sm:$0xff] %vm225, %v469
  %535 = vst [vmem:[%s482 + $0x1a0] sm:$0xff] %v470
  %536 = vst.msk [vmem:[%s482 + $0x1a8] sm:$0xff] %vm225, %v471
  %537 = vst [vmem:[%s482 + $0x1b0] sm:$0xff] %v472
  %538 = vst.msk [vmem:[%s482 + $0x1b8] sm:$0xff] %vm225, %v473
  %539 = vst [vmem:[%s482 + $0x1c0] sm:$0xff] %v474
  %540 = vst.msk [vmem:[%s482 + $0x1c8] sm:$0xff] %vm225, %v475
  %541 = vst [vmem:[%s482 + $0x1d0] sm:$0xff] %v476
  %542 = vst.msk [vmem:[%s482 + $0x1d8] sm:$0xff] %vm225, %v477
  %543 = vst [vmem:[%s482 + $0x1e0] sm:$0xff] %v478
  %544 = vst.msk [vmem:[%s482 + $0x1e8] sm:$0xff] %vm225, %v479
  %545 = vst [vmem:[%s482 + $0x1f0] sm:$0xff] %v480
  %546 = vst.msk [vmem:[%s482 + $0x1f8] sm:$0xff] %vm225, %v481
  %s547 = scalar_lea.vmem %s0, 1024
  %v548 = vld [vmem:[%s547] sm:$0xff]
  %v549 = vld [vmem:[%s547 + $0x8] sm:$0xff]
  %v550 = vld [vmem:[%s547 + $0x10] sm:$0xff]
  %v551 = vld [vmem:[%s547 + $0x18] sm:$0xff]
  %v552 = vld [vmem:[%s547 + $0x20] sm:$0xff]
  %v553 = vld [vmem:[%s547 + $0x28] sm:$0xff]
  %v554 = vld [vmem:[%s547 + $0x30] sm:$0xff]
  %v555 = vld [vmem:[%s547 + $0x38] sm:$0xff]
  %v556 = vld [vmem:[%s547 + $0x40] sm:$0xff]
  %v557 = vld [vmem:[%s547 + $0x48] sm:$0xff]
  %v558 = vld [vmem:[%s547 + $0x50] sm:$0xff]
  %v559 = vld [vmem:[%s547 + $0x58] sm:$0xff]
  %v560 = vld [vmem:[%s547 + $0x60] sm:$0xff]
  %v561 = vld [vmem:[%s547 + $0x68] sm:$0xff]
  %v562 = vld [vmem:[%s547 + $0x70] sm:$0xff]
  %v563 = vld [vmem:[%s547 + $0x78] sm:$0xff]
  %v564 = vld [vmem:[%s547 + $0x80] sm:$0xff]
  %v565 = vld [vmem:[%s547 + $0x88] sm:$0xff]
  %v566 = vld [vmem:[%s547 + $0x90] sm:$0xff]
  %v567 = vld [vmem:[%s547 + $0x98] sm:$0xff]
  %v568 = vld [vmem:[%s547 + $0xa0] sm:$0xff]
  %v569 = vld [vmem:[%s547 + $0xa8] sm:$0xff]
  %v570 = vld [vmem:[%s547 + $0xb0] sm:$0xff]
  %v571 = vld [vmem:[%s547 + $0xb8] sm:$0xff]
  %v572 = vld [vmem:[%s547 + $0xc0] sm:$0xff]
  %v573 = vld [vmem:[%s547 + $0xc8] sm:$0xff]
  %v574 = vld [vmem:[%s547 + $0xd0] sm:$0xff]
  %v575 = vld [vmem:[%s547 + $0xd8] sm:$0xff]
  %v576 = vld [vmem:[%s547 + $0xe0] sm:$0xff]
  %v577 = vld [vmem:[%s547 + $0xe8] sm:$0xff]
  %v578 = vld [vmem:[%s547 + $0xf0] sm:$0xff]
  %v579 = vld [vmem:[%s547 + $0xf8] sm:$0xff]
  %v580 = vld [vmem:[%s547 + $0x100] sm:$0xff]
  %v581 = vld [vmem:[%s547 + $0x108] sm:$0xff]
  %v582 = vld [vmem:[%s547 + $0x110] sm:$0xff]
  %v583 = vld [vmem:[%s547 + $0x118] sm:$0xff]
  %v584 = vld [vmem:[%s547 + $0x120] sm:$0xff]
  %v585 = vld [vmem:[%s547 + $0x128] sm:$0xff]
  %v586 = vld [vmem:[%s547 + $0x130] sm:$0xff]
  %v587 = vld [vmem:[%s547 + $0x138] sm:$0xff]
  %v588 = vld [vmem:[%s547 + $0x140] sm:$0xff]
  %v589 = vld [vmem:[%s547 + $0x148] sm:$0xff]
  %v590 = vld [vmem:[%s547 + $0x150] sm:$0xff]
  %v591 = vld [vmem:[%s547 + $0x158] sm:$0xff]
  %v592 = vld [vmem:[%s547 + $0x160] sm:$0xff]
  %v593 = vld [vmem:[%s547 + $0x168] sm:$0xff]
  %v594 = vld [vmem:[%s547 + $0x170] sm:$0xff]
  %v595 = vld [vmem:[%s547 + $0x178] sm:$0xff]
  %v596 = vld [vmem:[%s547 + $0x180] sm:$0xff]
  %v597 = vld [vmem:[%s547 + $0x188] sm:$0xff]
  %v598 = vld [vmem:[%s547 + $0x190] sm:$0xff]
  %v599 = vld [vmem:[%s547 + $0x198] sm:$0xff]
  %v600 = vld [vmem:[%s547 + $0x1a0] sm:$0xff]
  %v601 = vld [vmem:[%s547 + $0x1a8] sm:$0xff]
  %v602 = vld [vmem:[%s547 + $0x1b0] sm:$0xff]
  %v603 = vld [vmem:[%s547 + $0x1b8] sm:$0xff]
  %v604 = vld [vmem:[%s547 + $0x1c0] sm:$0xff]
  %v605 = vld [vmem:[%s547 + $0x1c8] sm:$0xff]
  %v606 = vld [vmem:[%s547 + $0x1d0] sm:$0xff]
  %v607 = vld [vmem:[%s547 + $0x1d8] sm:$0xff]
  %v608 = vld [vmem:[%s547 + $0x1e0] sm:$0xff]
  %v609 = vld [vmem:[%s547 + $0x1e8] sm:$0xff]
  %v610 = vld [vmem:[%s547 + $0x1f0] sm:$0xff]
  %v611 = vld [vmem:[%s547 + $0x1f8] sm:$0xff]
  %v612 = vmax.f32 %v548, 0.0
  %v613 = vmax.f32 %v549, 0.0
  %v614 = vmax.f32 %v550, 0.0
  %v615 = vmax.f32 %v551, 0.0
  %v616 = vmax.f32 %v552, 0.0
  %v617 = vmax.f32 %v553, 0.0
  %v618 = vmax.f32 %v554, 0.0
  %v619 = vmax.f32 %v555, 0.0
  %v620 = vmax.f32 %v556, 0.0
  %v621 = vmax.f32 %v557, 0.0
  %v622 = vmax.f32 %v558, 0.0
  %v623 = vmax.f32 %v559, 0.0
  %v624 = vmax.f32 %v560, 0.0
  %v625 = vmax.f32 %v561, 0.0
  %v626 = vmax.f32 %v562, 0.0
  %v627 = vmax.f32 %v563, 0.0
  %v628 = vmax.f32 %v564, 0.0
  %v629 = vmax.f32 %v565, 0.0
  %v630 = vmax.f32 %v566, 0.0
  %v631 = vmax.f32 %v567, 0.0
  %v632 = vmax.f32 %v568, 0.0
  %v633 = vmax.f32 %v569, 0.0
  %v634 = vmax.f32 %v570, 0.0
  %v635 = vmax.f32 %v571, 0.0
  %v636 = vmax.f32 %v572, 0.0
  %v637 = vmax.f32 %v573, 0.0
  %v638 = vmax.f32 %v574, 0.0
  %v639 = vmax.f32 %v575, 0.0
  %v640 = vmax.f32 %v576, 0.0
  %v641 = vmax.f32 %v577, 0.0
  %v642 = vmax.f32 %v578, 0.0
  %v643 = vmax.f32 %v579, 0.0
  %v644 = vmax.f32 %v580, 0.0
  %v645 = vmax.f32 %v581, 0.0
  %v646 = vmax.f32 %v582, 0.0
  %v647 = vmax.f32 %v583, 0.0
  %v648 = vmax.f32 %v584, 0.0
  %v649 = vmax.f32 %v585, 0.0
  %v650 = vmax.f32 %v586, 0.0
  %v651 = vmax.f32 %v587, 0.0
  %v652 = vmax.f32 %v588, 0.0
  %v653 = vmax.f32 %v589, 0.0
  %v654 = vmax.f32 %v590, 0.0
  %v655 = vmax.f32 %v591, 0.0
  %v656 = vmax.f32 %v592, 0.0
  %v657 = vmax.f32 %v593, 0.0
  %v658 = vmax.f32 %v594, 0.0
  %v659 = vmax.f32 %v595, 0.0
  %v660 = vmax.f32 %v596, 0.0
  %v661 = vmax.f32 %v597, 0.0
  %v662 = vmax.f32 %v598, 0.0
  %v663 = vmax.f32 %v599, 0.0
  %v664 = vmax.f32 %v600, 0.0
  %v665 = vmax.f32 %v601, 0.0
  %v666 = vmax.f32 %v602, 0.0
  %v667 = vmax.f32 %v603, 0.0
  %v668 = vmax.f32 %v604, 0.0
  %v669 = vmax.f32 %v605, 0.0
  %v670 = vmax.f32 %v606, 0.0
  %v671 = vmax.f32 %v607, 0.0
  %v672 = vmax.f32 %v608, 0.0
  %v673 = vmax.f32 %v609, 0.0
  %v674 = vmax.f32 %v610, 0.0
  %v675 = vmax.f32 %v611, 0.0
  %v676 = vmin.f32 %v612, 6.0
  %v677 = vmin.f32 %v613, 6.0
  %v678 = vmin.f32 %v614, 6.0
  %v679 = vmin.f32 %v615, 6.0
  %v680 = vmin.f32 %v616, 6.0
  %v681 = vmin.f32 %v617, 6.0
  %v682 = vmin.f32 %v618, 6.0
  %v683 = vmin.f32 %v619, 6.0
  %v684 = vmin.f32 %v620, 6.0
  %v685 = vmin.f32 %v621, 6.0
  %v686 = vmin.f32 %v622, 6.0
  %v687 = vmin.f32 %v623, 6.0
  %v688 = vmin.f32 %v624, 6.0
  %v689 = vmin.f32 %v625, 6.0
  %v690 = vmin.f32 %v626, 6.0
  %v691 = vmin.f32 %v627, 6.0
  %v692 = vmin.f32 %v628, 6.0
  %v693 = vmin.f32 %v629, 6.0
  %v694 = vmin.f32 %v630, 6.0
  %v695 = vmin.f32 %v631, 6.0
  %v696 = vmin.f32 %v632, 6.0
  %v697 = vmin.f32 %v633, 6.0
  %v698 = vmin.f32 %v634, 6.0
  %v699 = vmin.f32 %v635, 6.0
  %v700 = vmin.f32 %v636, 6.0
  %v701 = vmin.f32 %v637, 6.0
  %v702 = vmin.f32 %v638, 6.0
  %v703 = vmin.f32 %v639, 6.0
  %v704 = vmin.f32 %v640, 6.0
  %v705 = vmin.f32 %v641, 6.0
  %v706 = vmin.f32 %v642, 6.0
  %v707 = vmin.f32 %v643, 6.0
  %v708 = vmin.f32 %v644, 6.0
  %v709 = vmin.f32 %v645, 6.0
  %v710 = vmin.f32 %v646, 6.0
  %v711 = vmin.f32 %v647, 6.0
  %v712 = vmin.f32 %v648, 6.0
  %v713 = vmin.f32 %v649, 6.0
  %v714 = vmin.f32 %v650, 6.0
  %v715 = vmin.f32 %v651, 6.0
  %v716 = vmin.f32 %v652, 6.0
  %v717 = vmin.f32 %v653, 6.0
  %v718 = vmin.f32 %v654, 6.0
  %v719 = vmin.f32 %v655, 6.0
  %v720 = vmin.f32 %v656, 6.0
  %v721 = vmin.f32 %v657, 6.0
  %v722 = vmin.f32 %v658, 6.0
  %v723 = vmin.f32 %v659, 6.0
  %v724 = vmin.f32 %v660, 6.0
  %v725 = vmin.f32 %v661, 6.0
  %v726 = vmin.f32 %v662, 6.0
  %v727 = vmin.f32 %v663, 6.0
  %v728 = vmin.f32 %v664, 6.0
  %v729 = vmin.f32 %v665, 6.0
  %v730 = vmin.f32 %v666, 6.0
  %v731 = vmin.f32 %v667, 6.0
  %v732 = vmin.f32 %v668, 6.0
  %v733 = vmin.f32 %v669, 6.0
  %v734 = vmin.f32 %v670, 6.0
  %v735 = vmin.f32 %v671, 6.0
  %v736 = vmin.f32 %v672, 6.0
  %v737 = vmin.f32 %v673, 6.0
  %v738 = vmin.f32 %v674, 6.0
  %v739 = vmin.f32 %v675, 6.0
  %s740 = scalar_lea.vmem [#allocation2], 1024
  %741 = vst [vmem:[%s740] sm:$0xff] %v676
  %742 = vst.msk [vmem:[%s740 + $0x8] sm:$0xff] %vm225, %v677
  %743 = vst [vmem:[%s740 + $0x10] sm:$0xff] %v678
  %744 = vst.msk [vmem:[%s740 + $0x18] sm:$0xff] %vm225, %v679
  %745 = vst [vmem:[%s740 + $0x20] sm:$0xff] %v680
  %746 = vst.msk [vmem:[%s740 + $0x28] sm:$0xff] %vm225, %v681
  %747 = vst [vmem:[%s740 + $0x30] sm:$0xff] %v682
  %748 = vst.msk [vmem:[%s740 + $0x38] sm:$0xff] %vm225, %v683
  %749 = vst [vmem:[%s740 + $0x40] sm:$0xff] %v684
  %750 = vst.msk [vmem:[%s740 + $0x48] sm:$0xff] %vm225, %v685
  %751 = vst [vmem:[%s740 + $0x50] sm:$0xff] %v686
  %752 = vst.msk [vmem:[%s740 + $0x58] sm:$0xff] %vm225, %v687
  %753 = vst [vmem:[%s740 + $0x60] sm:$0xff] %v688
  %754 = vst.msk [vmem:[%s740 + $0x68] sm:$0xff] %vm225, %v689
  %755 = vst [vmem:[%s740 + $0x70] sm:$0xff] %v690
  %756 = vst.msk [vmem:[%s740 + $0x78] sm:$0xff] %vm225, %v691
  %757 = vst [vmem:[%s740 + $0x80] sm:$0xff] %v692
  %758 = vst.msk [vmem:[%s740 + $0x88] sm:$0xff] %vm225, %v693
  %759 = vst [vmem:[%s740 + $0x90] sm:$0xff] %v694
  %760 = vst.msk [vmem:[%s740 + $0x98] sm:$0xff] %vm225, %v695
  %761 = vst [vmem:[%s740 + $0xa0] sm:$0xff] %v696
  %762 = vst.msk [vmem:[%s740 + $0xa8] sm:$0xff] %vm225, %v697
  %763 = vst [vmem:[%s740 + $0xb0] sm:$0xff] %v698
  %764 = vst.msk [vmem:[%s740 + $0xb8] sm:$0xff] %vm225, %v699
  %765 = vst [vmem:[%s740 + $0xc0] sm:$0xff] %v700
  %766 = vst.msk [vmem:[%s740 + $0xc8] sm:$0xff] %vm225, %v701
  %767 = vst [vmem:[%s740 + $0xd0] sm:$0xff] %v702
  %768 = vst.msk [vmem:[%s740 + $0xd8] sm:$0xff] %vm225, %v703
  %769 = vst [vmem:[%s740 + $0xe0] sm:$0xff] %v704
  %770 = vst.msk [vmem:[%s740 + $0xe8] sm:$0xff] %vm225, %v705
  %771 = vst [vmem:[%s740 + $0xf0] sm:$0xff] %v706
  %772 = vst.msk [vmem:[%s740 + $0xf8] sm:$0xff] %vm225, %v707
  %773 = vst [vmem:[%s740 + $0x100] sm:$0xff] %v708
  %774 = vst.msk [vmem:[%s740 + $0x108] sm:$0xff] %vm225, %v709
  %775 = vst [vmem:[%s740 + $0x110] sm:$0xff] %v710
  %776 = vst.msk [vmem:[%s740 + $0x118] sm:$0xff] %vm225, %v711
  %777 = vst [vmem:[%s740 + $0x120] sm:$0xff] %v712
  %778 = vst.msk [vmem:[%s740 + $0x128] sm:$0xff] %vm225, %v713
  %779 = vst [vmem:[%s740 + $0x130] sm:$0xff] %v714
  %780 = vst.msk [vmem:[%s740 + $0x138] sm:$0xff] %vm225, %v715
  %781 = vst [vmem:[%s740 + $0x140] sm:$0xff] %v716
  %782 = vst.msk [vmem:[%s740 + $0x148] sm:$0xff] %vm225, %v717
  %783 = vst [vmem:[%s740 + $0x150] sm:$0xff] %v718
  %784 = vst.msk [vmem:[%s740 + $0x158] sm:$0xff] %vm225, %v719
  %785 = vst [vmem:[%s740 + $0x160] sm:$0xff] %v720
  %786 = vst.msk [vmem:[%s740 + $0x168] sm:$0xff] %vm225, %v721
  %787 = vst [vmem:[%s740 + $0x170] sm:$0xff] %v722
  %788 = vst.msk [vmem:[%s740 + $0x178] sm:$0xff] %vm225, %v723
  %789 = vst [vmem:[%s740 + $0x180] sm:$0xff] %v724
  %790 = vst.msk [vmem:[%s740 + $0x188] sm:$0xff] %vm225, %v725
  %791 = vst [vmem:[%s740 + $0x190] sm:$0xff] %v726
  %792 = vst.msk [vmem:[%s740 + $0x198] sm:$0xff] %vm225, %v727
  %793 = vst [vmem:[%s740 + $0x1a0] sm:$0xff] %v728
  %794 = vst.msk [vmem:[%s740 + $0x1a8] sm:$0xff] %vm225, %v729
  %795 = vst [vmem:[%s740 + $0x1b0] sm:$0xff] %v730
  %796 = vst.msk [vmem:[%s740 + $0x1b8] sm:$0xff] %vm225, %v731
  %797 = vst [vmem:[%s740 + $0x1c0] sm:$0xff] %v732
  %798 = vst.msk [vmem:[%s740 + $0x1c8] sm:$0xff] %vm225, %v733
  %799 = vst [vmem:[%s740 + $0x1d0] sm:$0xff] %v734
  %800 = vst.msk [vmem:[%s740 + $0x1d8] sm:$0xff] %vm225, %v735
  %801 = vst [vmem:[%s740 + $0x1e0] sm:$0xff] %v736
  %802 = vst.msk [vmem:[%s740 + $0x1e8] sm:$0xff] %vm225, %v737
  %803 = vst [vmem:[%s740 + $0x1f0] sm:$0xff] %v738
  %804 = vst.msk [vmem:[%s740 + $0x1f8] sm:$0xff] %vm225, %v739
  %s805 = scalar_lea.vmem %s0, 1536
  %v806 = vld [vmem:[%s805] sm:$0xff]
  %v807 = vld [vmem:[%s805 + $0x8] sm:$0xff]
  %v808 = vld [vmem:[%s805 + $0x10] sm:$0xff]
  %v809 = vld [vmem:[%s805 + $0x18] sm:$0xff]
  %v810 = vld [vmem:[%s805 + $0x20] sm:$0xff]
  %v811 = vld [vmem:[%s805 + $0x28] sm:$0xff]
  %v812 = vld [vmem:[%s805 + $0x30] sm:$0xff]
  %v813 = vld [vmem:[%s805 + $0x38] sm:$0xff]
  %v814 = vld [vmem:[%s805 + $0x40] sm:$0xff]
  %v815 = vld [vmem:[%s805 + $0x48] sm:$0xff]
  %v816 = vld [vmem:[%s805 + $0x50] sm:$0xff]
  %v817 = vld [vmem:[%s805 + $0x58] sm:$0xff]
  %v818 = vld [vmem:[%s805 + $0x60] sm:$0xff]
  %v819 = vld [vmem:[%s805 + $0x68] sm:$0xff]
  %v820 = vld [vmem:[%s805 + $0x70] sm:$0xff]
  %v821 = vld [vmem:[%s805 + $0x78] sm:$0xff]
  %v822 = vld [vmem:[%s805 + $0x80] sm:$0xff]
  %v823 = vld [vmem:[%s805 + $0x88] sm:$0xff]
  %v824 = vld [vmem:[%s805 + $0x90] sm:$0xff]
  %v825 = vld [vmem:[%s805 + $0x98] sm:$0xff]
  %v826 = vld [vmem:[%s805 + $0xa0] sm:$0xff]
  %v827 = vld [vmem:[%s805 + $0xa8] sm:$0xff]
  %v828 = vld [vmem:[%s805 + $0xb0] sm:$0xff]
  %v829 = vld [vmem:[%s805 + $0xb8] sm:$0xff]
  %v830 = vld [vmem:[%s805 + $0xc0] sm:$0xff]
  %v831 = vld [vmem:[%s805 + $0xc8] sm:$0xff]
  %v832 = vld [vmem:[%s805 + $0xd0] sm:$0xff]
  %v833 = vld [vmem:[%s805 + $0xd8] sm:$0xff]
  %v834 = vld [vmem:[%s805 + $0xe0] sm:$0xff]
  %v835 = vld [vmem:[%s805 + $0xe8] sm:$0xff]
  %v836 = vld [vmem:[%s805 + $0xf0] sm:$0xff]
  %v837 = vld [vmem:[%s805 + $0xf8] sm:$0xff]
  %v838 = vld [vmem:[%s805 + $0x100] sm:$0xff]
  %v839 = vld [vmem:[%s805 + $0x108] sm:$0xff]
  %v840 = vld [vmem:[%s805 + $0x110] sm:$0xff]
  %v841 = vld [vmem:[%s805 + $0x118] sm:$0xff]
  %v842 = vld [vmem:[%s805 + $0x120] sm:$0xff]
  %v843 = vld [vmem:[%s805 + $0x128] sm:$0xff]
  %v844 = vld [vmem:[%s805 + $0x130] sm:$0xff]
  %v845 = vld [vmem:[%s805 + $0x138] sm:$0xff]
  %v846 = vld [vmem:[%s805 + $0x140] sm:$0xff]
  %v847 = vld [vmem:[%s805 + $0x148] sm:$0xff]
  %v848 = vld [vmem:[%s805 + $0x150] sm:$0xff]
  %v849 = vld [vmem:[%s805 + $0x158] sm:$0xff]
  %v850 = vld [vmem:[%s805 + $0x160] sm:$0xff]
  %v851 = vld [vmem:[%s805 + $0x168] sm:$0xff]
  %v852 = vld [vmem:[%s805 + $0x170] sm:$0xff]
  %v853 = vld [vmem:[%s805 + $0x178] sm:$0xff]
  %v854 = vld [vmem:[%s805 + $0x180] sm:$0xff]
  %v855 = vld [vmem:[%s805 + $0x188] sm:$0xff]
  %v856 = vld [vmem:[%s805 + $0x190] sm:$0xff]
  %v857 = vld [vmem:[%s805 + $0x198] sm:$0xff]
  %v858 = vld [vmem:[%s805 + $0x1a0] sm:$0xff]
  %v859 = vld [vmem:[%s805 + $0x1a8] sm:$0xff]
  %v860 = vld [vmem:[%s805 + $0x1b0] sm:$0xff]
  %v861 = vld [vmem:[%s805 + $0x1b8] sm:$0xff]
  %v862 = vld [vmem:[%s805 + $0x1c0] sm:$0xff]
  %v863 = vld [vmem:[%s805 + $0x1c8] sm:$0xff]
  %v864 = vld [vmem:[%s805 + $0x1d0] sm:$0xff]
  %v865 = vld [vmem:[%s805 + $0x1d8] sm:$0xff]
  %v866 = vld [vmem:[%s805 + $0x1e0] sm:$0xff]
  %v867 = vld [vmem:[%s805 + $0x1e8] sm:$0xff]
  %v868 = vld [vmem:[%s805 + $0x1f0] sm:$0xff]
  %v869 = vld [vmem:[%s805 + $0x1f8] sm:$0xff]
  %v870 = vmax.f32 %v806, 0.0
  %v871 = vmax.f32 %v807, 0.0
  %v872 = vmax.f32 %v808, 0.0
  %v873 = vmax.f32 %v809, 0.0
  %v874 = vmax.f32 %v810, 0.0
  %v875 = vmax.f32 %v811, 0.0
  %v876 = vmax.f32 %v812, 0.0
  %v877 = vmax.f32 %v813, 0.0
  %v878 = vmax.f32 %v814, 0.0
  %v879 = vmax.f32 %v815, 0.0
  %v880 = vmax.f32 %v816, 0.0
  %v881 = vmax.f32 %v817, 0.0
  %v882 = vmax.f32 %v818, 0.0
  %v883 = vmax.f32 %v819, 0.0
  %v884 = vmax.f32 %v820, 0.0
  %v885 = vmax.f32 %v821, 0.0
  %v886 = vmax.f32 %v822, 0.0
  %v887 = vmax.f32 %v823, 0.0
  %v888 = vmax.f32 %v824, 0.0
  %v889 = vmax.f32 %v825, 0.0
  %v890 = vmax.f32 %v826, 0.0
  %v891 = vmax.f32 %v827, 0.0
  %v892 = vmax.f32 %v828, 0.0
  %v893 = vmax.f32 %v829, 0.0
  %v894 = vmax.f32 %v830, 0.0
  %v895 = vmax.f32 %v831, 0.0
  %v896 = vmax.f32 %v832, 0.0
  %v897 = vmax.f32 %v833, 0.0
  %v898 = vmax.f32 %v834, 0.0
  %v899 = vmax.f32 %v835, 0.0
  %v900 = vmax.f32 %v836, 0.0
  %v901 = vmax.f32 %v837, 0.0
  %v902 = vmax.f32 %v838, 0.0
  %v903 = vmax.f32 %v839, 0.0
  %v904 = vmax.f32 %v840, 0.0
  %v905 = vmax.f32 %v841, 0.0
  %v906 = vmax.f32 %v842, 0.0
  %v907 = vmax.f32 %v843, 0.0
  %v908 = vmax.f32 %v844, 0.0
  %v909 = vmax.f32 %v845, 0.0
  %v910 = vmax.f32 %v846, 0.0
  %v911 = vmax.f32 %v847, 0.0
  %v912 = vmax.f32 %v848, 0.0
  %v913 = vmax.f32 %v849, 0.0
  %v914 = vmax.f32 %v850, 0.0
  %v915 = vmax.f32 %v851, 0.0
  %v916 = vmax.f32 %v852, 0.0
  %v917 = vmax.f32 %v853, 0.0
  %v918 = vmax.f32 %v854, 0.0
  %v919 = vmax.f32 %v855, 0.0
  %v920 = vmax.f32 %v856, 0.0
  %v921 = vmax.f32 %v857, 0.0
  %v922 = vmax.f32 %v858, 0.0
  %v923 = vmax.f32 %v859, 0.0
  %v924 = vmax.f32 %v860, 0.0
  %v925 = vmax.f32 %v861, 0.0
  %v926 = vmax.f32 %v862, 0.0
  %v927 = vmax.f32 %v863, 0.0
  %v928 = vmax.f32 %v864, 0.0
  %v929 = vmax.f32 %v865, 0.0
  %v930 = vmax.f32 %v866, 0.0
  %v931 = vmax.f32 %v867, 0.0
  %v932 = vmax.f32 %v868, 0.0
  %v933 = vmax.f32 %v869, 0.0
  %v934 = vmin.f32 %v870, 6.0
  %v935 = vmin.f32 %v871, 6.0
  %v936 = vmin.f32 %v872, 6.0
  %v937 = vmin.f32 %v873, 6.0
  %v938 = vmin.f32 %v874, 6.0
  %v939 = vmin.f32 %v875, 6.0
  %v940 = vmin.f32 %v876, 6.0
  %v941 = vmin.f32 %v877, 6.0
  %v942 = vmin.f32 %v878, 6.0
  %v943 = vmin.f32 %v879, 6.0
  %v944 = vmin.f32 %v880, 6.0
  %v945 = vmin.f32 %v881, 6.0
  %v946 = vmin.f32 %v882, 6.0
  %v947 = vmin.f32 %v883, 6.0
  %v948 = vmin.f32 %v884, 6.0
  %v949 = vmin.f32 %v885, 6.0
  %v950 = vmin.f32 %v886, 6.0
  %v951 = vmin.f32 %v887, 6.0
  %v952 = vmin.f32 %v888, 6.0
  %v953 = vmin.f32 %v889, 6.0
  %v954 = vmin.f32 %v890, 6.0
  %v955 = vmin.f32 %v891, 6.0
  %v956 = vmin.f32 %v892, 6.0
  %v957 = vmin.f32 %v893, 6.0
  %v958 = vmin.f32 %v894, 6.0
  %v959 = vmin.f32 %v895, 6.0
  %v960 = vmin.f32 %v896, 6.0
  %v961 = vmin.f32 %v897, 6.0
  %v962 = vmin.f32 %v898, 6.0
  %v963 = vmin.f32 %v899, 6.0
  %v964 = vmin.f32 %v900, 6.0
  %v965 = vmin.f32 %v901, 6.0
  %v966 = vmin.f32 %v902, 6.0
  %v967 = vmin.f32 %v903, 6.0
  %v968 = vmin.f32 %v904, 6.0
  %v969 = vmin.f32 %v905, 6.0
  %v970 = vmin.f32 %v906, 6.0
  %v971 = vmin.f32 %v907, 6.0
  %v972 = vmin.f32 %v908, 6.0
  %v973 = vmin.f32 %v909, 6.0
  %v974 = vmin.f32 %v910, 6.0
  %v975 = vmin.f32 %v911, 6.0
  %v976 = vmin.f32 %v912, 6.0
  %v977 = vmin.f32 %v913, 6.0
  %v978 = vmin.f32 %v914, 6.0
  %v979 = vmin.f32 %v915, 6.0
  %v980 = vmin.f32 %v916, 6.0
  %v981 = vmin.f32 %v917, 6.0
  %v982 = vmin.f32 %v918, 6.0
  %v983 = vmin.f32 %v919, 6.0
  %v984 = vmin.f32 %v920, 6.0
  %v985 = vmin.f32 %v921, 6.0
  %v986 = vmin.f32 %v922, 6.0
  %v987 = vmin.f32 %v923, 6.0
  %v988 = vmin.f32 %v924, 6.0
  %v989 = vmin.f32 %v925, 6.0
  %v990 = vmin.f32 %v926, 6.0
  %v991 = vmin.f32 %v927, 6.0
  %v992 = vmin.f32 %v928, 6.0
  %v993 = vmin.f32 %v929, 6.0
  %v994 = vmin.f32 %v930, 6.0
  %v995 = vmin.f32 %v931, 6.0
  %v996 = vmin.f32 %v932, 6.0
  %v997 = vmin.f32 %v933, 6.0
  %s998 = scalar_lea.vmem [#allocation2], 1536
  %999 = vst [vmem:[%s998] sm:$0xff] %v934
  %1000 = vst.msk [vmem:[%s998 + $0x8] sm:$0xff] %vm225, %v935
  %1001 = vst [vmem:[%s998 + $0x10] sm:$0xff] %v936
  %1002 = vst.msk [vmem:[%s998 + $0x18] sm:$0xff] %vm225, %v937
  %1003 = vst [vmem:[%s998 + $0x20] sm:$0xff] %v938
  %1004 = vst.msk [vmem:[%s998 + $0x28] sm:$0xff] %vm225, %v939
  %1005 = vst [vmem:[%s998 + $0x30] sm:$0xff] %v940
  %1006 = vst.msk [vmem:[%s998 + $0x38] sm:$0xff] %vm225, %v941
  %1007 = vst [vmem:[%s998 + $0x40] sm:$0xff] %v942
  %1008 = vst.msk [vmem:[%s998 + $0x48] sm:$0xff] %vm225, %v943
  %1009 = vst [vmem:[%s998 + $0x50] sm:$0xff] %v944
  %1010 = vst.msk [vmem:[%s998 + $0x58] sm:$0xff] %vm225, %v945
  %1011 = vst [vmem:[%s998 + $0x60] sm:$0xff] %v946
  %1012 = vst.msk [vmem:[%s998 + $0x68] sm:$0xff] %vm225, %v947
  %1013 = vst [vmem:[%s998 + $0x70] sm:$0xff] %v948
  %1014 = vst.msk [vmem:[%s998 + $0x78] sm:$0xff] %vm225, %v949
  %1015 = vst [vmem:[%s998 + $0x80] sm:$0xff] %v950
  %1016 = vst.msk [vmem:[%s998 + $0x88] sm:$0xff] %vm225, %v951
  %1017 = vst [vmem:[%s998 + $0x90] sm:$0xff] %v952
  %1018 = vst.msk [vmem:[%s998 + $0x98] sm:$0xff] %vm225, %v953
  %1019 = vst [vmem:[%s998 + $0xa0] sm:$0xff] %v954
  %1020 = vst.msk [vmem:[%s998 + $0xa8] sm:$0xff] %vm225, %v955
  %1021 = vst [vmem:[%s998 + $0xb0] sm:$0xff] %v956
  %1022 = vst.msk [vmem:[%s998 + $0xb8] sm:$0xff] %vm225, %v957
  %1023 = vst [vmem:[%s998 + $0xc0] sm:$0xff] %v958
  %1024 = vst.msk [vmem:[%s998 + $0xc8] sm:$0xff] %vm225, %v959
  %1025 = vst [vmem:[%s998 + $0xd0] sm:$0xff] %v960
  %1026 = vst.msk [vmem:[%s998 + $0xd8] sm:$0xff] %vm225, %v961
  %1027 = vst [vmem:[%s998 + $0xe0] sm:$0xff] %v962
  %1028 = vst.msk [vmem:[%s998 + $0xe8] sm:$0xff] %vm225, %v963
  %1029 = vst [vmem:[%s998 + $0xf0] sm:$0xff] %v964
  %1030 = vst.msk [vmem:[%s998 + $0xf8] sm:$0xff] %vm225, %v965
  %1031 = vst [vmem:[%s998 + $0x100] sm:$0xff] %v966
  %1032 = vst.msk [vmem:[%s998 + $0x108] sm:$0xff] %vm225, %v967
  %1033 = vst [vmem:[%s998 + $0x110] sm:$0xff] %v968
  %1034 = vst.msk [vmem:[%s998 + $0x118] sm:$0xff] %vm225, %v969
  %1035 = vst [vmem:[%s998 + $0x120] sm:$0xff] %v970
  %1036 = vst.msk [vmem:[%s998 + $0x128] sm:$0xff] %vm225, %v971
  %1037 = vst [vmem:[%s998 + $0x130] sm:$0xff] %v972
  %1038 = vst.msk [vmem:[%s998 + $0x138] sm:$0xff] %vm225, %v973
  %1039 = vst [vmem:[%s998 + $0x140] sm:$0xff] %v974
  %1040 = vst.msk [vmem:[%s998 + $0x148] sm:$0xff] %vm225, %v975
  %1041 = vst [vmem:[%s998 + $0x150] sm:$0xff] %v976
  %1042 = vst.msk [vmem:[%s998 + $0x158] sm:$0xff] %vm225, %v977
  %1043 = vst [vmem:[%s998 + $0x160] sm:$0xff] %v978
  %1044 = vst.msk [vmem:[%s998 + $0x168] sm:$0xff] %vm225, %v979
  %1045 = vst [vmem:[%s998 + $0x170] sm:$0xff] %v980
  %1046 = vst.msk [vmem:[%s998 + $0x178] sm:$0xff] %vm225, %v981
  %1047 = vst [vmem:[%s998 + $0x180] sm:$0xff] %v982
  %1048 = vst.msk [vmem:[%s998 + $0x188] sm:$0xff] %vm225, %v983
  %1049 = vst [vmem:[%s998 + $0x190] sm:$0xff] %v984
  %1050 = vst.msk [vmem:[%s998 + $0x198] sm:$0xff] %vm225, %v985
  %1051 = vst [vmem:[%s998 + $0x1a0] sm:$0xff] %v986
  %1052 = vst.msk [vmem:[%s998 + $0x1a8] sm:$0xff] %vm225, %v987
  %1053 = vst [vmem:[%s998 + $0x1b0] sm:$0xff] %v988
  %1054 = vst.msk [vmem:[%s998 + $0x1b8] sm:$0xff] %vm225, %v989
  %1055 = vst [vmem:[%s998 + $0x1c0] sm:$0xff] %v990
  %1056 = vst.msk [vmem:[%s998 + $0x1c8] sm:$0xff] %vm225, %v991
  %1057 = vst [vmem:[%s998 + $0x1d0] sm:$0xff] %v992
  %1058 = vst.msk [vmem:[%s998 + $0x1d8] sm:$0xff] %vm225, %v993
  %1059 = vst [vmem:[%s998 + $0x1e0] sm:$0xff] %v994
  %1060 = vst.msk [vmem:[%s998 + $0x1e8] sm:$0xff] %vm225, %v995
  %1061 = vst [vmem:[%s998 + $0x1f0] sm:$0xff] %v996
  %1062 = vst.msk [vmem:[%s998 + $0x1f8] sm:$0xff] %vm225, %v997
  %v1063 = vld [vmem:[%s1] sm:$0xff]
  %v1064 = vld [vmem:[%s1 + $0x8] sm:$0xff]
  %v1065 = vld [vmem:[%s1 + $0x10] sm:$0xff]
  %v1066 = vld [vmem:[%s1 + $0x18] sm:$0xff]
  %v1067 = vld [vmem:[%s1 + $0x20] sm:$0xff]
  %v1068 = vld [vmem:[%s1 + $0x28] sm:$0xff]
  %v1069 = vld [vmem:[%s1 + $0x30] sm:$0xff]
  %v1070 = vld [vmem:[%s1 + $0x38] sm:$0xff]
  %v1071 = vld [vmem:[%s1 + $0x40] sm:$0xff]
  %v1072 = vld [vmem:[%s1 + $0x48] sm:$0xff]
  %v1073 = vld [vmem:[%s1 + $0x50] sm:$0xff]
  %v1074 = vld [vmem:[%s1 + $0x58] sm:$0xff]
  %v1075 = vld [vmem:[%s1 + $0x60] sm:$0xff]
  %v1076 = vld [vmem:[%s1 + $0x68] sm:$0xff]
  %v1077 = vld [vmem:[%s1 + $0x70] sm:$0xff]
  %v1078 = vld [vmem:[%s1 + $0x78] sm:$0xff]
  %v1079 = vld [vmem:[%s1 + $0x80] sm:$0xff]
  %v1080 = vld [vmem:[%s1 + $0x88] sm:$0xff]
  %v1081 = vld [vmem:[%s1 + $0x90] sm:$0xff]
  %v1082 = vld [vmem:[%s1 + $0x98] sm:$0xff]
  %v1083 = vld [vmem:[%s1 + $0xa0] sm:$0xff]
  %v1084 = vld [vmem:[%s1 + $0xa8] sm:$0xff]
  %v1085 = vld [vmem:[%s1 + $0xb0] sm:$0xff]
  %v1086 = vld [vmem:[%s1 + $0xb8] sm:$0xff]
  %v1087 = vld [vmem:[%s1 + $0xc0] sm:$0xff]
  %v1088 = vld [vmem:[%s1 + $0xc8] sm:$0xff]
  %v1089 = vld [vmem:[%s1 + $0xd0] sm:$0xff]
  %v1090 = vld [vmem:[%s1 + $0xd8] sm:$0xff]
  %v1091 = vld [vmem:[#allocation2] sm:$0xff]
  %v1092 = vld [vmem:[#allocation2 + $0x8] sm:$0xff]
  %v1093 = vld [vmem:[#allocation2 + $0x10] sm:$0xff]
  %v1094 = vld [vmem:[#allocation2 + $0x18] sm:$0xff]
  %v1095 = vld [vmem:[#allocation2 + $0x20] sm:$0xff]
  %v1096 = vld [vmem:[#allocation2 + $0x28] sm:$0xff]
  %v1097 = vld [vmem:[#allocation2 + $0x30] sm:$0xff]
  %v1098 = vld [vmem:[#allocation2 + $0x38] sm:$0xff]
  %v1099 = vld [vmem:[#allocation2 + $0x40] sm:$0xff]
  %v1100 = vld [vmem:[#allocation2 + $0x48] sm:$0xff]
  %v1101 = vld [vmem:[#allocation2 + $0x50] sm:$0xff]
  %v1102 = vld [vmem:[#allocation2 + $0x58] sm:$0xff]
  %v1103 = vld [vmem:[#allocation2 + $0x60] sm:$0xff]
  %v1104 = vld [vmem:[#allocation2 + $0x68] sm:$0xff]
  %v1105 = vld [vmem:[#allocation2 + $0x70] sm:$0xff]
  %v1106 = vld [vmem:[#allocation2 + $0x78] sm:$0xff]
  %v1107 = vld [vmem:[#allocation2 + $0x80] sm:$0xff]
  %v1108 = vld [vmem:[#allocation2 + $0x88] sm:$0xff]
  %v1109 = vld [vmem:[#allocation2 + $0x90] sm:$0xff]
  %v1110 = vld [vmem:[#allocation2 + $0x98] sm:$0xff]
  %v1111 = vld [vmem:[#allocation2 + $0xa0] sm:$0xff]
  %v1112 = vld [vmem:[#allocation2 + $0xa8] sm:$0xff]
  %v1113 = vld [vmem:[#allocation2 + $0xb0] sm:$0xff]
  %v1114 = vld [vmem:[#allocation2 + $0xb8] sm:$0xff]
  %v1115 = vld [vmem:[#allocation2 + $0xc0] sm:$0xff]
  %v1116 = vld [vmem:[#allocation2 + $0xc8] sm:$0xff]
  %v1117 = vld [vmem:[#allocation2 + $0xd0] sm:$0xff]
  %v1118 = vld [vmem:[#allocation2 + $0xd8] sm:$0xff]
  %v1119 = vld [vmem:[#allocation2 + $0xe0] sm:$0xff]
  %v1120 = vld [vmem:[#allocation2 + $0xe8] sm:$0xff]
  %v1121 = vld [vmem:[#allocation2 + $0xf0] sm:$0xff]
  %v1122 = vld [vmem:[#allocation2 + $0xf8] sm:$0xff]
  %v1123 = vld [vmem:[#allocation2 + $0x100] sm:$0xff]
  %v1124 = vld [vmem:[#allocation2 + $0x108] sm:$0xff]
  %v1125 = vld [vmem:[#allocation2 + $0x110] sm:$0xff]
  %v1126 = vld [vmem:[#allocation2 + $0x118] sm:$0xff]
  %v1127 = vld [vmem:[#allocation2 + $0x120] sm:$0xff]
  %v1128 = vld [vmem:[#allocation2 + $0x128] sm:$0xff]
  %v1129 = vld [vmem:[#allocation2 + $0x130] sm:$0xff]
  %v1130 = vld [vmem:[#allocation2 + $0x138] sm:$0xff]
  %v1131 = vld [vmem:[#allocation2 + $0x140] sm:$0xff]
  %v1132 = vld [vmem:[#allocation2 + $0x148] sm:$0xff]
  %v1133 = vld [vmem:[#allocation2 + $0x150] sm:$0xff]
  %v1134 = vld [vmem:[#allocation2 + $0x158] sm:$0xff]
  %v1135 = vld [vmem:[#allocation2 + $0x160] sm:$0xff]
  %v1136 = vld [vmem:[#allocation2 + $0x168] sm:$0xff]
  %v1137 = vld [vmem:[#allocation2 + $0x170] sm:$0xff]
  %v1138 = vld [vmem:[#allocation2 + $0x178] sm:$0xff]
  %v1139 = vld [vmem:[#allocation2 + $0x180] sm:$0xff]
  %v1140 = vld [vmem:[#allocation2 + $0x188] sm:$0xff]
  %v1141 = vld [vmem:[#allocation2 + $0x190] sm:$0xff]
  %v1142 = vld [vmem:[#allocation2 + $0x198] sm:$0xff]
  %v1143 = vld [vmem:[#allocation2 + $0x1a0] sm:$0xff]
  %v1144 = vld [vmem:[#allocation2 + $0x1a8] sm:$0xff]
  %v1145 = vld [vmem:[#allocation2 + $0x1b0] sm:$0xff]
  %v1146 = vld [vmem:[#allocation2 + $0x1b8] sm:$0xff]
  %v1147 = vld [vmem:[%s2] ss:$8 sm:$0x3]
  %v1149 = vperm.slane %v1147, 0
  %v1150 = vperm.slane %v1147, 1
  %v1153 = vmul.f32 %v1091, %v1149
  %v1154 = vmul.f32 %v1092, %v1150
  %v1155 = vmul.f32 %v1093, %v1149
  %v1156 = vmul.f32 %v1094, %v1150
  %v1157 = vmul.f32 %v1095, %v1149
  %v1158 = vmul.f32 %v1096, %v1150
  %v1159 = vmul.f32 %v1097, %v1149
  %v1160 = vmul.f32 %v1098, %v1150
  %v1161 = vmul.f32 %v1099, %v1149
  %v1162 = vmul.f32 %v1100, %v1150
  %v1163 = vmul.f32 %v1101, %v1149
  %v1164 = vmul.f32 %v1102, %v1150
  %v1165 = vmul.f32 %v1103, %v1149
  %v1166 = vmul.f32 %v1104, %v1150
  %v1167 = vmul.f32 %v1105, %v1149
  %v1168 = vmul.f32 %v1106, %v1150
  %v1169 = vmul.f32 %v1107, %v1149
  %v1170 = vmul.f32 %v1108, %v1150
  %v1171 = vmul.f32 %v1109, %v1149
  %v1172 = vmul.f32 %v1110, %v1150
  %v1173 = vmul.f32 %v1111, %v1149
  %v1174 = vmul.f32 %v1112, %v1150
  %v1175 = vmul.f32 %v1113, %v1149
  %v1176 = vmul.f32 %v1114, %v1150
  %v1177 = vmul.f32 %v1115, %v1149
  %v1178 = vmul.f32 %v1116, %v1150
  %v1179 = vmul.f32 %v1117, %v1149
  %v1180 = vmul.f32 %v1118, %v1150
  %v1181 = vmul.f32 %v1119, %v1149
  %v1182 = vmul.f32 %v1120, %v1150
  %v1183 = vmul.f32 %v1121, %v1149
  %v1184 = vmul.f32 %v1122, %v1150
  %v1185 = vmul.f32 %v1123, %v1149
  %v1186 = vmul.f32 %v1124, %v1150
  %v1187 = vmul.f32 %v1125, %v1149
  %v1188 = vmul.f32 %v1126, %v1150
  %v1189 = vmul.f32 %v1127, %v1149
  %v1190 = vmul.f32 %v1128, %v1150
  %v1191 = vmul.f32 %v1129, %v1149
  %v1192 = vmul.f32 %v1130, %v1150
  %v1193 = vmul.f32 %v1131, %v1149
  %v1194 = vmul.f32 %v1132, %v1150
  %v1195 = vmul.f32 %v1133, %v1149
  %v1196 = vmul.f32 %v1134, %v1150
  %v1197 = vmul.f32 %v1135, %v1149
  %v1198 = vmul.f32 %v1136, %v1150
  %v1199 = vmul.f32 %v1137, %v1149
  %v1200 = vmul.f32 %v1138, %v1150
  %v1201 = vmul.f32 %v1139, %v1149
  %v1202 = vmul.f32 %v1140, %v1150
  %v1203 = vmul.f32 %v1141, %v1149
  %v1204 = vmul.f32 %v1142, %v1150
  %v1205 = vmul.f32 %v1143, %v1149
  %v1206 = vmul.f32 %v1144, %v1150
  %v1207 = vmul.f32 %v1145, %v1149
  %v1208 = vmul.f32 %v1146, %v1150
  %v1209 = vld [vmem:[%s482] sm:$0xff]
  %v1210 = vld [vmem:[%s482 + $0x8] sm:$0xff]
  %v1211 = vld [vmem:[%s482 + $0x10] sm:$0xff]
  %v1212 = vld [vmem:[%s482 + $0x18] sm:$0xff]
  %v1213 = vld [vmem:[%s482 + $0x20] sm:$0xff]
  %v1214 = vld [vmem:[%s482 + $0x28] sm:$0xff]
  %v1215 = vld [vmem:[%s482 + $0x30] sm:$0xff]
  %v1216 = vld [vmem:[%s482 + $0x38] sm:$0xff]
  %v1217 = vld [vmem:[%s482 + $0x40] sm:$0xff]
  %v1218 = vld [vmem:[%s482 + $0x48] sm:$0xff]
  %v1219 = vld [vmem:[%s482 + $0x50] sm:$0xff]
  %v1220 = vld [vmem:[%s482 + $0x58] sm:$0xff]
  %v1221 = vld [vmem:[%s482 + $0x60] sm:$0xff]
  %v1222 = vld [vmem:[%s482 + $0x68] sm:$0xff]
  %v1223 = vld [vmem:[%s482 + $0x70] sm:$0xff]
  %v1224 = vld [vmem:[%s482 + $0x78] sm:$0xff]
  %v1225 = vld [vmem:[%s482 + $0x80] sm:$0xff]
  %v1226 = vld [vmem:[%s482 + $0x88] sm:$0xff]
  %v1227 = vld [vmem:[%s482 + $0x90] sm:$0xff]
  %v1228 = vld [vmem:[%s482 + $0x98] sm:$0xff]
  %v1229 = vld [vmem:[%s482 + $0xa0] sm:$0xff]
  %v1230 = vld [vmem:[%s482 + $0xa8] sm:$0xff]
  %v1231 = vld [vmem:[%s482 + $0xb0] sm:$0xff]
  %v1232 = vld [vmem:[%s482 + $0xb8] sm:$0xff]
  %v1233 = vld [vmem:[%s482 + $0xc0] sm:$0xff]
  %v1234 = vld [vmem:[%s482 + $0xc8] sm:$0xff]
  %v1235 = vld [vmem:[%s482 + $0xd0] sm:$0xff]
  %v1236 = vld [vmem:[%s482 + $0xd8] sm:$0xff]
  %v1237 = vld [vmem:[%s482 + $0xe0] sm:$0xff]
  %v1238 = vld [vmem:[%s482 + $0xe8] sm:$0xff]
  %v1239 = vld [vmem:[%s482 + $0xf0] sm:$0xff]
  %v1240 = vld [vmem:[%s482 + $0xf8] sm:$0xff]
  %v1241 = vld [vmem:[%s482 + $0x100] sm:$0xff]
  %v1242 = vld [vmem:[%s482 + $0x108] sm:$0xff]
  %v1243 = vld [vmem:[%s482 + $0x110] sm:$0xff]
  %v1244 = vld [vmem:[%s482 + $0x118] sm:$0xff]
  %v1245 = vld [vmem:[%s482 + $0x120] sm:$0xff]
  %v1246 = vld [vmem:[%s482 + $0x128] sm:$0xff]
  %v1247 = vld [vmem:[%s482 + $0x130] sm:$0xff]
  %v1248 = vld [vmem:[%s482 + $0x138] sm:$0xff]
  %v1249 = vld [vmem:[%s482 + $0x140] sm:$0xff]
  %v1250 = vld [vmem:[%s482 + $0x148] sm:$0xff]
  %v1251 = vld [vmem:[%s482 + $0x150] sm:$0xff]
  %v1252 = vld [vmem:[%s482 + $0x158] sm:$0xff]
  %v1253 = vld [vmem:[%s482 + $0x160] sm:$0xff]
  %v1254 = vld [vmem:[%s482 + $0x168] sm:$0xff]
  %v1255 = vld [vmem:[%s482 + $0x170] sm:$0xff]
  %v1256 = vld [vmem:[%s482 + $0x178] sm:$0xff]
  %v1257 = vld [vmem:[%s482 + $0x180] sm:$0xff]
  %v1258 = vld [vmem:[%s482 + $0x188] sm:$0xff]
  %v1259 = vld [vmem:[%s482 + $0x190] sm:$0xff]
  %v1260 = vld [vmem:[%s482 + $0x198] sm:$0xff]
  %v1261 = vld [vmem:[%s482 + $0x1a0] sm:$0xff]
  %v1262 = vld [vmem:[%s482 + $0x1a8] sm:$0xff]
  %v1263 = vld [vmem:[%s482 + $0x1b0] sm:$0xff]
  %v1264 = vld [vmem:[%s482 + $0x1b8] sm:$0xff]
  %s1265 = scalar_lea.vmem %s2, 1
  %v1266 = vld [vmem:[%s1265] ss:$8 sm:$0x3]
  %v1268 = vperm.slane %v1266, 0
  %v1269 = vperm.slane %v1266, 1
  %v1272 = vmul.f32 %v1209, %v1268
  %v1273 = vmul.f32 %v1210, %v1269
  %v1274 = vmul.f32 %v1211, %v1268
  %v1275 = vmul.f32 %v1212, %v1269
  %v1276 = vmul.f32 %v1213, %v1268
  %v1277 = vmul.f32 %v1214, %v1269
  %v1278 = vmul.f32 %v1215, %v1268
  %v1279 = vmul.f32 %v1216, %v1269
  %v1280 = vmul.f32 %v1217, %v1268
  %v1281 = vmul.f32 %v1218, %v1269
  %v1282 = vmul.f32 %v1219, %v1268
  %v1283 = vmul.f32 %v1220, %v1269
  %v1284 = vmul.f32 %v1221, %v1268
  %v1285 = vmul.f32 %v1222, %v1269
  %v1286 = vmul.f32 %v1223, %v1268
  %v1287 = vmul.f32 %v1224, %v1269
  %v1288 = vmul.f32 %v1225, %v1268
  %v1289 = vmul.f32 %v1226, %v1269
  %v1290 = vmul.f32 %v1227, %v1268
  %v1291 = vmul.f32 %v1228, %v1269
  %v1292 = vmul.f32 %v1229, %v1268
  %v1293 = vmul.f32 %v1230, %v1269
  %v1294 = vmul.f32 %v1231, %v1268
  %v1295 = vmul.f32 %v1232, %v1269
  %v1296 = vmul.f32 %v1233, %v1268
  %v1297 = vmul.f32 %v1234, %v1269
  %v1298 = vmul.f32 %v1235, %v1268
  %v1299 = vmul.f32 %v1236, %v1269
  %v1300 = vmul.f32 %v1237, %v1268
  %v1301 = vmul.f32 %v1238, %v1269
  %v1302 = vmul.f32 %v1239, %v1268
  %v1303 = vmul.f32 %v1240, %v1269
  %v1304 = vmul.f32 %v1241, %v1268
  %v1305 = vmul.f32 %v1242, %v1269
  %v1306 = vmul.f32 %v1243, %v1268
  %v1307 = vmul.f32 %v1244, %v1269
  %v1308 = vmul.f32 %v1245, %v1268
  %v1309 = vmul.f32 %v1246, %v1269
  %v1310 = vmul.f32 %v1247, %v1268
  %v1311 = vmul.f32 %v1248, %v1269
  %v1312 = vmul.f32 %v1249, %v1268
  %v1313 = vmul.f32 %v1250, %v1269
  %v1314 = vmul.f32 %v1251, %v1268
  %v1315 = vmul.f32 %v1252, %v1269
  %v1316 = vmul.f32 %v1253, %v1268
  %v1317 = vmul.f32 %v1254, %v1269
  %v1318 = vmul.f32 %v1255, %v1268
  %v1319 = vmul.f32 %v1256, %v1269
  %v1320 = vmul.f32 %v1257, %v1268
  %v1321 = vmul.f32 %v1258, %v1269
  %v1322 = vmul.f32 %v1259, %v1268
  %v1323 = vmul.f32 %v1260, %v1269
  %v1324 = vmul.f32 %v1261, %v1268
  %v1325 = vmul.f32 %v1262, %v1269
  %v1326 = vmul.f32 %v1263, %v1268
  %v1327 = vmul.f32 %v1264, %v1269
  %v1328 = vadd.f32 %v1153, %v1272
  %v1329 = vadd.f32 %v1154, %v1273
  %v1330 = vadd.f32 %v1155, %v1274
  %v1331 = vadd.f32 %v1156, %v1275
  %v1332 = vadd.f32 %v1157, %v1276
  %v1333 = vadd.f32 %v1158, %v1277
  %v1334 = vadd.f32 %v1159, %v1278
  %v1335 = vadd.f32 %v1160, %v1279
  %v1336 = vadd.f32 %v1161, %v1280
  %v1337 = vadd.f32 %v1162, %v1281
  %v1338 = vadd.f32 %v1163, %v1282
  %v1339 = vadd.f32 %v1164, %v1283
  %v1340 = vadd.f32 %v1165, %v1284
  %v1341 = vadd.f32 %v1166, %v1285
  %v1342 = vadd.f32 %v1167, %v1286
  %v1343 = vadd.f32 %v1168, %v1287
  %v1344 = vadd.f32 %v1169, %v1288
  %v1345 = vadd.f32 %v1170, %v1289
  %v1346 = vadd.f32 %v1171, %v1290
  %v1347 = vadd.f32 %v1172, %v1291
  %v1348 = vadd.f32 %v1173, %v1292
  %v1349 = vadd.f32 %v1174, %v1293
  %v1350 = vadd.f32 %v1175, %v1294
  %v1351 = vadd.f32 %v1176, %v1295
  %v1352 = vadd.f32 %v1177, %v1296
  %v1353 = vadd.f32 %v1178, %v1297
  %v1354 = vadd.f32 %v1179, %v1298
  %v1355 = vadd.f32 %v1180, %v1299
  %v1356 = vadd.f32 %v1181, %v1300
  %v1357 = vadd.f32 %v1182, %v1301
  %v1358 = vadd.f32 %v1183, %v1302
  %v1359 = vadd.f32 %v1184, %v1303
  %v1360 = vadd.f32 %v1185, %v1304
  %v1361 = vadd.f32 %v1186, %v1305
  %v1362 = vadd.f32 %v1187, %v1306
  %v1363 = vadd.f32 %v1188, %v1307
  %v1364 = vadd.f32 %v1189, %v1308
  %v1365 = vadd.f32 %v1190, %v1309
  %v1366 = vadd.f32 %v1191, %v1310
  %v1367 = vadd.f32 %v1192, %v1311
  %v1368 = vadd.f32 %v1193, %v1312
  %v1369 = vadd.f32 %v1194, %v1313
  %v1370 = vadd.f32 %v1195, %v1314
  %v1371 = vadd.f32 %v1196, %v1315
  %v1372 = vadd.f32 %v1197, %v1316
  %v1373 = vadd.f32 %v1198, %v1317
  %v1374 = vadd.f32 %v1199, %v1318
  %v1375 = vadd.f32 %v1200, %v1319
  %v1376 = vadd.f32 %v1201, %v1320
  %v1377 = vadd.f32 %v1202, %v1321
  %v1378 = vadd.f32 %v1203, %v1322
  %v1379 = vadd.f32 %v1204, %v1323
  %v1380 = vadd.f32 %v1205, %v1324
  %v1381 = vadd.f32 %v1206, %v1325
  %v1382 = vadd.f32 %v1207, %v1326
  %v1383 = vadd.f32 %v1208, %v1327
  %v1384 = vld [vmem:[#allocation2] sm:$0xfe]
  %v1385 = vld [vmem:[#allocation2 + $0x8] sm:$0xfe]
  %v1386 = vld [vmem:[#allocation2 + $0x1c0] sm:$0x1]
  %v1387 = vld [vmem:[#allocation2 + $0x1c8] sm:$0x1]
  %s1388 = scalar_lea.vmem %s2, 2
  %v1389 = vld [vmem:[%s1388] ss:$8 sm:$0x3]
  %v1391 = vperm.slane %v1389, 0
  %v1392 = vperm.slane %v1389, 1
  %v1395 = vmul.f32 %v1384, %v1391
  %v1396 = vmul.f32 %v1385, %v1392
  %v1397 = vmul.f32 %v1093, %v1391
  %v1398 = vmul.f32 %v1094, %v1392
  %v1399 = vmul.f32 %v1095, %v1391
  %v1400 = vmul.f32 %v1096, %v1392
  %v1401 = vmul.f32 %v1097, %v1391
  %v1402 = vmul.f32 %v1098, %v1392
  %v1403 = vmul.f32 %v1099, %v1391
  %v1404 = vmul.f32 %v1100, %v1392
  %v1405 = vmul.f32 %v1101, %v1391
  %v1406 = vmul.f32 %v1102, %v1392
  %v1407 = vmul.f32 %v1103, %v1391
  %v1408 = vmul.f32 %v1104, %v1392
  %v1409 = vmul.f32 %v1105, %v1391
  %v1410 = vmul.f32 %v1106, %v1392
  %v1411 = vmul.f32 %v1107, %v1391
  %v1412 = vmul.f32 %v1108, %v1392
  %v1413 = vmul.f32 %v1109, %v1391
  %v1414 = vmul.f32 %v1110, %v1392
  %v1415 = vmul.f32 %v1111, %v1391
  %v1416 = vmul.f32 %v1112, %v1392
  %v1417 = vmul.f32 %v1113, %v1391
  %v1418 = vmul.f32 %v1114, %v1392
  %v1419 = vmul.f32 %v1115, %v1391
  %v1420 = vmul.f32 %v1116, %v1392
  %v1421 = vmul.f32 %v1117, %v1391
  %v1422 = vmul.f32 %v1118, %v1392
  %v1423 = vmul.f32 %v1119, %v1391
  %v1424 = vmul.f32 %v1120, %v1392
  %v1425 = vmul.f32 %v1121, %v1391
  %v1426 = vmul.f32 %v1122, %v1392
  %v1427 = vmul.f32 %v1123, %v1391
  %v1428 = vmul.f32 %v1124, %v1392
  %v1429 = vmul.f32 %v1125, %v1391
  %v1430 = vmul.f32 %v1126, %v1392
  %v1431 = vmul.f32 %v1127, %v1391
  %v1432 = vmul.f32 %v1128, %v1392
  %v1433 = vmul.f32 %v1129, %v1391
  %v1434 = vmul.f32 %v1130, %v1392
  %v1435 = vmul.f32 %v1131, %v1391
  %v1436 = vmul.f32 %v1132, %v1392
  %v1437 = vmul.f32 %v1133, %v1391
  %v1438 = vmul.f32 %v1134, %v1392
  %v1439 = vmul.f32 %v1135, %v1391
  %v1440 = vmul.f32 %v1136, %v1392
  %v1441 = vmul.f32 %v1137, %v1391
  %v1442 = vmul.f32 %v1138, %v1392
  %v1443 = vmul.f32 %v1139, %v1391
  %v1444 = vmul.f32 %v1140, %v1392
  %v1445 = vmul.f32 %v1141, %v1391
  %v1446 = vmul.f32 %v1142, %v1392
  %v1447 = vmul.f32 %v1143, %v1391
  %v1448 = vmul.f32 %v1144, %v1392
  %v1449 = vmul.f32 %v1145, %v1391
  %v1450 = vmul.f32 %v1146, %v1392
  %v1451 = vmul.f32 %v1386, %v1391
  %v1452 = vmul.f32 %v1387, %v1392
  %vm1511 = vcmask 1046528
  %v1512 = vrot.slane %v1395, 1
  %v1513 = vrot.slane %v1397, 1
  %v1514 = vsel %vm1511, %v1512, %v1513
  %v1515 = vrot.slane %v1396, 1
  %v1516 = vrot.slane %v1398, 1
  %v1517 = vsel %vm1511, %v1515, %v1516
  %v1518 = vrot.slane %v1399, 1
  %v1519 = vsel %vm1511, %v1513, %v1518
  %v1520 = vrot.slane %v1400, 1
  %v1521 = vsel %vm1511, %v1516, %v1520
  %v1522 = vrot.slane %v1401, 1
  %v1523 = vsel %vm1511, %v1518, %v1522
  %v1524 = vrot.slane %v1402, 1
  %v1525 = vsel %vm1511, %v1520, %v1524
  %v1526 = vrot.slane %v1403, 1
  %v1527 = vsel %vm1511, %v1522, %v1526
  %v1528 = vrot.slane %v1404, 1
  %v1529 = vsel %vm1511, %v1524, %v1528
  %v1530 = vrot.slane %v1405, 1
  %v1531 = vsel %vm1511, %v1526, %v1530
  %v1532 = vrot.slane %v1406, 1
  %v1533 = vsel %vm1511, %v1528, %v1532
  %v1534 = vrot.slane %v1407, 1
  %v1535 = vsel %vm1511, %v1530, %v1534
  %v1536 = vrot.slane %v1408, 1
  %v1537 = vsel %vm1511, %v1532, %v1536
  %v1538 = vrot.slane %v1409, 1
  %v1539 = vsel %vm1511, %v1534, %v1538
  %v1540 = vrot.slane %v1410, 1
  %v1541 = vsel %vm1511, %v1536, %v1540
  %v1542 = vrot.slane %v1411, 1
  %v1543 = vsel %vm1511, %v1538, %v1542
  %v1544 = vrot.slane %v1412, 1
  %v1545 = vsel %vm1511, %v1540, %v1544
  %v1546 = vrot.slane %v1413, 1
  %v1547 = vsel %vm1511, %v1542, %v1546
  %v1548 = vrot.slane %v1414, 1
  %v1549 = vsel %vm1511, %v1544, %v1548
  %v1550 = vrot.slane %v1415, 1
  %v1551 = vsel %vm1511, %v1546, %v1550
  %v1552 = vrot.slane %v1416, 1
  %v1553 = vsel %vm1511, %v1548, %v1552
  %v1554 = vrot.slane %v1417, 1
  %v1555 = vsel %vm1511, %v1550, %v1554
  %v1556 = vrot.slane %v1418, 1
  %v1557 = vsel %vm1511, %v1552, %v1556
  %v1558 = vrot.slane %v1419, 1
  %v1559 = vsel %vm1511, %v1554, %v1558
  %v1560 = vrot.slane %v1420, 1
  %v1561 = vsel %vm1511, %v1556, %v1560
  %v1562 = vrot.slane %v1421, 1
  %v1563 = vsel %vm1511, %v1558, %v1562
  %v1564 = vrot.slane %v1422, 1
  %v1565 = vsel %vm1511, %v1560, %v1564
  %v1566 = vrot.slane %v1423, 1
  %v1567 = vsel %vm1511, %v1562, %v1566
  %v1568 = vrot.slane %v1424, 1
  %v1569 = vsel %vm1511, %v1564, %v1568
  %v1570 = vrot.slane %v1425, 1
  %v1571 = vsel %vm1511, %v1566, %v1570
  %v1572 = vrot.slane %v1426, 1
  %v1573 = vsel %vm1511, %v1568, %v1572
  %v1574 = vrot.slane %v1427, 1
  %v1575 = vsel %vm1511, %v1570, %v1574
  %v1576 = vrot.slane %v1428, 1
  %v1577 = vsel %vm1511, %v1572, %v1576
  %v1578 = vrot.slane %v1429, 1
  %v1579 = vsel %vm1511, %v1574, %v1578
  %v1580 = vrot.slane %v1430, 1
  %v1581 = vsel %vm1511, %v1576, %v1580
  %v1582 = vrot.slane %v1431, 1
  %v1583 = vsel %vm1511, %v1578, %v1582
  %v1584 = vrot.slane %v1432, 1
  %v1585 = vsel %vm1511, %v1580, %v1584
  %v1586 = vrot.slane %v1433, 1
  %v1587 = vsel %vm1511, %v1582, %v1586
  %v1588 = vrot.slane %v1434, 1
  %v1589 = vsel %vm1511, %v1584, %v1588
  %v1590 = vrot.slane %v1435, 1
  %v1591 = vsel %vm1511, %v1586, %v1590
  %v1592 = vrot.slane %v1436, 1
  %v1593 = vsel %vm1511, %v1588, %v1592
  %v1594 = vrot.slane %v1437, 1
  %v1595 = vsel %vm1511, %v1590, %v1594
  %v1596 = vrot.slane %v1438, 1
  %v1597 = vsel %vm1511, %v1592, %v1596
  %v1598 = vrot.slane %v1439, 1
  %v1599 = vsel %vm1511, %v1594, %v1598
  %v1600 = vrot.slane %v1440, 1
  %v1601 = vsel %vm1511, %v1596, %v1600
  %v1602 = vrot.slane %v1441, 1
  %v1603 = vsel %vm1511, %v1598, %v1602
  %v1604 = vrot.slane %v1442, 1
  %v1605 = vsel %vm1511, %v1600, %v1604
  %v1606 = vrot.slane %v1443, 1
  %v1607 = vsel %vm1511, %v1602, %v1606
  %v1608 = vrot.slane %v1444, 1
  %v1609 = vsel %vm1511, %v1604, %v1608
  %v1610 = vrot.slane %v1445, 1
  %v1611 = vsel %vm1511, %v1606, %v1610
  %v1612 = vrot.slane %v1446, 1
  %v1613 = vsel %vm1511, %v1608, %v1612
  %v1614 = vrot.slane %v1447, 1
  %v1615 = vsel %vm1511, %v1610, %v1614
  %v1616 = vrot.slane %v1448, 1
  %v1617 = vsel %vm1511, %v1612, %v1616
  %v1618 = vrot.slane %v1449, 1
  %v1619 = vsel %vm1511, %v1614, %v1618
  %v1620 = vrot.slane %v1450, 1
  %v1621 = vsel %vm1511, %v1616, %v1620
  %v1622 = vrot.slane %v1451, 1
  %v1623 = vsel %vm1511, %v1618, %v1622
  %v1624 = vrot.slane %v1452, 1
  %v1625 = vsel %vm1511, %v1620, %v1624
  %v1682 = vadd.f32 %v1328, %v1514
  %v1683 = vadd.f32 %v1329, %v1517
  %v1684 = vadd.f32 %v1330, %v1519
  %v1685 = vadd.f32 %v1331, %v1521
  %v1686 = vadd.f32 %v1332, %v1523
  %v1687 = vadd.f32 %v1333, %v1525
  %v1688 = vadd.f32 %v1334, %v1527
  %v1689 = vadd.f32 %v1335, %v1529
  %v1690 = vadd.f32 %v1336, %v1531
  %v1691 = vadd.f32 %v1337, %v1533
  %v1692 = vadd.f32 %v1338, %v1535
  %v1693 = vadd.f32 %v1339, %v1537
  %v1694 = vadd.f32 %v1340, %v1539
  %v1695 = vadd.f32 %v1341, %v1541
  %v1696 = vadd.f32 %v1342, %v1543
  %v1697 = vadd.f32 %v1343, %v1545
  %v1698 = vadd.f32 %v1344, %v1547
  %v1699 = vadd.f32 %v1345, %v1549
  %v1700 = vadd.f32 %v1346, %v1551
  %v1701 = vadd.f32 %v1347, %v1553
  %v1702 = vadd.f32 %v1348, %v1555
  %v1703 = vadd.f32 %v1349, %v1557
  %v1704 = vadd.f32 %v1350, %v1559
  %v1705 = vadd.f32 %v1351, %v1561
  %v1706 = vadd.f32 %v1352, %v1563
  %v1707 = vadd.f32 %v1353, %v1565
  %v1708 = vadd.f32 %v1354, %v1567
  %v1709 = vadd.f32 %v1355, %v1569
  %v1710 = vadd.f32 %v1356, %v1571
  %v1711 = vadd.f32 %v1357, %v1573
  %v1712 = vadd.f32 %v1358, %v1575
  %v1713 = vadd.f32 %v1359, %v1577
  %v1714 = vadd.f32 %v1360, %v1579
  %v1715 = vadd.f32 %v1361, %v1581
  %v1716 = vadd.f32 %v1362, %v1583
  %v1717 = vadd.f32 %v1363, %v1585
  %v1718 = vadd.f32 %v1364, %v1587
  %v1719 = vadd.f32 %v1365, %v1589
  %v1720 = vadd.f32 %v1366, %v1591
  %v1721 = vadd.f32 %v1367, %v1593
  %v1722 = vadd.f32 %v1368, %v1595
  %v1723 = vadd.f32 %v1369, %v1597
  %v1724 = vadd.f32 %v1370, %v1599
  %v1725 = vadd.f32 %v1371, %v1601
  %v1726 = vadd.f32 %v1372, %v1603
  %v1727 = vadd.f32 %v1373, %v1605
  %v1728 = vadd.f32 %v1374, %v1607
  %v1729 = vadd.f32 %v1375, %v1609
  %v1730 = vadd.f32 %v1376, %v1611
  %v1731 = vadd.f32 %v1377, %v1613
  %v1732 = vadd.f32 %v1378, %v1615
  %v1733 = vadd.f32 %v1379, %v1617
  %v1734 = vadd.f32 %v1380, %v1619
  %v1735 = vadd.f32 %v1381, %v1621
  %v1736 = vadd.f32 %v1382, %v1623
  %v1737 = vadd.f32 %v1383, %v1625
  %v1738 = vld [vmem:[%s740] sm:$0xff]
  %v1739 = vld [vmem:[%s740 + $0x8] sm:$0xff]
  %v1740 = vld [vmem:[%s740 + $0x10] sm:$0xff]
  %v1741 = vld [vmem:[%s740 + $0x18] sm:$0xff]
  %v1742 = vld [vmem:[%s740 + $0x20] sm:$0xff]
  %v1743 = vld [vmem:[%s740 + $0x28] sm:$0xff]
  %v1744 = vld [vmem:[%s740 + $0x30] sm:$0xff]
  %v1745 = vld [vmem:[%s740 + $0x38] sm:$0xff]
  %v1746 = vld [vmem:[%s740 + $0x40] sm:$0xff]
  %v1747 = vld [vmem:[%s740 + $0x48] sm:$0xff]
  %v1748 = vld [vmem:[%s740 + $0x50] sm:$0xff]
  %v1749 = vld [vmem:[%s740 + $0x58] sm:$0xff]
  %v1750 = vld [vmem:[%s740 + $0x60] sm:$0xff]
  %v1751 = vld [vmem:[%s740 + $0x68] sm:$0xff]
  %v1752 = vld [vmem:[%s740 + $0x70] sm:$0xff]
  %v1753 = vld [vmem:[%s740 + $0x78] sm:$0xff]
  %v1754 = vld [vmem:[%s740 + $0x80] sm:$0xff]
  %v1755 = vld [vmem:[%s740 + $0x88] sm:$0xff]
  %v1756 = vld [vmem:[%s740 + $0x90] sm:$0xff]
  %v1757 = vld [vmem:[%s740 + $0x98] sm:$0xff]
  %v1758 = vld [vmem:[%s740 + $0xa0] sm:$0xff]
  %v1759 = vld [vmem:[%s740 + $0xa8] sm:$0xff]
  %v1760 = vld [vmem:[%s740 + $0xb0] sm:$0xff]
  %v1761 = vld [vmem:[%s740 + $0xb8] sm:$0xff]
  %v1762 = vld [vmem:[%s740 + $0xc0] sm:$0xff]
  %v1763 = vld [vmem:[%s740 + $0xc8] sm:$0xff]
  %v1764 = vld [vmem:[%s740 + $0xd0] sm:$0xff]
  %v1765 = vld [vmem:[%s740 + $0xd8] sm:$0xff]
  %v1766 = vld [vmem:[%s740 + $0xe0] sm:$0xff]
  %v1767 = vld [vmem:[%s740 + $0xe8] sm:$0xff]
  %v1768 = vld [vmem:[%s740 + $0xf0] sm:$0xff]
  %v1769 = vld [vmem:[%s740 + $0xf8] sm:$0xff]
  %v1770 = vld [vmem:[%s740 + $0x100] sm:$0xff]
  %v1771 = vld [vmem:[%s740 + $0x108] sm:$0xff]
  %v1772 = vld [vmem:[%s740 + $0x110] sm:$0xff]
  %v1773 = vld [vmem:[%s740 + $0x118] sm:$0xff]
  %v1774 = vld [vmem:[%s740 + $0x120] sm:$0xff]
  %v1775 = vld [vmem:[%s740 + $0x128] sm:$0xff]
  %v1776 = vld [vmem:[%s740 + $0x130] sm:$0xff]
  %v1777 = vld [vmem:[%s740 + $0x138] sm:$0xff]
  %v1778 = vld [vmem:[%s740 + $0x140] sm:$0xff]
  %v1779 = vld [vmem:[%s740 + $0x148] sm:$0xff]
  %v1780 = vld [vmem:[%s740 + $0x150] sm:$0xff]
  %v1781 = vld [vmem:[%s740 + $0x158] sm:$0xff]
  %v1782 = vld [vmem:[%s740 + $0x160] sm:$0xff]
  %v1783 = vld [vmem:[%s740 + $0x168] sm:$0xff]
  %v1784 = vld [vmem:[%s740 + $0x170] sm:$0xff]
  %v1785 = vld [vmem:[%s740 + $0x178] sm:$0xff]
  %v1786 = vld [vmem:[%s740 + $0x180] sm:$0xff]
  %v1787 = vld [vmem:[%s740 + $0x188] sm:$0xff]
  %v1788 = vld [vmem:[%s740 + $0x190] sm:$0xff]
  %v1789 = vld [vmem:[%s740 + $0x198] sm:$0xff]
  %v1790 = vld [vmem:[%s740 + $0x1a0] sm:$0xff]
  %v1791 = vld [vmem:[%s740 + $0x1a8] sm:$0xff]
  %v1792 = vld [vmem:[%s740 + $0x1b0] sm:$0xff]
  %v1793 = vld [vmem:[%s740 + $0x1b8] sm:$0xff]
  %s1794 = scalar_lea.vmem %s2, 3
  %v1795 = vld [vmem:[%s1794] ss:$8 sm:$0x3]
  %v1797 = vperm.slane %v1795, 0
  %v1798 = vperm.slane %v1795, 1
  %v1801 = vmul.f32 %v1738, %v1797
  %v1802 = vmul.f32 %v1739, %v1798
  %v1803 = vmul.f32 %v1740, %v1797
  %v1804 = vmul.f32 %v1741, %v1798
  %v1805 = vmul.f32 %v1742, %v1797
  %v1806 = vmul.f32 %v1743, %v1798
  %v1807 = vmul.f32 %v1744, %v1797
  %v1808 = vmul.f32 %v1745, %v1798
  %v1809 = vmul.f32 %v1746, %v1797
  %v1810 = vmul.f32 %v1747, %v1798
  %v1811 = vmul.f32 %v1748, %v1797
  %v1812 = vmul.f32 %v1749, %v1798
  %v1813 = vmul.f32 %v1750, %v1797
  %v1814 = vmul.f32 %v1751, %v1798
  %v1815 = vmul.f32 %v1752, %v1797
  %v1816 = vmul.f32 %v1753, %v1798
  %v1817 = vmul.f32 %v1754, %v1797
  %v1818 = vmul.f32 %v1755, %v1798
  %v1819 = vmul.f32 %v1756, %v1797
  %v1820 = vmul.f32 %v1757, %v1798
  %v1821 = vmul.f32 %v1758, %v1797
  %v1822 = vmul.f32 %v1759, %v1798
  %v1823 = vmul.f32 %v1760, %v1797
  %v1824 = vmul.f32 %v1761, %v1798
  %v1825 = vmul.f32 %v1762, %v1797
  %v1826 = vmul.f32 %v1763, %v1798
  %v1827 = vmul.f32 %v1764, %v1797
  %v1828 = vmul.f32 %v1765, %v1798
  %v1829 = vmul.f32 %v1766, %v1797
  %v1830 = vmul.f32 %v1767, %v1798
  %v1831 = vmul.f32 %v1768, %v1797
  %v1832 = vmul.f32 %v1769, %v1798
  %v1833 = vmul.f32 %v1770, %v1797
  %v1834 = vmul.f32 %v1771, %v1798
  %v1835 = vmul.f32 %v1772, %v1797
  %v1836 = vmul.f32 %v1773, %v1798
  %v1837 = vmul.f32 %v1774, %v1797
  %v1838 = vmul.f32 %v1775, %v1798
  %v1839 = vmul.f32 %v1776, %v1797
  %v1840 = vmul.f32 %v1777, %v1798
  %v1841 = vmul.f32 %v1778, %v1797
  %v1842 = vmul.f32 %v1779, %v1798
  %v1843 = vmul.f32 %v1780, %v1797
  %v1844 = vmul.f32 %v1781, %v1798
  %v1845 = vmul.f32 %v1782, %v1797
  %v1846 = vmul.f32 %v1783, %v1798
  %v1847 = vmul.f32 %v1784, %v1797
  %v1848 = vmul.f32 %v1785, %v1798
  %v1849 = vmul.f32 %v1786, %v1797
  %v1850 = vmul.f32 %v1787, %v1798
  %v1851 = vmul.f32 %v1788, %v1797
  %v1852 = vmul.f32 %v1789, %v1798
  %v1853 = vmul.f32 %v1790, %v1797
  %v1854 = vmul.f32 %v1791, %v1798
  %v1855 = vmul.f32 %v1792, %v1797
  %v1856 = vmul.f32 %v1793, %v1798
  %v1857 = vadd.f32 %v1682, %v1801
  %v1858 = vadd.f32 %v1683, %v1802
  %v1859 = vadd.f32 %v1684, %v1803
  %v1860 = vadd.f32 %v1685, %v1804
  %v1861 = vadd.f32 %v1686, %v1805
  %v1862 = vadd.f32 %v1687, %v1806
  %v1863 = vadd.f32 %v1688, %v1807
  %v1864 = vadd.f32 %v1689, %v1808
  %v1865 = vadd.f32 %v1690, %v1809
  %v1866 = vadd.f32 %v1691, %v1810
  %v1867 = vadd.f32 %v1692, %v1811
  %v1868 = vadd.f32 %v1693, %v1812
  %v1869 = vadd.f32 %v1694, %v1813
  %v1870 = vadd.f32 %v1695, %v1814
  %v1871 = vadd.f32 %v1696, %v1815
  %v1872 = vadd.f32 %v1697, %v1816
  %v1873 = vadd.f32 %v1698, %v1817
  %v1874 = vadd.f32 %v1699, %v1818
  %v1875 = vadd.f32 %v1700, %v1819
  %v1876 = vadd.f32 %v1701, %v1820
  %v1877 = vadd.f32 %v1702, %v1821
  %v1878 = vadd.f32 %v1703, %v1822
  %v1879 = vadd.f32 %v1704, %v1823
  %v1880 = vadd.f32 %v1705, %v1824
  %v1881 = vadd.f32 %v1706, %v1825
  %v1882 = vadd.f32 %v1707, %v1826
  %v1883 = vadd.f32 %v1708, %v1827
  %v1884 = vadd.f32 %v1709, %v1828
  %v1885 = vadd.f32 %v1710, %v1829
  %v1886 = vadd.f32 %v1711, %v1830
  %v1887 = vadd.f32 %v1712, %v1831
  %v1888 = vadd.f32 %v1713, %v1832
  %v1889 = vadd.f32 %v1714, %v1833
  %v1890 = vadd.f32 %v1715, %v1834
  %v1891 = vadd.f32 %v1716, %v1835
  %v1892 = vadd.f32 %v1717, %v1836
  %v1893 = vadd.f32 %v1718, %v1837
  %v1894 = vadd.f32 %v1719, %v1838
  %v1895 = vadd.f32 %v1720, %v1839
  %v1896 = vadd.f32 %v1721, %v1840
  %v1897 = vadd.f32 %v1722, %v1841
  %v1898 = vadd.f32 %v1723, %v1842
  %v1899 = vadd.f32 %v1724, %v1843
  %v1900 = vadd.f32 %v1725, %v1844
  %v1901 = vadd.f32 %v1726, %v1845
  %v1902 = vadd.f32 %v1727, %v1846
  %v1903 = vadd.f32 %v1728, %v1847
  %v1904 = vadd.f32 %v1729, %v1848
  %v1905 = vadd.f32 %v1730, %v1849
  %v1906 = vadd.f32 %v1731, %v1850
  %v1907 = vadd.f32 %v1732, %v1851
  %v1908 = vadd.f32 %v1733, %v1852
  %v1909 = vadd.f32 %v1734, %v1853
  %v1910 = vadd.f32 %v1735, %v1854
  %v1911 = vadd.f32 %v1736, %v1855
  %v1912 = vadd.f32 %v1737, %v1856
  %v1913 = vld [vmem:[%s998] sm:$0xff]
  %v1914 = vld [vmem:[%s998 + $0x8] sm:$0xff]
  %v1915 = vld [vmem:[%s998 + $0x10] sm:$0xff]
  %v1916 = vld [vmem:[%s998 + $0x18] sm:$0xff]
  %v1917 = vld [vmem:[%s998 + $0x20] sm:$0xff]
  %v1918 = vld [vmem:[%s998 + $0x28] sm:$0xff]
  %v1919 = vld [vmem:[%s998 + $0x30] sm:$0xff]
  %v1920 = vld [vmem:[%s998 + $0x38] sm:$0xff]
  %v1921 = vld [vmem:[%s998 + $0x40] sm:$0xff]
  %v1922 = vld [vmem:[%s998 + $0x48] sm:$0xff]
  %v1923 = vld [vmem:[%s998 + $0x50] sm:$0xff]
  %v1924 = vld [vmem:[%s998 + $0x58] sm:$0xff]
  %v1925 = vld [vmem:[%s998 + $0x60] sm:$0xff]
  %v1926 = vld [vmem:[%s998 + $0x68] sm:$0xff]
  %v1927 = vld [vmem:[%s998 + $0x70] sm:$0xff]
  %v1928 = vld [vmem:[%s998 + $0x78] sm:$0xff]
  %v1929 = vld [vmem:[%s998 + $0x80] sm:$0xff]
  %v1930 = vld [vmem:[%s998 + $0x88] sm:$0xff]
  %v1931 = vld [vmem:[%s998 + $0x90] sm:$0xff]
  %v1932 = vld [vmem:[%s998 + $0x98] sm:$0xff]
  %v1933 = vld [vmem:[%s998 + $0xa0] sm:$0xff]
  %v1934 = vld [vmem:[%s998 + $0xa8] sm:$0xff]
  %v1935 = vld [vmem:[%s998 + $0xb0] sm:$0xff]
  %v1936 = vld [vmem:[%s998 + $0xb8] sm:$0xff]
  %v1937 = vld [vmem:[%s998 + $0xc0] sm:$0xff]
  %v1938 = vld [vmem:[%s998 + $0xc8] sm:$0xff]
  %v1939 = vld [vmem:[%s998 + $0xd0] sm:$0xff]
  %v1940 = vld [vmem:[%s998 + $0xd8] sm:$0xff]
  %v1941 = vld [vmem:[%s998 + $0xe0] sm:$0xff]
  %v1942 = vld [vmem:[%s998 + $0xe8] sm:$0xff]
  %v1943 = vld [vmem:[%s998 + $0xf0] sm:$0xff]
  %v1944 = vld [vmem:[%s998 + $0xf8] sm:$0xff]
  %v1945 = vld [vmem:[%s998 + $0x100] sm:$0xff]
  %v1946 = vld [vmem:[%s998 + $0x108] sm:$0xff]
  %v1947 = vld [vmem:[%s998 + $0x110] sm:$0xff]
  %v1948 = vld [vmem:[%s998 + $0x118] sm:$0xff]
  %v1949 = vld [vmem:[%s998 + $0x120] sm:$0xff]
  %v1950 = vld [vmem:[%s998 + $0x128] sm:$0xff]
  %v1951 = vld [vmem:[%s998 + $0x130] sm:$0xff]
  %v1952 = vld [vmem:[%s998 + $0x138] sm:$0xff]
  %v1953 = vld [vmem:[%s998 + $0x140] sm:$0xff]
  %v1954 = vld [vmem:[%s998 + $0x148] sm:$0xff]
  %v1955 = vld [vmem:[%s998 + $0x150] sm:$0xff]
  %v1956 = vld [vmem:[%s998 + $0x158] sm:$0xff]
  %v1957 = vld [vmem:[%s998 + $0x160] sm:$0xff]
  %v1958 = vld [vmem:[%s998 + $0x168] sm:$0xff]
  %v1959 = vld [vmem:[%s998 + $0x170] sm:$0xff]
  %v1960 = vld [vmem:[%s998 + $0x178] sm:$0xff]
  %v1961 = vld [vmem:[%s998 + $0x180] sm:$0xff]
  %v1962 = vld [vmem:[%s998 + $0x188] sm:$0xff]
  %v1963 = vld [vmem:[%s998 + $0x190] sm:$0xff]
  %v1964 = vld [vmem:[%s998 + $0x198] sm:$0xff]
  %v1965 = vld [vmem:[%s998 + $0x1a0] sm:$0xff]
  %v1966 = vld [vmem:[%s998 + $0x1a8] sm:$0xff]
  %v1967 = vld [vmem:[%s998 + $0x1b0] sm:$0xff]
  %v1968 = vld [vmem:[%s998 + $0x1b8] sm:$0xff]
  %s1969 = scalar_lea.vmem %s2, 4
  %v1970 = vld [vmem:[%s1969] ss:$8 sm:$0x3]
  %v1972 = vperm.slane %v1970, 0
  %v1973 = vperm.slane %v1970, 1
  %v1976 = vmul.f32 %v1913, %v1972
  %v1977 = vmul.f32 %v1914, %v1973
  %v1978 = vmul.f32 %v1915, %v1972
  %v1979 = vmul.f32 %v1916, %v1973
  %v1980 = vmul.f32 %v1917, %v1972
  %v1981 = vmul.f32 %v1918, %v1973
  %v1982 = vmul.f32 %v1919, %v1972
  %v1983 = vmul.f32 %v1920, %v1973
  %v1984 = vmul.f32 %v1921, %v1972
  %v1985 = vmul.f32 %v1922, %v1973
  %v1986 = vmul.f32 %v1923, %v1972
  %v1987 = vmul.f32 %v1924, %v1973
  %v1988 = vmul.f32 %v1925, %v1972
  %v1989 = vmul.f32 %v1926, %v1973
  %v1990 = vmul.f32 %v1927, %v1972
  %v1991 = vmul.f32 %v1928, %v1973
  %v1992 = vmul.f32 %v1929, %v1972
  %v1993 = vmul.f32 %v1930, %v1973
  %v1994 = vmul.f32 %v1931, %v1972
  %v1995 = vmul.f32 %v1932, %v1973
  %v1996 = vmul.f32 %v1933, %v1972
  %v1997 = vmul.f32 %v1934, %v1973
  %v1998 = vmul.f32 %v1935, %v1972
  %v1999 = vmul.f32 %v1936, %v1973
  %v2000 = vmul.f32 %v1937, %v1972
  %v2001 = vmul.f32 %v1938, %v1973
  %v2002 = vmul.f32 %v1939, %v1972
  %v2003 = vmul.f32 %v1940, %v1973
  %v2004 = vmul.f32 %v1941, %v1972
  %v2005 = vmul.f32 %v1942, %v1973
  %v2006 = vmul.f32 %v1943, %v1972
  %v2007 = vmul.f32 %v1944, %v1973
  %v2008 = vmul.f32 %v1945, %v1972
  %v2009 = vmul.f32 %v1946, %v1973
  %v2010 = vmul.f32 %v1947, %v1972
  %v2011 = vmul.f32 %v1948, %v1973
  %v2012 = vmul.f32 %v1949, %v1972
  %v2013 = vmul.f32 %v1950, %v1973
  %v2014 = vmul.f32 %v1951, %v1972
  %v2015 = vmul.f32 %v1952, %v1973
  %v2016 = vmul.f32 %v1953, %v1972
  %v2017 = vmul.f32 %v1954, %v1973
  %v2018 = vmul.f32 %v1955, %v1972
  %v2019 = vmul.f32 %v1956, %v1973
  %v2020 = vmul.f32 %v1957, %v1972
  %v2021 = vmul.f32 %v1958, %v1973
  %v2022 = vmul.f32 %v1959, %v1972
  %v2023 = vmul.f32 %v1960, %v1973
  %v2024 = vmul.f32 %v1961, %v1972
  %v2025 = vmul.f32 %v1962, %v1973
  %v2026 = vmul.f32 %v1963, %v1972
  %v2027 = vmul.f32 %v1964, %v1973
  %v2028 = vmul.f32 %v1965, %v1972
  %v2029 = vmul.f32 %v1966, %v1973
  %v2030 = vmul.f32 %v1967, %v1972
  %v2031 = vmul.f32 %v1968, %v1973
  %v2032 = vadd.f32 %v1857, %v1976
  %v2033 = vadd.f32 %v1858, %v1977
  %v2034 = vadd.f32 %v1859, %v1978
  %v2035 = vadd.f32 %v1860, %v1979
  %v2036 = vadd.f32 %v1861, %v1980
  %v2037 = vadd.f32 %v1862, %v1981
  %v2038 = vadd.f32 %v1863, %v1982
  %v2039 = vadd.f32 %v1864, %v1983
  %v2040 = vadd.f32 %v1865, %v1984
  %v2041 = vadd.f32 %v1866, %v1985
  %v2042 = vadd.f32 %v1867, %v1986
  %v2043 = vadd.f32 %v1868, %v1987
  %v2044 = vadd.f32 %v1869, %v1988
  %v2045 = vadd.f32 %v1870, %v1989
  %v2046 = vadd.f32 %v1871, %v1990
  %v2047 = vadd.f32 %v1872, %v1991
  %v2048 = vadd.f32 %v1873, %v1992
  %v2049 = vadd.f32 %v1874, %v1993
  %v2050 = vadd.f32 %v1875, %v1994
  %v2051 = vadd.f32 %v1876, %v1995
  %v2052 = vadd.f32 %v1877, %v1996
  %v2053 = vadd.f32 %v1878, %v1997
  %v2054 = vadd.f32 %v1879, %v1998
  %v2055 = vadd.f32 %v1880, %v1999
  %v2056 = vadd.f32 %v1881, %v2000
  %v2057 = vadd.f32 %v1882, %v2001
  %v2058 = vadd.f32 %v1883, %v2002
  %v2059 = vadd.f32 %v1884, %v2003
  %v2060 = vadd.f32 %v1885, %v2004
  %v2061 = vadd.f32 %v1886, %v2005
  %v2062 = vadd.f32 %v1887, %v2006
  %v2063 = vadd.f32 %v1888, %v2007
  %v2064 = vadd.f32 %v1889, %v2008
  %v2065 = vadd.f32 %v1890, %v2009
  %v2066 = vadd.f32 %v1891, %v2010
  %v2067 = vadd.f32 %v1892, %v2011
  %v2068 = vadd.f32 %v1893, %v2012
  %v2069 = vadd.f32 %v1894, %v2013
  %v2070 = vadd.f32 %v1895, %v2014
  %v2071 = vadd.f32 %v1896, %v2015
  %v2072 = vadd.f32 %v1897, %v2016
  %v2073 = vadd.f32 %v1898, %v2017
  %v2074 = vadd.f32 %v1899, %v2018
  %v2075 = vadd.f32 %v1900, %v2019
  %v2076 = vadd.f32 %v1901, %v2020
  %v2077 = vadd.f32 %v1902, %v2021
  %v2078 = vadd.f32 %v1903, %v2022
  %v2079 = vadd.f32 %v1904, %v2023
  %v2080 = vadd.f32 %v1905, %v2024
  %v2081 = vadd.f32 %v1906, %v2025
  %v2082 = vadd.f32 %v1907, %v2026
  %v2083 = vadd.f32 %v1908, %v2027
  %v2084 = vadd.f32 %v1909, %v2028
  %v2085 = vadd.f32 %v1910, %v2029
  %v2086 = vadd.f32 %v1911, %v2030
  %v2087 = vadd.f32 %v1912, %v2031
  %v2088 = vld [vmem:[%s740] sm:$0xfe]
  %v2089 = vld [vmem:[%s740 + $0x8] sm:$0xfe]
  %v2090 = vld [vmem:[%s740 + $0x1c0] sm:$0x1]
  %v2091 = vld [vmem:[%s740 + $0x1c8] sm:$0x1]
  %s2092 = scalar_lea.vmem %s2, 5
  %v2093 = vld [vmem:[%s2092] ss:$8 sm:$0x3]
  %v2095 = vperm.slane %v2093, 0
  %v2096 = vperm.slane %v2093, 1
  %v2099 = vmul.f32 %v2088, %v2095
  %v2100 = vmul.f32 %v2089, %v2096
  %v2101 = vmul.f32 %v1740, %v2095
  %v2102 = vmul.f32 %v1741, %v2096
  %v2103 = vmul.f32 %v1742, %v2095
  %v2104 = vmul.f32 %v1743, %v2096
  %v2105 = vmul.f32 %v1744, %v2095
  %v2106 = vmul.f32 %v1745, %v2096
  %v2107 = vmul.f32 %v1746, %v2095
  %v2108 = vmul.f32 %v1747, %v2096
  %v2109 = vmul.f32 %v1748, %v2095
  %v2110 = vmul.f32 %v1749, %v2096
  %v2111 = vmul.f32 %v1750, %v2095
  %v2112 = vmul.f32 %v1751, %v2096
  %v2113 = vmul.f32 %v1752, %v2095
  %v2114 = vmul.f32 %v1753, %v2096
  %v2115 = vmul.f32 %v1754, %v2095
  %v2116 = vmul.f32 %v1755, %v2096
  %v2117 = vmul.f32 %v1756, %v2095
  %v2118 = vmul.f32 %v1757, %v2096
  %v2119 = vmul.f32 %v1758, %v2095
  %v2120 = vmul.f32 %v1759, %v2096
  %v2121 = vmul.f32 %v1760, %v2095
  %v2122 = vmul.f32 %v1761, %v2096
  %v2123 = vmul.f32 %v1762, %v2095
  %v2124 = vmul.f32 %v1763, %v2096
  %v2125 = vmul.f32 %v1764, %v2095
  %v2126 = vmul.f32 %v1765, %v2096
  %v2127 = vmul.f32 %v1766, %v2095
  %v2128 = vmul.f32 %v1767, %v2096
  %v2129 = vmul.f32 %v1768, %v2095
  %v2130 = vmul.f32 %v1769, %v2096
  %v2131 = vmul.f32 %v1770, %v2095
  %v2132 = vmul.f32 %v1771, %v2096
  %v2133 = vmul.f32 %v1772, %v2095
  %v2134 = vmul.f32 %v1773, %v2096
  %v2135 = vmul.f32 %v1774, %v2095
  %v2136 = vmul.f32 %v1775, %v2096
  %v2137 = vmul.f32 %v1776, %v2095
  %v2138 = vmul.f32 %v1777, %v2096
  %v2139 = vmul.f32 %v1778, %v2095
  %v2140 = vmul.f32 %v1779, %v2096
  %v2141 = vmul.f32 %v1780, %v2095
  %v2142 = vmul.f32 %v1781, %v2096
  %v2143 = vmul.f32 %v1782, %v2095
  %v2144 = vmul.f32 %v1783, %v2096
  %v2145 = vmul.f32 %v1784, %v2095
  %v2146 = vmul.f32 %v1785, %v2096
  %v2147 = vmul.f32 %v1786, %v2095
  %v2148 = vmul.f32 %v1787, %v2096
  %v2149 = vmul.f32 %v1788, %v2095
  %v2150 = vmul.f32 %v1789, %v2096
  %v2151 = vmul.f32 %v1790, %v2095
  %v2152 = vmul.f32 %v1791, %v2096
  %v2153 = vmul.f32 %v1792, %v2095
  %v2154 = vmul.f32 %v1793, %v2096
  %v2155 = vmul.f32 %v2090, %v2095
  %v2156 = vmul.f32 %v2091, %v2096
  %v2215 = vrot.slane %v2099, 1
  %v2216 = vrot.slane %v2101, 1
  %v2217 = vsel %vm1511, %v2215, %v2216
  %v2218 = vrot.slane %v2100, 1
  %v2219 = vrot.slane %v2102, 1
  %v2220 = vsel %vm1511, %v2218, %v2219
  %v2221 = vrot.slane %v2103, 1
  %v2222 = vsel %vm1511, %v2216, %v2221
  %v2223 = vrot.slane %v2104, 1
  %v2224 = vsel %vm1511, %v2219, %v2223
  %v2225 = vrot.slane %v2105, 1
  %v2226 = vsel %vm1511, %v2221, %v2225
  %v2227 = vrot.slane %v2106, 1
  %v2228 = vsel %vm1511, %v2223, %v2227
  %v2229 = vrot.slane %v2107, 1
  %v2230 = vsel %vm1511, %v2225, %v2229
  %v2231 = vrot.slane %v2108, 1
  %v2232 = vsel %vm1511, %v2227, %v2231
  %v2233 = vrot.slane %v2109, 1
  %v2234 = vsel %vm1511, %v2229, %v2233
  %v2235 = vrot.slane %v2110, 1
  %v2236 = vsel %vm1511, %v2231, %v2235
  %v2237 = vrot.slane %v2111, 1
  %v2238 = vsel %vm1511, %v2233, %v2237
  %v2239 = vrot.slane %v2112, 1
  %v2240 = vsel %vm1511, %v2235, %v2239
  %v2241 = vrot.slane %v2113, 1
  %v2242 = vsel %vm1511, %v2237, %v2241
  %v2243 = vrot.slane %v2114, 1
  %v2244 = vsel %vm1511, %v2239, %v2243
  %v2245 = vrot.slane %v2115, 1
  %v2246 = vsel %vm1511, %v2241, %v2245
  %v2247 = vrot.slane %v2116, 1
  %v2248 = vsel %vm1511, %v2243, %v2247
  %v2249 = vrot.slane %v2117, 1
  %v2250 = vsel %vm1511, %v2245, %v2249
  %v2251 = vrot.slane %v2118, 1
  %v2252 = vsel %vm1511, %v2247, %v2251
  %v2253 = vrot.slane %v2119, 1
  %v2254 = vsel %vm1511, %v2249, %v2253
  %v2255 = vrot.slane %v2120, 1
  %v2256 = vsel %vm1511, %v2251, %v2255
  %v2257 = vrot.slane %v2121, 1
  %v2258 = vsel %vm1511, %v2253, %v2257
  %v2259 = vrot.slane %v2122, 1
  %v2260 = vsel %vm1511, %v2255, %v2259
  %v2261 = vrot.slane %v2123, 1
  %v2262 = vsel %vm1511, %v2257, %v2261
  %v2263 = vrot.slane %v2124, 1
  %v2264 = vsel %vm1511, %v2259, %v2263
  %v2265 = vrot.slane %v2125, 1
  %v2266 = vsel %vm1511, %v2261, %v2265
  %v2267 = vrot.slane %v2126, 1
  %v2268 = vsel %vm1511, %v2263, %v2267
  %v2269 = vrot.slane %v2127, 1
  %v2270 = vsel %vm1511, %v2265, %v2269
  %v2271 = vrot.slane %v2128, 1
  %v2272 = vsel %vm1511, %v2267, %v2271
  %v2273 = vrot.slane %v2129, 1
  %v2274 = vsel %vm1511, %v2269, %v2273
  %v2275 = vrot.slane %v2130, 1
  %v2276 = vsel %vm1511, %v2271, %v2275
  %v2277 = vrot.slane %v2131, 1
  %v2278 = vsel %vm1511, %v2273, %v2277
  %v2279 = vrot.slane %v2132, 1
  %v2280 = vsel %vm1511, %v2275, %v2279
  %v2281 = vrot.slane %v2133, 1
  %v2282 = vsel %vm1511, %v2277, %v2281
  %v2283 = vrot.slane %v2134, 1
  %v2284 = vsel %vm1511, %v2279, %v2283
  %v2285 = vrot.slane %v2135, 1
  %v2286 = vsel %vm1511, %v2281, %v2285
  %v2287 = vrot.slane %v2136, 1
  %v2288 = vsel %vm1511, %v2283, %v2287
  %v2289 = vrot.slane %v2137, 1
  %v2290 = vsel %vm1511, %v2285, %v2289
  %v2291 = vrot.slane %v2138, 1
  %v2292 = vsel %vm1511, %v2287, %v2291
  %v2293 = vrot.slane %v2139, 1
  %v2294 = vsel %vm1511, %v2289, %v2293
  %v2295 = vrot.slane %v2140, 1
  %v2296 = vsel %vm1511, %v2291, %v2295
  %v2297 = vrot.slane %v2141, 1
  %v2298 = vsel %vm1511, %v2293, %v2297
  %v2299 = vrot.slane %v2142, 1
  %v2300 = vsel %vm1511, %v2295, %v2299
  %v2301 = vrot.slane %v2143, 1
  %v2302 = vsel %vm1511, %v2297, %v2301
  %v2303 = vrot.slane %v2144, 1
  %v2304 = vsel %vm1511, %v2299, %v2303
  %v2305 = vrot.slane %v2145, 1
  %v2306 = vsel %vm1511, %v2301, %v2305
  %v2307 = vrot.slane %v2146, 1
  %v2308 = vsel %vm1511, %v2303, %v2307
  %v2309 = vrot.slane %v2147, 1
  %v2310 = vsel %vm1511, %v2305, %v2309
  %v2311 = vrot.slane %v2148, 1
  %v2312 = vsel %vm1511, %v2307, %v2311
  %v2313 = vrot.slane %v2149, 1
  %v2314 = vsel %vm1511, %v2309, %v2313
  %v2315 = vrot.slane %v2150, 1
  %v2316 = vsel %vm1511, %v2311, %v2315
  %v2317 = vrot.slane %v2151, 1
  %v2318 = vsel %vm1511, %v2313, %v2317
  %v2319 = vrot.slane %v2152, 1
  %v2320 = vsel %vm1511, %v2315, %v2319
  %v2321 = vrot.slane %v2153, 1
  %v2322 = vsel %vm1511, %v2317, %v2321
  %v2323 = vrot.slane %v2154, 1
  %v2324 = vsel %vm1511, %v2319, %v2323
  %v2325 = vrot.slane %v2155, 1
  %v2326 = vsel %vm1511, %v2321, %v2325
  %v2327 = vrot.slane %v2156, 1
  %v2328 = vsel %vm1511, %v2323, %v2327
  %v2385 = vadd.f32 %v2032, %v2217
  %v2386 = vadd.f32 %v2033, %v2220
  %v2387 = vadd.f32 %v2034, %v2222
  %v2388 = vadd.f32 %v2035, %v2224
  %v2389 = vadd.f32 %v2036, %v2226
  %v2390 = vadd.f32 %v2037, %v2228
  %v2391 = vadd.f32 %v2038, %v2230
  %v2392 = vadd.f32 %v2039, %v2232
  %v2393 = vadd.f32 %v2040, %v2234
  %v2394 = vadd.f32 %v2041, %v2236
  %v2395 = vadd.f32 %v2042, %v2238
  %v2396 = vadd.f32 %v2043, %v2240
  %v2397 = vadd.f32 %v2044, %v2242
  %v2398 = vadd.f32 %v2045, %v2244
  %v2399 = vadd.f32 %v2046, %v2246
  %v2400 = vadd.f32 %v2047, %v2248
  %v2401 = vadd.f32 %v2048, %v2250
  %v2402 = vadd.f32 %v2049, %v2252
  %v2403 = vadd.f32 %v2050, %v2254
  %v2404 = vadd.f32 %v2051, %v2256
  %v2405 = vadd.f32 %v2052, %v2258
  %v2406 = vadd.f32 %v2053, %v2260
  %v2407 = vadd.f32 %v2054, %v2262
  %v2408 = vadd.f32 %v2055, %v2264
  %v2409 = vadd.f32 %v2056, %v2266
  %v2410 = vadd.f32 %v2057, %v2268
  %v2411 = vadd.f32 %v2058, %v2270
  %v2412 = vadd.f32 %v2059, %v2272
  %v2413 = vadd.f32 %v2060, %v2274
  %v2414 = vadd.f32 %v2061, %v2276
  %v2415 = vadd.f32 %v2062, %v2278
  %v2416 = vadd.f32 %v2063, %v2280
  %v2417 = vadd.f32 %v2064, %v2282
  %v2418 = vadd.f32 %v2065, %v2284
  %v2419 = vadd.f32 %v2066, %v2286
  %v2420 = vadd.f32 %v2067, %v2288
  %v2421 = vadd.f32 %v2068, %v2290
  %v2422 = vadd.f32 %v2069, %v2292
  %v2423 = vadd.f32 %v2070, %v2294
  %v2424 = vadd.f32 %v2071, %v2296
  %v2425 = vadd.f32 %v2072, %v2298
  %v2426 = vadd.f32 %v2073, %v2300
  %v2427 = vadd.f32 %v2074, %v2302
  %v2428 = vadd.f32 %v2075, %v2304
  %v2429 = vadd.f32 %v2076, %v2306
  %v2430 = vadd.f32 %v2077, %v2308
  %v2431 = vadd.f32 %v2078, %v2310
  %v2432 = vadd.f32 %v2079, %v2312
  %v2433 = vadd.f32 %v2080, %v2314
  %v2434 = vadd.f32 %v2081, %v2316
  %v2435 = vadd.f32 %v2082, %v2318
  %v2436 = vadd.f32 %v2083, %v2320
  %v2437 = vadd.f32 %v2084, %v2322
  %v2438 = vadd.f32 %v2085, %v2324
  %v2439 = vadd.f32 %v2086, %v2326
  %v2440 = vadd.f32 %v2087, %v2328
  %v2441 = vld [vmem:[#allocation2 + $0x1c0] sm:$0xff]
  %v2442 = vld [vmem:[#allocation2 + $0x1c8] sm:$0xff]
  %v2443 = vld [vmem:[#allocation2 + $0x1d0] sm:$0xff]
  %v2444 = vld [vmem:[#allocation2 + $0x1d8] sm:$0xff]
  %s2445 = scalar_lea.vmem %s2, 6
  %v2446 = vld [vmem:[%s2445] ss:$8 sm:$0x3]
  %v2448 = vperm.slane %v2446, 0
  %v2449 = vperm.slane %v2446, 1
  %v2452 = vmul.f32 %v1095, %v2448
  %v2453 = vmul.f32 %v1096, %v2449
  %v2454 = vmul.f32 %v1097, %v2448
  %v2455 = vmul.f32 %v1098, %v2449
  %v2456 = vmul.f32 %v1099, %v2448
  %v2457 = vmul.f32 %v1100, %v2449
  %v2458 = vmul.f32 %v1101, %v2448
  %v2459 = vmul.f32 %v1102, %v2449
  %v2460 = vmul.f32 %v1103, %v2448
  %v2461 = vmul.f32 %v1104, %v2449
  %v2462 = vmul.f32 %v1105, %v2448
  %v2463 = vmul.f32 %v1106, %v2449
  %v2464 = vmul.f32 %v1107, %v2448
  %v2465 = vmul.f32 %v1108, %v2449
  %v2466 = vmul.f32 %v1109, %v2448
  %v2467 = vmul.f32 %v1110, %v2449
  %v2468 = vmul.f32 %v1111, %v2448
  %v2469 = vmul.f32 %v1112, %v2449
  %v2470 = vmul.f32 %v1113, %v2448
  %v2471 = vmul.f32 %v1114, %v2449
  %v2472 = vmul.f32 %v1115, %v2448
  %v2473 = vmul.f32 %v1116, %v2449
  %v2474 = vmul.f32 %v1117, %v2448
  %v2475 = vmul.f32 %v1118, %v2449
  %v2476 = vmul.f32 %v1119, %v2448
  %v2477 = vmul.f32 %v1120, %v2449
  %v2478 = vmul.f32 %v1121, %v2448
  %v2479 = vmul.f32 %v1122, %v2449
  %v2480 = vmul.f32 %v1123, %v2448
  %v2481 = vmul.f32 %v1124, %v2449
  %v2482 = vmul.f32 %v1125, %v2448
  %v2483 = vmul.f32 %v1126, %v2449
  %v2484 = vmul.f32 %v1127, %v2448
  %v2485 = vmul.f32 %v1128, %v2449
  %v2486 = vmul.f32 %v1129, %v2448
  %v2487 = vmul.f32 %v1130, %v2449
  %v2488 = vmul.f32 %v1131, %v2448
  %v2489 = vmul.f32 %v1132, %v2449
  %v2490 = vmul.f32 %v1133, %v2448
  %v2491 = vmul.f32 %v1134, %v2449
  %v2492 = vmul.f32 %v1135, %v2448
  %v2493 = vmul.f32 %v1136, %v2449
  %v2494 = vmul.f32 %v1137, %v2448
  %v2495 = vmul.f32 %v1138, %v2449
  %v2496 = vmul.f32 %v1139, %v2448
  %v2497 = vmul.f32 %v1140, %v2449
  %v2498 = vmul.f32 %v1141, %v2448
  %v2499 = vmul.f32 %v1142, %v2449
  %v2500 = vmul.f32 %v1143, %v2448
  %v2501 = vmul.f32 %v1144, %v2449
  %v2502 = vmul.f32 %v1145, %v2448
  %v2503 = vmul.f32 %v1146, %v2449
  %v2504 = vmul.f32 %v2441, %v2448
  %v2505 = vmul.f32 %v2442, %v2449
  %v2506 = vmul.f32 %v2443, %v2448
  %v2507 = vmul.f32 %v2444, %v2449
  %v2508 = vadd.f32 %v2385, %v2452
  %v2509 = vadd.f32 %v2386, %v2453
  %v2510 = vadd.f32 %v2387, %v2454
  %v2511 = vadd.f32 %v2388, %v2455
  %v2512 = vadd.f32 %v2389, %v2456
  %v2513 = vadd.f32 %v2390, %v2457
  %v2514 = vadd.f32 %v2391, %v2458
  %v2515 = vadd.f32 %v2392, %v2459
  %v2516 = vadd.f32 %v2393, %v2460
  %v2517 = vadd.f32 %v2394, %v2461
  %v2518 = vadd.f32 %v2395, %v2462
  %v2519 = vadd.f32 %v2396, %v2463
  %v2520 = vadd.f32 %v2397, %v2464
  %v2521 = vadd.f32 %v2398, %v2465
  %v2522 = vadd.f32 %v2399, %v2466
  %v2523 = vadd.f32 %v2400, %v2467
  %v2524 = vadd.f32 %v2401, %v2468
  %v2525 = vadd.f32 %v2402, %v2469
  %v2526 = vadd.f32 %v2403, %v2470
  %v2527 = vadd.f32 %v2404, %v2471
  %v2528 = vadd.f32 %v2405, %v2472
  %v2529 = vadd.f32 %v2406, %v2473
  %v2530 = vadd.f32 %v2407, %v2474
  %v2531 = vadd.f32 %v2408, %v2475
  %v2532 = vadd.f32 %v2409, %v2476
  %v2533 = vadd.f32 %v2410, %v2477
  %v2534 = vadd.f32 %v2411, %v2478
  %v2535 = vadd.f32 %v2412, %v2479
  %v2536 = vadd.f32 %v2413, %v2480
  %v2537 = vadd.f32 %v2414, %v2481
  %v2538 = vadd.f32 %v2415, %v2482
  %v2539 = vadd.f32 %v2416, %v2483
  %v2540 = vadd.f32 %v2417, %v2484
  %v2541 = vadd.f32 %v2418, %v2485
  %v2542 = vadd.f32 %v2419, %v2486
  %v2543 = vadd.f32 %v2420, %v2487
  %v2544 = vadd.f32 %v2421, %v2488
  %v2545 = vadd.f32 %v2422, %v2489
  %v2546 = vadd.f32 %v2423, %v2490
  %v2547 = vadd.f32 %v2424, %v2491
  %v2548 = vadd.f32 %v2425, %v2492
  %v2549 = vadd.f32 %v2426, %v2493
  %v2550 = vadd.f32 %v2427, %v2494
  %v2551 = vadd.f32 %v2428, %v2495
  %v2552 = vadd.f32 %v2429, %v2496
  %v2553 = vadd.f32 %v2430, %v2497
  %v2554 = vadd.f32 %v2431, %v2498
  %v2555 = vadd.f32 %v2432, %v2499
  %v2556 = vadd.f32 %v2433, %v2500
  %v2557 = vadd.f32 %v2434, %v2501
  %v2558 = vadd.f32 %v2435, %v2502
  %v2559 = vadd.f32 %v2436, %v2503
  %v2560 = vadd.f32 %v2437, %v2504
  %v2561 = vadd.f32 %v2438, %v2505
  %v2562 = vadd.f32 %v2439, %v2506
  %v2563 = vadd.f32 %v2440, %v2507
  %v2564 = vld [vmem:[%s482 + $0x1c0] sm:$0xff]
  %v2565 = vld [vmem:[%s482 + $0x1c8] sm:$0xff]
  %v2566 = vld [vmem:[%s482 + $0x1d0] sm:$0xff]
  %v2567 = vld [vmem:[%s482 + $0x1d8] sm:$0xff]
  %s2568 = scalar_lea.vmem %s2, 7
  %v2569 = vld [vmem:[%s2568] ss:$8 sm:$0x3]
  %v2571 = vperm.slane %v2569, 0
  %v2572 = vperm.slane %v2569, 1
  %v2575 = vmul.f32 %v1213, %v2571
  %v2576 = vmul.f32 %v1214, %v2572
  %v2577 = vmul.f32 %v1215, %v2571
  %v2578 = vmul.f32 %v1216, %v2572
  %v2579 = vmul.f32 %v1217, %v2571
  %v2580 = vmul.f32 %v1218, %v2572
  %v2581 = vmul.f32 %v1219, %v2571
  %v2582 = vmul.f32 %v1220, %v2572
  %v2583 = vmul.f32 %v1221, %v2571
  %v2584 = vmul.f32 %v1222, %v2572
  %v2585 = vmul.f32 %v1223, %v2571
  %v2586 = vmul.f32 %v1224, %v2572
  %v2587 = vmul.f32 %v1225, %v2571
  %v2588 = vmul.f32 %v1226, %v2572
  %v2589 = vmul.f32 %v1227, %v2571
  %v2590 = vmul.f32 %v1228, %v2572
  %v2591 = vmul.f32 %v1229, %v2571
  %v2592 = vmul.f32 %v1230, %v2572
  %v2593 = vmul.f32 %v1231, %v2571
  %v2594 = vmul.f32 %v1232, %v2572
  %v2595 = vmul.f32 %v1233, %v2571
  %v2596 = vmul.f32 %v1234, %v2572
  %v2597 = vmul.f32 %v1235, %v2571
  %v2598 = vmul.f32 %v1236, %v2572
  %v2599 = vmul.f32 %v1237, %v2571
  %v2600 = vmul.f32 %v1238, %v2572
  %v2601 = vmul.f32 %v1239, %v2571
  %v2602 = vmul.f32 %v1240, %v2572
  %v2603 = vmul.f32 %v1241, %v2571
  %v2604 = vmul.f32 %v1242, %v2572
  %v2605 = vmul.f32 %v1243, %v2571
  %v2606 = vmul.f32 %v1244, %v2572
  %v2607 = vmul.f32 %v1245, %v2571
  %v2608 = vmul.f32 %v1246, %v2572
  %v2609 = vmul.f32 %v1247, %v2571
  %v2610 = vmul.f32 %v1248, %v2572
  %v2611 = vmul.f32 %v1249, %v2571
  %v2612 = vmul.f32 %v1250, %v2572
  %v2613 = vmul.f32 %v1251, %v2571
  %v2614 = vmul.f32 %v1252, %v2572
  %v2615 = vmul.f32 %v1253, %v2571
  %v2616 = vmul.f32 %v1254, %v2572
  %v2617 = vmul.f32 %v1255, %v2571
  %v2618 = vmul.f32 %v1256, %v2572
  %v2619 = vmul.f32 %v1257, %v2571
  %v2620 = vmul.f32 %v1258, %v2572
  %v2621 = vmul.f32 %v1259, %v2571
  %v2622 = vmul.f32 %v1260, %v2572
  %v2623 = vmul.f32 %v1261, %v2571
  %v2624 = vmul.f32 %v1262, %v2572
  %v2625 = vmul.f32 %v1263, %v2571
  %v2626 = vmul.f32 %v1264, %v2572
  %v2627 = vmul.f32 %v2564, %v2571
  %v2628 = vmul.f32 %v2565, %v2572
  %v2629 = vmul.f32 %v2566, %v2571
  %v2630 = vmul.f32 %v2567, %v2572
  %v2631 = vadd.f32 %v2508, %v2575
  %v2632 = vadd.f32 %v2509, %v2576
  %v2633 = vadd.f32 %v2510, %v2577
  %v2634 = vadd.f32 %v2511, %v2578
  %v2635 = vadd.f32 %v2512, %v2579
  %v2636 = vadd.f32 %v2513, %v2580
  %v2637 = vadd.f32 %v2514, %v2581
  %v2638 = vadd.f32 %v2515, %v2582
  %v2639 = vadd.f32 %v2516, %v2583
  %v2640 = vadd.f32 %v2517, %v2584
  %v2641 = vadd.f32 %v2518, %v2585
  %v2642 = vadd.f32 %v2519, %v2586
  %v2643 = vadd.f32 %v2520, %v2587
  %v2644 = vadd.f32 %v2521, %v2588
  %v2645 = vadd.f32 %v2522, %v2589
  %v2646 = vadd.f32 %v2523, %v2590
  %v2647 = vadd.f32 %v2524, %v2591
  %v2648 = vadd.f32 %v2525, %v2592
  %v2649 = vadd.f32 %v2526, %v2593
  %v2650 = vadd.f32 %v2527, %v2594
  %v2651 = vadd.f32 %v2528, %v2595
  %v2652 = vadd.f32 %v2529, %v2596
  %v2653 = vadd.f32 %v2530, %v2597
  %v2654 = vadd.f32 %v2531, %v2598
  %v2655 = vadd.f32 %v2532, %v2599
  %v2656 = vadd.f32 %v2533, %v2600
  %v2657 = vadd.f32 %v2534, %v2601
  %v2658 = vadd.f32 %v2535, %v2602
  %v2659 = vadd.f32 %v2536, %v2603
  %v2660 = vadd.f32 %v2537, %v2604
  %v2661 = vadd.f32 %v2538, %v2605
  %v2662 = vadd.f32 %v2539, %v2606
  %v2663 = vadd.f32 %v2540, %v2607
  %v2664 = vadd.f32 %v2541, %v2608
  %v2665 = vadd.f32 %v2542, %v2609
  %v2666 = vadd.f32 %v2543, %v2610
  %v2667 = vadd.f32 %v2544, %v2611
  %v2668 = vadd.f32 %v2545, %v2612
  %v2669 = vadd.f32 %v2546, %v2613
  %v2670 = vadd.f32 %v2547, %v2614
  %v2671 = vadd.f32 %v2548, %v2615
  %v2672 = vadd.f32 %v2549, %v2616
  %v2673 = vadd.f32 %v2550, %v2617
  %v2674 = vadd.f32 %v2551, %v2618
  %v2675 = vadd.f32 %v2552, %v2619
  %v2676 = vadd.f32 %v2553, %v2620
  %v2677 = vadd.f32 %v2554, %v2621
  %v2678 = vadd.f32 %v2555, %v2622
  %v2679 = vadd.f32 %v2556, %v2623
  %v2680 = vadd.f32 %v2557, %v2624
  %v2681 = vadd.f32 %v2558, %v2625
  %v2682 = vadd.f32 %v2559, %v2626
  %v2683 = vadd.f32 %v2560, %v2627
  %v2684 = vadd.f32 %v2561, %v2628
  %v2685 = vadd.f32 %v2562, %v2629
  %v2686 = vadd.f32 %v2563, %v2630
  %v2687 = vld [vmem:[#allocation2 + $0x20] sm:$0xfe]
  %v2688 = vld [vmem:[#allocation2 + $0x28] sm:$0xfe]
  %v2689 = vld [vmem:[#allocation2 + $0x1e0] sm:$0x1]
  %v2690 = vld [vmem:[#allocation2 + $0x1e8] sm:$0x1]
  %s2691 = scalar_lea.vmem %s2, 16
  %v2692 = vld [vmem:[%s2691] ss:$8 sm:$0x3]
  %v2694 = vperm.slane %v2692, 0
  %v2695 = vperm.slane %v2692, 1
  %v2698 = vmul.f32 %v2687, %v2694
  %v2699 = vmul.f32 %v2688, %v2695
  %v2700 = vmul.f32 %v1097, %v2694
  %v2701 = vmul.f32 %v1098, %v2695
  %v2702 = vmul.f32 %v1099, %v2694
  %v2703 = vmul.f32 %v1100, %v2695
  %v2704 = vmul.f32 %v1101, %v2694
  %v2705 = vmul.f32 %v1102, %v2695
  %v2706 = vmul.f32 %v1103, %v2694
  %v2707 = vmul.f32 %v1104, %v2695
  %v2708 = vmul.f32 %v1105, %v2694
  %v2709 = vmul.f32 %v1106, %v2695
  %v2710 = vmul.f32 %v1107, %v2694
  %v2711 = vmul.f32 %v1108, %v2695
  %v2712 = vmul.f32 %v1109, %v2694
  %v2713 = vmul.f32 %v1110, %v2695
  %v2714 = vmul.f32 %v1111, %v2694
  %v2715 = vmul.f32 %v1112, %v2695
  %v2716 = vmul.f32 %v1113, %v2694
  %v2717 = vmul.f32 %v1114, %v2695
  %v2718 = vmul.f32 %v1115, %v2694
  %v2719 = vmul.f32 %v1116, %v2695
  %v2720 = vmul.f32 %v1117, %v2694
  %v2721 = vmul.f32 %v1118, %v2695
  %v2722 = vmul.f32 %v1119, %v2694
  %v2723 = vmul.f32 %v1120, %v2695
  %v2724 = vmul.f32 %v1121, %v2694
  %v2725 = vmul.f32 %v1122, %v2695
  %v2726 = vmul.f32 %v1123, %v2694
  %v2727 = vmul.f32 %v1124, %v2695
  %v2728 = vmul.f32 %v1125, %v2694
  %v2729 = vmul.f32 %v1126, %v2695
  %v2730 = vmul.f32 %v1127, %v2694
  %v2731 = vmul.f32 %v1128, %v2695
  %v2732 = vmul.f32 %v1129, %v2694
  %v2733 = vmul.f32 %v1130, %v2695
  %v2734 = vmul.f32 %v1131, %v2694
  %v2735 = vmul.f32 %v1132, %v2695
  %v2736 = vmul.f32 %v1133, %v2694
  %v2737 = vmul.f32 %v1134, %v2695
  %v2738 = vmul.f32 %v1135, %v2694
  %v2739 = vmul.f32 %v1136, %v2695
  %v2740 = vmul.f32 %v1137, %v2694
  %v2741 = vmul.f32 %v1138, %v2695
  %v2742 = vmul.f32 %v1139, %v2694
  %v2743 = vmul.f32 %v1140, %v2695
  %v2744 = vmul.f32 %v1141, %v2694
  %v2745 = vmul.f32 %v1142, %v2695
  %v2746 = vmul.f32 %v1143, %v2694
  %v2747 = vmul.f32 %v1144, %v2695
  %v2748 = vmul.f32 %v1145, %v2694
  %v2749 = vmul.f32 %v1146, %v2695
  %v2750 = vmul.f32 %v2441, %v2694
  %v2751 = vmul.f32 %v2442, %v2695
  %v2752 = vmul.f32 %v2443, %v2694
  %v2753 = vmul.f32 %v2444, %v2695
  %v2754 = vmul.f32 %v2689, %v2694
  %v2755 = vmul.f32 %v2690, %v2695
  %v2814 = vrot.slane %v2698, 1
  %v2815 = vrot.slane %v2700, 1
  %v2816 = vsel %vm1511, %v2814, %v2815
  %v2817 = vrot.slane %v2699, 1
  %v2818 = vrot.slane %v2701, 1
  %v2819 = vsel %vm1511, %v2817, %v2818
  %v2820 = vrot.slane %v2702, 1
  %v2821 = vsel %vm1511, %v2815, %v2820
  %v2822 = vrot.slane %v2703, 1
  %v2823 = vsel %vm1511, %v2818, %v2822
  %v2824 = vrot.slane %v2704, 1
  %v2825 = vsel %vm1511, %v2820, %v2824
  %v2826 = vrot.slane %v2705, 1
  %v2827 = vsel %vm1511, %v2822, %v2826
  %v2828 = vrot.slane %v2706, 1
  %v2829 = vsel %vm1511, %v2824, %v2828
  %v2830 = vrot.slane %v2707, 1
  %v2831 = vsel %vm1511, %v2826, %v2830
  %v2832 = vrot.slane %v2708, 1
  %v2833 = vsel %vm1511, %v2828, %v2832
  %v2834 = vrot.slane %v2709, 1
  %v2835 = vsel %vm1511, %v2830, %v2834
  %v2836 = vrot.slane %v2710, 1
  %v2837 = vsel %vm1511, %v2832, %v2836
  %v2838 = vrot.slane %v2711, 1
  %v2839 = vsel %vm1511, %v2834, %v2838
  %v2840 = vrot.slane %v2712, 1
  %v2841 = vsel %vm1511, %v2836, %v2840
  %v2842 = vrot.slane %v2713, 1
  %v2843 = vsel %vm1511, %v2838, %v2842
  %v2844 = vrot.slane %v2714, 1
  %v2845 = vsel %vm1511, %v2840, %v2844
  %v2846 = vrot.slane %v2715, 1
  %v2847 = vsel %vm1511, %v2842, %v2846
  %v2848 = vrot.slane %v2716, 1
  %v2849 = vsel %vm1511, %v2844, %v2848
  %v2850 = vrot.slane %v2717, 1
  %v2851 = vsel %vm1511, %v2846, %v2850
  %v2852 = vrot.slane %v2718, 1
  %v2853 = vsel %vm1511, %v2848, %v2852
  %v2854 = vrot.slane %v2719, 1
  %v2855 = vsel %vm1511, %v2850, %v2854
  %v2856 = vrot.slane %v2720, 1
  %v2857 = vsel %vm1511, %v2852, %v2856
  %v2858 = vrot.slane %v2721, 1
  %v2859 = vsel %vm1511, %v2854, %v2858
  %v2860 = vrot.slane %v2722, 1
  %v2861 = vsel %vm1511, %v2856, %v2860
  %v2862 = vrot.slane %v2723, 1
  %v2863 = vsel %vm1511, %v2858, %v2862
  %v2864 = vrot.slane %v2724, 1
  %v2865 = vsel %vm1511, %v2860, %v2864
  %v2866 = vrot.slane %v2725, 1
  %v2867 = vsel %vm1511, %v2862, %v2866
  %v2868 = vrot.slane %v2726, 1
  %v2869 = vsel %vm1511, %v2864, %v2868
  %v2870 = vrot.slane %v2727, 1
  %v2871 = vsel %vm1511, %v2866, %v2870
  %v2872 = vrot.slane %v2728, 1
  %v2873 = vsel %vm1511, %v2868, %v2872
  %v2874 = vrot.slane %v2729, 1
  %v2875 = vsel %vm1511, %v2870, %v2874
  %v2876 = vrot.slane %v2730, 1
  %v2877 = vsel %vm1511, %v2872, %v2876
  %v2878 = vrot.slane %v2731, 1
  %v2879 = vsel %vm1511, %v2874, %v2878
  %v2880 = vrot.slane %v2732, 1
  %v2881 = vsel %vm1511, %v2876, %v2880
  %v2882 = vrot.slane %v2733, 1
  %v2883 = vsel %vm1511, %v2878, %v2882
  %v2884 = vrot.slane %v2734, 1
  %v2885 = vsel %vm1511, %v2880, %v2884
  %v2886 = vrot.slane %v2735, 1
  %v2887 = vsel %vm1511, %v2882, %v2886
  %v2888 = vrot.slane %v2736, 1
  %v2889 = vsel %vm1511, %v2884, %v2888
  %v2890 = vrot.slane %v2737, 1
  %v2891 = vsel %vm1511, %v2886, %v2890
  %v2892 = vrot.slane %v2738, 1
  %v2893 = vsel %vm1511, %v2888, %v2892
  %v2894 = vrot.slane %v2739, 1
  %v2895 = vsel %vm1511, %v2890, %v2894
  %v2896 = vrot.slane %v2740, 1
  %v2897 = vsel %vm1511, %v2892, %v2896
  %v2898 = vrot.slane %v2741, 1
  %v2899 = vsel %vm1511, %v2894, %v2898
  %v2900 = vrot.slane %v2742, 1
  %v2901 = vsel %vm1511, %v2896, %v2900
  %v2902 = vrot.slane %v2743, 1
  %v2903 = vsel %vm1511, %v2898, %v2902
  %v2904 = vrot.slane %v2744, 1
  %v2905 = vsel %vm1511, %v2900, %v2904
  %v2906 = vrot.slane %v2745, 1
  %v2907 = vsel %vm1511, %v2902, %v2906
  %v2908 = vrot.slane %v2746, 1
  %v2909 = vsel %vm1511, %v2904, %v2908
  %v2910 = vrot.slane %v2747, 1
  %v2911 = vsel %vm1511, %v2906, %v2910
  %v2912 = vrot.slane %v2748, 1
  %v2913 = vsel %vm1511, %v2908, %v2912
  %v2914 = vrot.slane %v2749, 1
  %v2915 = vsel %vm1511, %v2910, %v2914
  %v2916 = vrot.slane %v2750, 1
  %v2917 = vsel %vm1511, %v2912, %v2916
  %v2918 = vrot.slane %v2751, 1
  %v2919 = vsel %vm1511, %v2914, %v2918
  %v2920 = vrot.slane %v2752, 1
  %v2921 = vsel %vm1511, %v2916, %v2920
  %v2922 = vrot.slane %v2753, 1
  %v2923 = vsel %vm1511, %v2918, %v2922
  %v2924 = vrot.slane %v2754, 1
  %v2925 = vsel %vm1511, %v2920, %v2924
  %v2926 = vrot.slane %v2755, 1
  %v2927 = vsel %vm1511, %v2922, %v2926
  %v2984 = vadd.f32 %v2631, %v2816
  %v2985 = vadd.f32 %v2632, %v2819
  %v2986 = vadd.f32 %v2633, %v2821
  %v2987 = vadd.f32 %v2634, %v2823
  %v2988 = vadd.f32 %v2635, %v2825
  %v2989 = vadd.f32 %v2636, %v2827
  %v2990 = vadd.f32 %v2637, %v2829
  %v2991 = vadd.f32 %v2638, %v2831
  %v2992 = vadd.f32 %v2639, %v2833
  %v2993 = vadd.f32 %v2640, %v2835
  %v2994 = vadd.f32 %v2641, %v2837
  %v2995 = vadd.f32 %v2642, %v2839
  %v2996 = vadd.f32 %v2643, %v2841
  %v2997 = vadd.f32 %v2644, %v2843
  %v2998 = vadd.f32 %v2645, %v2845
  %v2999 = vadd.f32 %v2646, %v2847
  %v3000 = vadd.f32 %v2647, %v2849
  %v3001 = vadd.f32 %v2648, %v2851
  %v3002 = vadd.f32 %v2649, %v2853
  %v3003 = vadd.f32 %v2650, %v2855
  %v3004 = vadd.f32 %v2651, %v2857
  %v3005 = vadd.f32 %v2652, %v2859
  %v3006 = vadd.f32 %v2653, %v2861
  %v3007 = vadd.f32 %v2654, %v2863
  %v3008 = vadd.f32 %v2655, %v2865
  %v3009 = vadd.f32 %v2656, %v2867
  %v3010 = vadd.f32 %v2657, %v2869
  %v3011 = vadd.f32 %v2658, %v2871
  %v3012 = vadd.f32 %v2659, %v2873
  %v3013 = vadd.f32 %v2660, %v2875
  %v3014 = vadd.f32 %v2661, %v2877
  %v3015 = vadd.f32 %v2662, %v2879
  %v3016 = vadd.f32 %v2663, %v2881
  %v3017 = vadd.f32 %v2664, %v2883
  %v3018 = vadd.f32 %v2665, %v2885
  %v3019 = vadd.f32 %v2666, %v2887
  %v3020 = vadd.f32 %v2667, %v2889
  %v3021 = vadd.f32 %v2668, %v2891
  %v3022 = vadd.f32 %v2669, %v2893
  %v3023 = vadd.f32 %v2670, %v2895
  %v3024 = vadd.f32 %v2671, %v2897
  %v3025 = vadd.f32 %v2672, %v2899
  %v3026 = vadd.f32 %v2673, %v2901
  %v3027 = vadd.f32 %v2674, %v2903
  %v3028 = vadd.f32 %v2675, %v2905
  %v3029 = vadd.f32 %v2676, %v2907
  %v3030 = vadd.f32 %v2677, %v2909
  %v3031 = vadd.f32 %v2678, %v2911
  %v3032 = vadd.f32 %v2679, %v2913
  %v3033 = vadd.f32 %v2680, %v2915
  %v3034 = vadd.f32 %v2681, %v2917
  %v3035 = vadd.f32 %v2682, %v2919
  %v3036 = vadd.f32 %v2683, %v2921
  %v3037 = vadd.f32 %v2684, %v2923
  %v3038 = vadd.f32 %v2685, %v2925
  %v3039 = vadd.f32 %v2686, %v2927
  %3041 = vset.pattern.permute.xlu0 0
  %3042 = vperm.xlu0 %3041, %v1063
  %v3043 = vpop.permute.xlu0 %3042
  %3046 = vset.pattern.permute.xlu0 0
  %3047 = vperm.xlu0 %3046, %v1064
  %v3048 = vpop.permute.xlu0 %3047
  %3051 = vset.pattern.permute.xlu0 0
  %3052 = vperm.xlu0 %3051, %v1065
  %v3053 = vpop.permute.xlu0 %3052
  %3056 = vset.pattern.permute.xlu0 0
  %3057 = vperm.xlu0 %3056, %v1066
  %v3058 = vpop.permute.xlu0 %3057
  %3061 = vset.pattern.permute.xlu0 0
  %3062 = vperm.xlu0 %3061, %v1067
  %v3063 = vpop.permute.xlu0 %3062
  %3066 = vset.pattern.permute.xlu0 0
  %3067 = vperm.xlu0 %3066, %v1068
  %v3068 = vpop.permute.xlu0 %3067
  %3071 = vset.pattern.permute.xlu0 0
  %3072 = vperm.xlu0 %3071, %v1069
  %v3073 = vpop.permute.xlu0 %3072
  %3076 = vset.pattern.permute.xlu0 0
  %3077 = vperm.xlu0 %3076, %v1070
  %v3078 = vpop.permute.xlu0 %3077
  %3081 = vset.pattern.permute.xlu0 0
  %3082 = vperm.xlu0 %3081, %v1071
  %v3083 = vpop.permute.xlu0 %3082
  %3086 = vset.pattern.permute.xlu0 0
  %3087 = vperm.xlu0 %3086, %v1072
  %v3088 = vpop.permute.xlu0 %3087
  %3091 = vset.pattern.permute.xlu0 0
  %3092 = vperm.xlu0 %3091, %v1073
  %v3093 = vpop.permute.xlu0 %3092
  %3096 = vset.pattern.permute.xlu0 0
  %3097 = vperm.xlu0 %3096, %v1074
  %v3098 = vpop.permute.xlu0 %3097
  %3101 = vset.pattern.permute.xlu0 0
  %3102 = vperm.xlu0 %3101, %v1075
  %v3103 = vpop.permute.xlu0 %3102
  %3106 = vset.pattern.permute.xlu0 0
  %3107 = vperm.xlu0 %3106, %v1076
  %v3108 = vpop.permute.xlu0 %3107
  %3111 = vset.pattern.permute.xlu0 0
  %3112 = vperm.xlu0 %3111, %v1077
  %v3113 = vpop.permute.xlu0 %3112
  %3116 = vset.pattern.permute.xlu0 0
  %3117 = vperm.xlu0 %3116, %v1078
  %v3118 = vpop.permute.xlu0 %3117
  %3121 = vset.pattern.permute.xlu0 0
  %3122 = vperm.xlu0 %3121, %v1079
  %v3123 = vpop.permute.xlu0 %3122
  %3126 = vset.pattern.permute.xlu0 0
  %3127 = vperm.xlu0 %3126, %v1080
  %v3128 = vpop.permute.xlu0 %3127
  %3131 = vset.pattern.permute.xlu0 0
  %3132 = vperm.xlu0 %3131, %v1081
  %v3133 = vpop.permute.xlu0 %3132
  %3136 = vset.pattern.permute.xlu0 0
  %3137 = vperm.xlu0 %3136, %v1082
  %v3138 = vpop.permute.xlu0 %3137
  %3141 = vset.pattern.permute.xlu0 0
  %3142 = vperm.xlu0 %3141, %v1083
  %v3143 = vpop.permute.xlu0 %3142
  %3146 = vset.pattern.permute.xlu0 0
  %3147 = vperm.xlu0 %3146, %v1084
  %v3148 = vpop.permute.xlu0 %3147
  %3151 = vset.pattern.permute.xlu0 0
  %3152 = vperm.xlu0 %3151, %v1085
  %v3153 = vpop.permute.xlu0 %3152
  %3156 = vset.pattern.permute.xlu0 0
  %3157 = vperm.xlu0 %3156, %v1086
  %v3158 = vpop.permute.xlu0 %3157
  %3161 = vset.pattern.permute.xlu0 0
  %3162 = vperm.xlu0 %3161, %v1087
  %v3163 = vpop.permute.xlu0 %3162
  %3166 = vset.pattern.permute.xlu0 0
  %3167 = vperm.xlu0 %3166, %v1088
  %v3168 = vpop.permute.xlu0 %3167
  %3171 = vset.pattern.permute.xlu0 0
  %3172 = vperm.xlu0 %3171, %v1089
  %v3173 = vpop.permute.xlu0 %3172
  %3176 = vset.pattern.permute.xlu0 0
  %3177 = vperm.xlu0 %3176, %v1090
  %v3178 = vpop.permute.xlu0 %3177
  %v3180 = vmul.f32 %v2984, %v3043
  %v3181 = vmul.f32 %v2985, %v3043
  %v3182 = vmul.f32 %v2986, %v3048
  %v3183 = vmul.f32 %v2987, %v3048
  %v3184 = vmul.f32 %v2988, %v3053
  %v3185 = vmul.f32 %v2989, %v3053
  %v3186 = vmul.f32 %v2990, %v3058
  %v3187 = vmul.f32 %v2991, %v3058
  %v3188 = vmul.f32 %v2992, %v3063
  %v3189 = vmul.f32 %v2993, %v3063
  %v3190 = vmul.f32 %v2994, %v3068
  %v3191 = vmul.f32 %v2995, %v3068
  %v3192 = vmul.f32 %v2996, %v3073
  %v3193 = vmul.f32 %v2997, %v3073
  %v3194 = vmul.f32 %v2998, %v3078
  %v3195 = vmul.f32 %v2999, %v3078
  %v3196 = vmul.f32 %v3000, %v3083
  %v3197 = vmul.f32 %v3001, %v3083
  %v3198 = vmul.f32 %v3002, %v3088
  %v3199 = vmul.f32 %v3003, %v3088
  %v3200 = vmul.f32 %v3004, %v3093
  %v3201 = vmul.f32 %v3005, %v3093
  %v3202 = vmul.f32 %v3006, %v3098
  %v3203 = vmul.f32 %v3007, %v3098
  %v3204 = vmul.f32 %v3008, %v3103
  %v3205 = vmul.f32 %v3009, %v3103
  %v3206 = vmul.f32 %v3010, %v3108
  %v3207 = vmul.f32 %v3011, %v3108
  %v3208 = vmul.f32 %v3012, %v3113
  %v3209 = vmul.f32 %v3013, %v3113
  %v3210 = vmul.f32 %v3014, %v3118
  %v3211 = vmul.f32 %v3015, %v3118
  %v3212 = vmul.f32 %v3016, %v3123
  %v3213 = vmul.f32 %v3017, %v3123
  %v3214 = vmul.f32 %v3018, %v3128
  %v3215 = vmul.f32 %v3019, %v3128
  %v3216 = vmul.f32 %v3020, %v3133
  %v3217 = vmul.f32 %v3021, %v3133
  %v3218 = vmul.f32 %v3022, %v3138
  %v3219 = vmul.f32 %v3023, %v3138
  %v3220 = vmul.f32 %v3024, %v3143
  %v3221 = vmul.f32 %v3025, %v3143
  %v3222 = vmul.f32 %v3026, %v3148
  %v3223 = vmul.f32 %v3027, %v3148
  %v3224 = vmul.f32 %v3028, %v3153
  %v3225 = vmul.f32 %v3029, %v3153
  %v3226 = vmul.f32 %v3030, %v3158
  %v3227 = vmul.f32 %v3031, %v3158
  %v3228 = vmul.f32 %v3032, %v3163
  %v3229 = vmul.f32 %v3033, %v3163
  %v3230 = vmul.f32 %v3034, %v3168
  %v3231 = vmul.f32 %v3035, %v3168
  %v3232 = vmul.f32 %v3036, %v3173
  %v3233 = vmul.f32 %v3037, %v3173
  %v3234 = vmul.f32 %v3038, %v3178
  %v3235 = vmul.f32 %v3039, %v3178
  %v3236 = vadd.f32 %v3180, %v3182
  %v3237 = vadd.f32 %v3236, %v3184
  %v3238 = vadd.f32 %v3237, %v3186
  %v3239 = vadd.f32 %v3238, %v3188
  %v3240 = vadd.f32 %v3239, %v3190
  %v3241 = vadd.f32 %v3240, %v3192
  %v3242 = vadd.f32 %v3241, %v3194
  %v3243 = vadd.f32 %v3242, %v3196
  %v3244 = vadd.f32 %v3243, %v3198
  %v3245 = vadd.f32 %v3244, %v3200
  %v3246 = vadd.f32 %v3245, %v3202
  %v3247 = vadd.f32 %v3246, %v3204
  %v3248 = vadd.f32 %v3247, %v3206
  %v3249 = vadd.f32 %v3248, %v3208
  %v3250 = vadd.f32 %v3249, %v3210
  %v3251 = vadd.f32 %v3250, %v3212
  %v3252 = vadd.f32 %v3251, %v3214
  %v3253 = vadd.f32 %v3252, %v3216
  %v3254 = vadd.f32 %v3253, %v3218
  %v3255 = vadd.f32 %v3254, %v3220
  %v3256 = vadd.f32 %v3255, %v3222
  %v3257 = vadd.f32 %v3256, %v3224
  %v3258 = vadd.f32 %v3257, %v3226
  %v3259 = vadd.f32 %v3258, %v3228
  %v3260 = vadd.f32 %v3259, %v3230
  %v3261 = vadd.f32 %v3260, %v3232
  %v3262 = vadd.f32 %v3261, %v3234
  %v3263 = vrot.slane %v3262, 4
  %v3264 = vadd.f32 %v3262, %v3263
  %v3265 = vrot.slane %v3264, 2
  %v3266 = vadd.f32 %v3264, %v3265
  %v3267 = vrot.slane %v3266, 1
  %v3268 = vadd.f32 %v3266, %v3267
  %v3269 = vsel %vm225, %v3181, 0.0
  %v3270 = vsel %vm225, %v3183, 0.0
  %v3271 = vadd.f32 %v3269, %v3270
  %v3272 = vsel %vm225, %v3185, 0.0
  %v3273 = vadd.f32 %v3271, %v3272
  %v3274 = vsel %vm225, %v3187, 0.0
  %v3275 = vadd.f32 %v3273, %v3274
  %v3276 = vsel %vm225, %v3189, 0.0
  %v3277 = vadd.f32 %v3275, %v3276
  %v3278 = vsel %vm225, %v3191, 0.0
  %v3279 = vadd.f32 %v3277, %v3278
  %v3280 = vsel %vm225, %v3193, 0.0
  %v3281 = vadd.f32 %v3279, %v3280
  %v3282 = vsel %vm225, %v3195, 0.0
  %v3283 = vadd.f32 %v3281, %v3282
  %v3284 = vsel %vm225, %v3197, 0.0
  %v3285 = vadd.f32 %v3283, %v3284
  %v3286 = vsel %vm225, %v3199, 0.0
  %v3287 = vadd.f32 %v3285, %v3286
  %v3288 = vsel %vm225, %v3201, 0.0
  %v3289 = vadd.f32 %v3287, %v3288
  %v3290 = vsel %vm225, %v3203, 0.0
  %v3291 = vadd.f32 %v3289, %v3290
  %v3292 = vsel %vm225, %v3205, 0.0
  %v3293 = vadd.f32 %v3291, %v3292
  %v3294 = vsel %vm225, %v3207, 0.0
  %v3295 = vadd.f32 %v3293, %v3294
  %v3296 = vsel %vm225, %v3209, 0.0
  %v3297 = vadd.f32 %v3295, %v3296
  %v3298 = vsel %vm225, %v3211, 0.0
  %v3299 = vadd.f32 %v3297, %v3298
  %v3300 = vsel %vm225, %v3213, 0.0
  %v3301 = vadd.f32 %v3299, %v3300
  %v3302 = vsel %vm225, %v3215, 0.0
  %v3303 = vadd.f32 %v3301, %v3302
  %v3304 = vsel %vm225, %v3217, 0.0
  %v3305 = vadd.f32 %v3303, %v3304
  %v3306 = vsel %vm225, %v3219, 0.0
  %v3307 = vadd.f32 %v3305, %v3306
  %v3308 = vsel %vm225, %v3221, 0.0
  %v3309 = vadd.f32 %v3307, %v3308
  %v3310 = vsel %vm225, %v3223, 0.0
  %v3311 = vadd.f32 %v3309, %v3310
  %v3312 = vsel %vm225, %v3225, 0.0
  %v3313 = vadd.f32 %v3311, %v3312
  %v3314 = vsel %vm225, %v3227, 0.0
  %v3315 = vadd.f32 %v3313, %v3314
  %v3316 = vsel %vm225, %v3229, 0.0
  %v3317 = vadd.f32 %v3315, %v3316
  %v3318 = vsel %vm225, %v3231, 0.0
  %v3319 = vadd.f32 %v3317, %v3318
  %v3320 = vsel %vm225, %v3233, 0.0
  %v3321 = vadd.f32 %v3319, %v3320
  %v3322 = vsel %vm225, %v3235, 0.0
  %v3323 = vadd.f32 %v3321, %v3322
  %v3324 = vrot.slane %v3323, 4
  %v3325 = vadd.f32 %v3323, %v3324
  %v3326 = vrot.slane %v3325, 2
  %v3327 = vadd.f32 %v3325, %v3326
  %v3328 = vrot.slane %v3327, 1
  %v3329 = vadd.f32 %v3327, %v3328
  %v3330 = vmul.f32 %v3180, %v3180
  %v3331 = vmul.f32 %v3181, %v3181
  %v3332 = vmul.f32 %v3182, %v3182
  %v3333 = vmul.f32 %v3183, %v3183
  %v3334 = vmul.f32 %v3184, %v3184
  %v3335 = vmul.f32 %v3185, %v3185
  %v3336 = vmul.f32 %v3186, %v3186
  %v3337 = vmul.f32 %v3187, %v3187
  %v3338 = vmul.f32 %v3188, %v3188
  %v3339 = vmul.f32 %v3189, %v3189
  %v3340 = vmul.f32 %v3190, %v3190
  %v3341 = vmul.f32 %v3191, %v3191
  %v3342 = vmul.f32 %v3192, %v3192
  %v3343 = vmul.f32 %v3193, %v3193
  %v3344 = vmul.f32 %v3194, %v3194
  %v3345 = vmul.f32 %v3195, %v3195
  %v3346 = vmul.f32 %v3196, %v3196
  %v3347 = vmul.f32 %v3197, %v3197
  %v3348 = vmul.f32 %v3198, %v3198
  %v3349 = vmul.f32 %v3199, %v3199
  %v3350 = vmul.f32 %v3200, %v3200
  %v3351 = vmul.f32 %v3201, %v3201
  %v3352 = vmul.f32 %v3202, %v3202
  %v3353 = vmul.f32 %v3203, %v3203
  %v3354 = vmul.f32 %v3204, %v3204
  %v3355 = vmul.f32 %v3205, %v3205
  %v3356 = vmul.f32 %v3206, %v3206
  %v3357 = vmul.f32 %v3207, %v3207
  %v3358 = vmul.f32 %v3208, %v3208
  %v3359 = vmul.f32 %v3209, %v3209
  %v3360 = vmul.f32 %v3210, %v3210
  %v3361 = vmul.f32 %v3211, %v3211
  %v3362 = vmul.f32 %v3212, %v3212
  %v3363 = vmul.f32 %v3213, %v3213
  %v3364 = vmul.f32 %v3214, %v3214
  %v3365 = vmul.f32 %v3215, %v3215
  %v3366 = vmul.f32 %v3216, %v3216
  %v3367 = vmul.f32 %v3217, %v3217
  %v3368 = vmul.f32 %v3218, %v3218
  %v3369 = vmul.f32 %v3219, %v3219
  %v3370 = vmul.f32 %v3220, %v3220
  %v3371 = vmul.f32 %v3221, %v3221
  %v3372 = vmul.f32 %v3222, %v3222
  %v3373 = vmul.f32 %v3223, %v3223
  %v3374 = vmul.f32 %v3224, %v3224
  %v3375 = vmul.f32 %v3225, %v3225
  %v3376 = vmul.f32 %v3226, %v3226
  %v3377 = vmul.f32 %v3227, %v3227
  %v3378 = vmul.f32 %v3228, %v3228
  %v3379 = vmul.f32 %v3229, %v3229
  %v3380 = vmul.f32 %v3230, %v3230
  %v3381 = vmul.f32 %v3231, %v3231
  %v3382 = vmul.f32 %v3232, %v3232
  %v3383 = vmul.f32 %v3233, %v3233
  %v3384 = vmul.f32 %v3234, %v3234
  %v3385 = vmul.f32 %v3235, %v3235
  %v3386 = vadd.f32 %v3330, %v3332
  %v3387 = vadd.f32 %v3386, %v3334
  %v3388 = vadd.f32 %v3387, %v3336
  %v3389 = vadd.f32 %v3388, %v3338
  %v3390 = vadd.f32 %v3389, %v3340
  %v3391 = vadd.f32 %v3390, %v3342
  %v3392 = vadd.f32 %v3391, %v3344
  %v3393 = vadd.f32 %v3392, %v3346
  %v3394 = vadd.f32 %v3393, %v3348
  %v3395 = vadd.f32 %v3394, %v3350
  %v3396 = vadd.f32 %v3395, %v3352
  %v3397 = vadd.f32 %v3396, %v3354
  %v3398 = vadd.f32 %v3397, %v3356
  %v3399 = vadd.f32 %v3398, %v3358
  %v3400 = vadd.f32 %v3399, %v3360
  %v3401 = vadd.f32 %v3400, %v3362
  %v3402 = vadd.f32 %v3401, %v3364
  %v3403 = vadd.f32 %v3402, %v3366
  %v3404 = vadd.f32 %v3403, %v3368
  %v3405 = vadd.f32 %v3404, %v3370
  %v3406 = vadd.f32 %v3405, %v3372
  %v3407 = vadd.f32 %v3406, %v3374
  %v3408 = vadd.f32 %v3407, %v3376
  %v3409 = vadd.f32 %v3408, %v3378
  %v3410 = vadd.f32 %v3409, %v3380
  %v3411 = vadd.f32 %v3410, %v3382
  %v3412 = vadd.f32 %v3411, %v3384
  %v3413 = vrot.slane %v3412, 4
  %v3414 = vadd.f32 %v3412, %v3413
  %v3415 = vrot.slane %v3414, 2
  %v3416 = vadd.f32 %v3414, %v3415
  %v3417 = vrot.slane %v3416, 1
  %v3418 = vadd.f32 %v3416, %v3417
  %v3419 = vsel %vm225, %v3331, 0.0
  %v3420 = vsel %vm225, %v3333, 0.0
  %v3421 = vadd.f32 %v3419, %v3420
  %v3422 = vsel %vm225, %v3335, 0.0
  %v3423 = vadd.f32 %v3421, %v3422
  %v3424 = vsel %vm225, %v3337, 0.0
  %v3425 = vadd.f32 %v3423, %v3424
  %v3426 = vsel %vm225, %v3339, 0.0
  %v3427 = vadd.f32 %v3425, %v3426
  %v3428 = vsel %vm225, %v3341, 0.0
  %v3429 = vadd.f32 %v3427, %v3428
  %v3430 = vsel %vm225, %v3343, 0.0
  %v3431 = vadd.f32 %v3429, %v3430
  %v3432 = vsel %vm225, %v3345, 0.0
  %v3433 = vadd.f32 %v3431, %v3432
  %v3434 = vsel %vm225, %v3347, 0.0
  %v3435 = vadd.f32 %v3433, %v3434
  %v3436 = vsel %vm225, %v3349, 0.0
  %v3437 = vadd.f32 %v3435, %v3436
  %v3438 = vsel %vm225, %v3351, 0.0
  %v3439 = vadd.f32 %v3437, %v3438
  %v3440 = vsel %vm225, %v3353, 0.0
  %v3441 = vadd.f32 %v3439, %v3440
  %v3442 = vsel %vm225, %v3355, 0.0
  %v3443 = vadd.f32 %v3441, %v3442
  %v3444 = vsel %vm225, %v3357, 0.0
  %v3445 = vadd.f32 %v3443, %v3444
  %v3446 = vsel %vm225, %v3359, 0.0
  %v3447 = vadd.f32 %v3445, %v3446
  %v3448 = vsel %vm225, %v3361, 0.0
  %v3449 = vadd.f32 %v3447, %v3448
  %v3450 = vsel %vm225, %v3363, 0.0
  %v3451 = vadd.f32 %v3449, %v3450
  %v3452 = vsel %vm225, %v3365, 0.0
  %v3453 = vadd.f32 %v3451, %v3452
  %v3454 = vsel %vm225, %v3367, 0.0
  %v3455 = vadd.f32 %v3453, %v3454
  %v3456 = vsel %vm225, %v3369, 0.0
  %v3457 = vadd.f32 %v3455, %v3456
  %v3458 = vsel %vm225, %v3371, 0.0
  %v3459 = vadd.f32 %v3457, %v3458
  %v3460 = vsel %vm225, %v3373, 0.0
  %v3461 = vadd.f32 %v3459, %v3460
  %v3462 = vsel %vm225, %v3375, 0.0
  %v3463 = vadd.f32 %v3461, %v3462
  %v3464 = vsel %vm225, %v3377, 0.0
  %v3465 = vadd.f32 %v3463, %v3464
  %v3466 = vsel %vm225, %v3379, 0.0
  %v3467 = vadd.f32 %v3465, %v3466
  %v3468 = vsel %vm225, %v3381, 0.0
  %v3469 = vadd.f32 %v3467, %v3468
  %v3470 = vsel %vm225, %v3383, 0.0
  %v3471 = vadd.f32 %v3469, %v3470
  %v3472 = vsel %vm225, %v3385, 0.0
  %v3473 = vadd.f32 %v3471, %v3472
  %v3474 = vrot.slane %v3473, 4
  %v3475 = vadd.f32 %v3473, %v3474
  %v3476 = vrot.slane %v3475, 2
  %v3477 = vadd.f32 %v3475, %v3476
  %v3478 = vrot.slane %v3477, 1
  %v3479 = vadd.f32 %v3477, %v3478
  %v3480 = vmul.f32 %v3268, 0.0051020407
  %v3481 = vmul.f32 %v3329, 0.0051020407
  %v3482 = vmul.f32 %v3418, 0.0051020407
  %v3483 = vmul.f32 %v3479, 0.0051020407
  %v3484 = vmul.f32 %v3480, %v3480
  %v3485 = vmul.f32 %v3481, %v3481
  %v3486 = vsub.f32 %v3482, %v3484
  %v3487 = vsub.f32 %v3483, %v3485
  %v3488 = vmax.f32 %v3486, 0.0
  %v3489 = vmax.f32 %v3487, 0.0
  %v3490 = vld [vmem:[%s3] sm:$0x3]
  %v3491 = vadd.f32 %v3488, 1e-05
  %v3492 = vadd.f32 %v3489, 1e-05
  %v3493 = vrsqrt.pop %v3491
  %v3494 = vmul.f32 %v3493, %v3491
  %v3495 = vmul.f32 %v3494, %v3493
  %v3496 = vmul.f32 0.5, %v3495
  %v3497 = vsub.f32 1.5, %v3496
  %v3498 = vmul.f32 %v3493, %v3497
  %vm3499 = vweird.f32 %v3491
  %vm3500 = vweird.f32 %v3493
  %vm3501 = vmor %vm3499, %vm3500
  %v3502 = vsel %vm3501, %v3493, %v3498
  %v3503 = vrsqrt.pop %v3492
  %v3504 = vmul.f32 %v3503, %v3492
  %v3505 = vmul.f32 %v3504, %v3503
  %v3506 = vmul.f32 0.5, %v3505
  %v3507 = vsub.f32 1.5, %v3506
  %v3508 = vmul.f32 %v3503, %v3507
  %vm3509 = vweird.f32 %v3492
  %vm3510 = vweird.f32 %v3503
  %vm3511 = vmor %vm3509, %vm3510
  %v3512 = vsel %vm3511, %v3503, %v3508
  %v3515 = vrot.slane %v3512, 7
  %vm3516 = vcmask 1040384
  %v3517 = vsel %vm3516, %v3502, %v3515
  %v3519 = vmul.f32 %v3490, %v3517
  %v3521 = vperm.slane %v3519, 0
  %v3522 = vperm.slane %v3519, 1
  %v3525 = vmul.f32 %v3180, %v3521
  %v3526 = vmul.f32 %v3181, %v3522
  %v3527 = vmul.f32 %v3182, %v3521
  %v3528 = vmul.f32 %v3183, %v3522
  %v3529 = vmul.f32 %v3184, %v3521
  %v3530 = vmul.f32 %v3185, %v3522
  %v3531 = vmul.f32 %v3186, %v3521
  %v3532 = vmul.f32 %v3187, %v3522
  %v3533 = vmul.f32 %v3188, %v3521
  %v3534 = vmul.f32 %v3189, %v3522
  %v3535 = vmul.f32 %v3190, %v3521
  %v3536 = vmul.f32 %v3191, %v3522
  %v3537 = vmul.f32 %v3192, %v3521
  %v3538 = vmul.f32 %v3193, %v3522
  %v3539 = vmul.f32 %v3194, %v3521
  %v3540 = vmul.f32 %v3195, %v3522
  %v3541 = vmul.f32 %v3196, %v3521
  %v3542 = vmul.f32 %v3197, %v3522
  %v3543 = vmul.f32 %v3198, %v3521
  %v3544 = vmul.f32 %v3199, %v3522
  %v3545 = vmul.f32 %v3200, %v3521
  %v3546 = vmul.f32 %v3201, %v3522
  %v3547 = vmul.f32 %v3202, %v3521
  %v3548 = vmul.f32 %v3203, %v3522
  %v3549 = vmul.f32 %v3204, %v3521
  %v3550 = vmul.f32 %v3205, %v3522
  %v3551 = vmul.f32 %v3206, %v3521
  %v3552 = vmul.f32 %v3207, %v3522
  %v3553 = vmul.f32 %v3208, %v3521
  %v3554 = vmul.f32 %v3209, %v3522
  %v3555 = vmul.f32 %v3210, %v3521
  %v3556 = vmul.f32 %v3211, %v3522
  %v3557 = vmul.f32 %v3212, %v3521
  %v3558 = vmul.f32 %v3213, %v3522
  %v3559 = vmul.f32 %v3214, %v3521
  %v3560 = vmul.f32 %v3215, %v3522
  %v3561 = vmul.f32 %v3216, %v3521
  %v3562 = vmul.f32 %v3217, %v3522
  %v3563 = vmul.f32 %v3218, %v3521
  %v3564 = vmul.f32 %v3219, %v3522
  %v3565 = vmul.f32 %v3220, %v3521
  %v3566 = vmul.f32 %v3221, %v3522
  %v3567 = vmul.f32 %v3222, %v3521
  %v3568 = vmul.f32 %v3223, %v3522
  %v3569 = vmul.f32 %v3224, %v3521
  %v3570 = vmul.f32 %v3225, %v3522
  %v3571 = vmul.f32 %v3226, %v3521
  %v3572 = vmul.f32 %v3227, %v3522
  %v3573 = vmul.f32 %v3228, %v3521
  %v3574 = vmul.f32 %v3229, %v3522
  %v3575 = vmul.f32 %v3230, %v3521
  %v3576 = vmul.f32 %v3231, %v3522
  %v3577 = vmul.f32 %v3232, %v3521
  %v3578 = vmul.f32 %v3233, %v3522
  %v3579 = vmul.f32 %v3234, %v3521
  %v3580 = vmul.f32 %v3235, %v3522
  %v3581 = vld [vmem:[%s4] sm:$0x3]
  %v3582 = vmul.f32 %v3480, %v3521
  %v3583 = vmul.f32 %v3481, %v3522
  %v3586 = vrot.slane %v3583, 7
  %v3587 = vsel %vm3516, %v3582, %v3586
  %v3589 = vsub.f32 %v3581, %v3587
  %v3591 = vperm.slane %v3589, 0
  %v3592 = vperm.slane %v3589, 1
  %v3595 = vadd.f32 %v3525, %v3591
  %v3596 = vadd.f32 %v3526, %v3592
  %v3597 = vadd.f32 %v3527, %v3591
  %v3598 = vadd.f32 %v3528, %v3592
  %v3599 = vadd.f32 %v3529, %v3591
  %v3600 = vadd.f32 %v3530, %v3592
  %v3601 = vadd.f32 %v3531, %v3591
  %v3602 = vadd.f32 %v3532, %v3592
  %v3603 = vadd.f32 %v3533, %v3591
  %v3604 = vadd.f32 %v3534, %v3592
  %v3605 = vadd.f32 %v3535, %v3591
  %v3606 = vadd.f32 %v3536, %v3592
  %v3607 = vadd.f32 %v3537, %v3591
  %v3608 = vadd.f32 %v3538, %v3592
  %v3609 = vadd.f32 %v3539, %v3591
  %v3610 = vadd.f32 %v3540, %v3592
  %v3611 = vadd.f32 %v3541, %v3591
  %v3612 = vadd.f32 %v3542, %v3592
  %v3613 = vadd.f32 %v3543, %v3591
  %v3614 = vadd.f32 %v3544, %v3592
  %v3615 = vadd.f32 %v3545, %v3591
  %v3616 = vadd.f32 %v3546, %v3592
  %v3617 = vadd.f32 %v3547, %v3591
  %v3618 = vadd.f32 %v3548, %v3592
  %v3619 = vadd.f32 %v3549, %v3591
  %v3620 = vadd.f32 %v3550, %v3592
  %v3621 = vadd.f32 %v3551, %v3591
  %v3622 = vadd.f32 %v3552, %v3592
  %v3623 = vadd.f32 %v3553, %v3591
  %v3624 = vadd.f32 %v3554, %v3592
  %v3625 = vadd.f32 %v3555, %v3591
  %v3626 = vadd.f32 %v3556, %v3592
  %v3627 = vadd.f32 %v3557, %v3591
  %v3628 = vadd.f32 %v3558, %v3592
  %v3629 = vadd.f32 %v3559, %v3591
  %v3630 = vadd.f32 %v3560, %v3592
  %v3631 = vadd.f32 %v3561, %v3591
  %v3632 = vadd.f32 %v3562, %v3592
  %v3633 = vadd.f32 %v3563, %v3591
  %v3634 = vadd.f32 %v3564, %v3592
  %v3635 = vadd.f32 %v3565, %v3591
  %v3636 = vadd.f32 %v3566, %v3592
  %v3637 = vadd.f32 %v3567, %v3591
  %v3638 = vadd.f32 %v3568, %v3592
  %v3639 = vadd.f32 %v3569, %v3591
  %v3640 = vadd.f32 %v3570, %v3592
  %v3641 = vadd.f32 %v3571, %v3591
  %v3642 = vadd.f32 %v3572, %v3592
  %v3643 = vadd.f32 %v3573, %v3591
  %v3644 = vadd.f32 %v3574, %v3592
  %v3645 = vadd.f32 %v3575, %v3591
  %v3646 = vadd.f32 %v3576, %v3592
  %v3647 = vadd.f32 %v3577, %v3591
  %v3648 = vadd.f32 %v3578, %v3592
  %v3649 = vadd.f32 %v3579, %v3591
  %v3650 = vadd.f32 %v3580, %v3592
  %v3651 = vmax.f32 %v3595, 0.0
  %v3652 = vmax.f32 %v3596, 0.0
  %v3653 = vmax.f32 %v3597, 0.0
  %v3654 = vmax.f32 %v3598, 0.0
  %v3655 = vmax.f32 %v3599, 0.0
  %v3656 = vmax.f32 %v3600, 0.0
  %v3657 = vmax.f32 %v3601, 0.0
  %v3658 = vmax.f32 %v3602, 0.0
  %v3659 = vmax.f32 %v3603, 0.0
  %v3660 = vmax.f32 %v3604, 0.0
  %v3661 = vmax.f32 %v3605, 0.0
  %v3662 = vmax.f32 %v3606, 0.0
  %v3663 = vmax.f32 %v3607, 0.0
  %v3664 = vmax.f32 %v3608, 0.0
  %v3665 = vmax.f32 %v3609, 0.0
  %v3666 = vmax.f32 %v3610, 0.0
  %v3667 = vmax.f32 %v3611, 0.0
  %v3668 = vmax.f32 %v3612, 0.0
  %v3669 = vmax.f32 %v3613, 0.0
  %v3670 = vmax.f32 %v3614, 0.0
  %v3671 = vmax.f32 %v3615, 0.0
  %v3672 = vmax.f32 %v3616, 0.0
  %v3673 = vmax.f32 %v3617, 0.0
  %v3674 = vmax.f32 %v3618, 0.0
  %v3675 = vmax.f32 %v3619, 0.0
  %v3676 = vmax.f32 %v3620, 0.0
  %v3677 = vmax.f32 %v3621, 0.0
  %v3678 = vmax.f32 %v3622, 0.0
  %v3679 = vmax.f32 %v3623, 0.0
  %v3680 = vmax.f32 %v3624, 0.0
  %v3681 = vmax.f32 %v3625, 0.0
  %v3682 = vmax.f32 %v3626, 0.0
  %v3683 = vmax.f32 %v3627, 0.0
  %v3684 = vmax.f32 %v3628, 0.0
  %v3685 = vmax.f32 %v3629, 0.0
  %v3686 = vmax.f32 %v3630, 0.0
  %v3687 = vmax.f32 %v3631, 0.0
  %v3688 = vmax.f32 %v3632, 0.0
  %v3689 = vmax.f32 %v3633, 0.0
  %v3690 = vmax.f32 %v3634, 0.0
  %v3691 = vmax.f32 %v3635, 0.0
  %v3692 = vmax.f32 %v3636, 0.0
  %v3693 = vmax.f32 %v3637, 0.0
  %v3694 = vmax.f32 %v3638, 0.0
  %v3695 = vmax.f32 %v3639, 0.0
  %v3696 = vmax.f32 %v3640, 0.0
  %v3697 = vmax.f32 %v3641, 0.0
  %v3698 = vmax.f32 %v3642, 0.0
  %v3699 = vmax.f32 %v3643, 0.0
  %v3700 = vmax.f32 %v3644, 0.0
  %v3701 = vmax.f32 %v3645, 0.0
  %v3702 = vmax.f32 %v3646, 0.0
  %v3703 = vmax.f32 %v3647, 0.0
  %v3704 = vmax.f32 %v3648, 0.0
  %v3705 = vmax.f32 %v3649, 0.0
  %v3706 = vmax.f32 %v3650, 0.0
  %v3707 = vmin.f32 %v3651, 6.0
  %v3708 = vmin.f32 %v3652, 6.0
  %v3709 = vmin.f32 %v3653, 6.0
  %v3710 = vmin.f32 %v3654, 6.0
  %v3711 = vmin.f32 %v3655, 6.0
  %v3712 = vmin.f32 %v3656, 6.0
  %v3713 = vmin.f32 %v3657, 6.0
  %v3714 = vmin.f32 %v3658, 6.0
  %v3715 = vmin.f32 %v3659, 6.0
  %v3716 = vmin.f32 %v3660, 6.0
  %v3717 = vmin.f32 %v3661, 6.0
  %v3718 = vmin.f32 %v3662, 6.0
  %v3719 = vmin.f32 %v3663, 6.0
  %v3720 = vmin.f32 %v3664, 6.0
  %v3721 = vmin.f32 %v3665, 6.0
  %v3722 = vmin.f32 %v3666, 6.0
  %v3723 = vmin.f32 %v3667, 6.0
  %v3724 = vmin.f32 %v3668, 6.0
  %v3725 = vmin.f32 %v3669, 6.0
  %v3726 = vmin.f32 %v3670, 6.0
  %v3727 = vmin.f32 %v3671, 6.0
  %v3728 = vmin.f32 %v3672, 6.0
  %v3729 = vmin.f32 %v3673, 6.0
  %v3730 = vmin.f32 %v3674, 6.0
  %v3731 = vmin.f32 %v3675, 6.0
  %v3732 = vmin.f32 %v3676, 6.0
  %v3733 = vmin.f32 %v3677, 6.0
  %v3734 = vmin.f32 %v3678, 6.0
  %v3735 = vmin.f32 %v3679, 6.0
  %v3736 = vmin.f32 %v3680, 6.0
  %v3737 = vmin.f32 %v3681, 6.0
  %v3738 = vmin.f32 %v3682, 6.0
  %v3739 = vmin.f32 %v3683, 6.0
  %v3740 = vmin.f32 %v3684, 6.0
  %v3741 = vmin.f32 %v3685, 6.0
  %v3742 = vmin.f32 %v3686, 6.0
  %v3743 = vmin.f32 %v3687, 6.0
  %v3744 = vmin.f32 %v3688, 6.0
  %v3745 = vmin.f32 %v3689, 6.0
  %v3746 = vmin.f32 %v3690, 6.0
  %v3747 = vmin.f32 %v3691, 6.0
  %v3748 = vmin.f32 %v3692, 6.0
  %v3749 = vmin.f32 %v3693, 6.0
  %v3750 = vmin.f32 %v3694, 6.0
  %v3751 = vmin.f32 %v3695, 6.0
  %v3752 = vmin.f32 %v3696, 6.0
  %v3753 = vmin.f32 %v3697, 6.0
  %v3754 = vmin.f32 %v3698, 6.0
  %v3755 = vmin.f32 %v3699, 6.0
  %v3756 = vmin.f32 %v3700, 6.0
  %v3757 = vmin.f32 %v3701, 6.0
  %v3758 = vmin.f32 %v3702, 6.0
  %v3759 = vmin.f32 %v3703, 6.0
  %v3760 = vmin.f32 %v3704, 6.0
  %v3761 = vmin.f32 %v3705, 6.0
  %v3762 = vmin.f32 %v3706, 6.0
  %v3763 = vld [vmem:[%s5] sm:$0xff]
  %v3764 = vld [vmem:[%s5 + $0x8] sm:$0xff]
  %v3765 = vld [vmem:[%s5 + $0x10] sm:$0xff]
  %v3766 = vld [vmem:[%s5 + $0x18] sm:$0xff]
  %v3767 = vld [vmem:[%s5 + $0x20] sm:$0xff]
  %v3768 = vld [vmem:[%s5 + $0x28] sm:$0xff]
  %v3769 = vld [vmem:[%s5 + $0x30] sm:$0xff]
  %v3770 = vld [vmem:[%s5 + $0x38] sm:$0xff]
  %v3771 = vld [vmem:[%s5 + $0x40] sm:$0xff]
  %v3772 = vld [vmem:[%s5 + $0x48] sm:$0xff]
  %v3773 = vld [vmem:[%s5 + $0x50] sm:$0xff]
  %v3774 = vld [vmem:[%s5 + $0x58] sm:$0xff]
  %v3775 = vld [vmem:[%s5 + $0x60] sm:$0xff]
  %v3776 = vld [vmem:[%s5 + $0x68] sm:$0xff]
  %v3777 = vld [vmem:[%s5 + $0x70] sm:$0xff]
  %v3778 = vld [vmem:[%s5 + $0x78] sm:$0xff]
  %v3779 = vld [vmem:[%s5 + $0x80] sm:$0xff]
  %v3780 = vld [vmem:[%s5 + $0x88] sm:$0xff]
  %v3781 = vld [vmem:[%s5 + $0x90] sm:$0xff]
  %v3782 = vld [vmem:[%s5 + $0x98] sm:$0xff]
  %v3783 = vld [vmem:[%s5 + $0xa0] sm:$0xff]
  %v3784 = vld [vmem:[%s5 + $0xa8] sm:$0xff]
  %v3785 = vld [vmem:[%s5 + $0xb0] sm:$0xff]
  %v3786 = vld [vmem:[%s5 + $0xb8] sm:$0xff]
  %v3788 = vsel %vm225, %v3708, 0
  %v3791 = vsel %vm225, %v3710, 0
  %v3794 = vsel %vm225, %v3712, 0
  %v3797 = vsel %vm225, %v3714, 0
  %v3800 = vsel %vm225, %v3716, 0
  %v3803 = vsel %vm225, %v3718, 0
  %v3806 = vsel %vm225, %v3720, 0
  %v3809 = vsel %vm225, %v3722, 0
  %v3812 = vsel %vm225, %v3724, 0
  %v3815 = vsel %vm225, %v3726, 0
  %v3818 = vsel %vm225, %v3728, 0
  %v3821 = vsel %vm225, %v3730, 0
  %v3824 = vsel %vm225, %v3732, 0
  %v3827 = vsel %vm225, %v3734, 0
  %v3830 = vsel %vm225, %v3736, 0
  %v3833 = vsel %vm225, %v3738, 0
  %v3836 = vsel %vm225, %v3740, 0
  %v3839 = vsel %vm225, %v3742, 0
  %v3842 = vsel %vm225, %v3744, 0
  %v3845 = vsel %vm225, %v3746, 0
  %v3848 = vsel %vm225, %v3748, 0
  %v3851 = vsel %vm225, %v3750, 0
  %v3854 = vsel %vm225, %v3752, 0
  %v3857 = vsel %vm225, %v3754, 0
  %v3860 = vsel %vm225, %v3756, 0
  %v3863 = vsel %vm225, %v3758, 0
  %v3866 = vsel %vm225, %v3760, 0
  %v3869 = vsel %vm225, %v3762, 0
  %3871 = vmatpush.msra.mxu0 %v3778
  %3872 = vmatpush.msra.mxu0 %v3777
  %3873 = vmatpush.msra.mxu0 %v3776
  %3874 = vmatpush.msra.mxu0 %v3775
  %3875 = vmatpush.msra.mxu0 %v3774
  %3876 = vmatpush.msra.mxu0 %v3773
  %3877 = vmatpush.msra.mxu0 %v3772
  %3878 = vmatpush.msra.mxu0 %v3771
  %3879 = vmatpush.msra.mxu0 %v3770
  %3880 = vmatpush.msra.mxu0 %v3769
  %3881 = vmatpush.msra.mxu0 %v3768
  %3882 = vmatpush.msra.mxu0 %v3767
  %3883 = vmatpush.msra.mxu0 %v3766
  %3884 = vmatpush.msra.mxu0 %v3765
  %3885 = vmatpush.msra.mxu0 %v3764
  %3886 = vmatpush.msra.mxu0 %v3763
  %3887 = vmatmul.f32.gmra.mxu0 %v3707
  %v3888 = vpop.f32.mrf.mxu0
  %v3889 = vadd.f32 0.0, %v3888
  %3890 = vmatmul.f32.gmra.mxu0 %v3709
  %v3891 = vpop.f32.mrf.mxu0
  %v3892 = vadd.f32 0.0, %v3891
  %3893 = vmatmul.f32.gmra.mxu0 %v3711
  %v3894 = vpop.f32.mrf.mxu0
  %v3895 = vadd.f32 0.0, %v3894
  %3896 = vmatmul.f32.gmra.mxu0 %v3713
  %v3897 = vpop.f32.mrf.mxu0
  %v3898 = vadd.f32 0.0, %v3897
  %3899 = vmatmul.f32.gmra.mxu0 %v3715
  %v3900 = vpop.f32.mrf.mxu0
  %v3901 = vadd.f32 0.0, %v3900
  %3902 = vmatmul.f32.gmra.mxu0 %v3717
  %v3903 = vpop.f32.mrf.mxu0
  %v3904 = vadd.f32 0.0, %v3903
  %3905 = vmatmul.f32.gmra.mxu0 %v3719
  %v3906 = vpop.f32.mrf.mxu0
  %v3907 = vadd.f32 0.0, %v3906
  %3908 = vmatmul.f32.gmra.mxu0 %v3721
  %v3909 = vpop.f32.mrf.mxu0
  %v3910 = vadd.f32 0.0, %v3909
  %3911 = vmatmul.f32.gmra.mxu0 %v3723
  %v3912 = vpop.f32.mrf.mxu0
  %v3913 = vadd.f32 0.0, %v3912
  %3914 = vmatmul.f32.gmra.mxu0 %v3725
  %v3915 = vpop.f32.mrf.mxu0
  %v3916 = vadd.f32 0.0, %v3915
  %3917 = vmatmul.f32.gmra.mxu0 %v3727
  %v3918 = vpop.f32.mrf.mxu0
  %v3919 = vadd.f32 0.0, %v3918
  %3920 = vmatmul.f32.gmra.mxu0 %v3729
  %v3921 = vpop.f32.mrf.mxu0
  %v3922 = vadd.f32 0.0, %v3921
  %3923 = vmatmul.f32.gmra.mxu0 %v3731
  %v3924 = vpop.f32.mrf.mxu0
  %v3925 = vadd.f32 0.0, %v3924
  %3926 = vmatmul.f32.gmra.mxu0 %v3733
  %v3927 = vpop.f32.mrf.mxu0
  %v3928 = vadd.f32 0.0, %v3927
  %3929 = vmatmul.f32.gmra.mxu0 %v3735
  %v3930 = vpop.f32.mrf.mxu0
  %v3931 = vadd.f32 0.0, %v3930
  %3932 = vmatmul.f32.gmra.mxu0 %v3737
  %v3933 = vpop.f32.mrf.mxu0
  %v3934 = vadd.f32 0.0, %v3933
  %3935 = vmatmul.f32.gmra.mxu0 %v3739
  %v3936 = vpop.f32.mrf.mxu0
  %v3937 = vadd.f32 0.0, %v3936
  %3938 = vmatmul.f32.gmra.mxu0 %v3741
  %v3939 = vpop.f32.mrf.mxu0
  %v3940 = vadd.f32 0.0, %v3939
  %3941 = vmatmul.f32.gmra.mxu0 %v3743
  %v3942 = vpop.f32.mrf.mxu0
  %v3943 = vadd.f32 0.0, %v3942
  %3944 = vmatmul.f32.gmra.mxu0 %v3745
  %v3945 = vpop.f32.mrf.mxu0
  %v3946 = vadd.f32 0.0, %v3945
  %3947 = vmatmul.f32.gmra.mxu0 %v3747
  %v3948 = vpop.f32.mrf.mxu0
  %v3949 = vadd.f32 0.0, %v3948
  %3950 = vmatmul.f32.gmra.mxu0 %v3749
  %v3951 = vpop.f32.mrf.mxu0
  %v3952 = vadd.f32 0.0, %v3951
  %3953 = vmatmul.f32.gmra.mxu0 %v3751
  %v3954 = vpop.f32.mrf.mxu0
  %v3955 = vadd.f32 0.0, %v3954
  %3956 = vmatmul.f32.gmra.mxu0 %v3753
  %v3957 = vpop.f32.mrf.mxu0
  %v3958 = vadd.f32 0.0, %v3957
  %3959 = vmatmul.f32.gmra.mxu0 %v3755
  %v3960 = vpop.f32.mrf.mxu0
  %v3961 = vadd.f32 0.0, %v3960
  %3962 = vmatmul.f32.gmra.mxu0 %v3757
  %v3963 = vpop.f32.mrf.mxu0
  %v3964 = vadd.f32 0.0, %v3963
  %3965 = vmatmul.f32.gmra.mxu0 %v3759
  %v3966 = vpop.f32.mrf.mxu0
  %v3967 = vadd.f32 0.0, %v3966
  %3968 = vmatmul.f32.gmra.mxu0 %v3761
  %v3969 = vpop.f32.mrf.mxu0
  %v3970 = vadd.f32 0.0, %v3969
  %3971 = vdwg.mxu0
  %3972 = vmatpush.msra.mxu0 0.0
  %3973 = vmatpush.msra.mxu0 0.0
  %3974 = vmatpush.msra.mxu0 0.0
  %3975 = vmatpush.msra.mxu0 0.0
  %3976 = vmatpush.msra.mxu0 0.0
  %3977 = vmatpush.msra.mxu0 0.0
  %3978 = vmatpush.msra.mxu0 0.0
  %3979 = vmatpush.msra.mxu0 0.0
  %3980 = vmatpush.msra.mxu0 %v3786
  %3981 = vmatpush.msra.mxu0 %v3785
  %3982 = vmatpush.msra.mxu0 %v3784
  %3983 = vmatpush.msra.mxu0 %v3783
  %3984 = vmatpush.msra.mxu0 %v3782
  %3985 = vmatpush.msra.mxu0 %v3781
  %3986 = vmatpush.msra.mxu0 %v3780
  %3987 = vmatpush.msra.mxu0 %v3779
  %3988 = vmatmul.f32.gmra.mxu0 %v3788
  %v3989 = vpop.f32.mrf.mxu0
  %v3990 = vadd.f32 %v3889, %v3989
  %3991 = vmatmul.f32.gmra.mxu0 %v3791
  %v3992 = vpop.f32.mrf.mxu0
  %v3993 = vadd.f32 %v3892, %v3992
  %3994 = vmatmul.f32.gmra.mxu0 %v3794
  %v3995 = vpop.f32.mrf.mxu0
  %v3996 = vadd.f32 %v3895, %v3995
  %3997 = vmatmul.f32.gmra.mxu0 %v3797
  %v3998 = vpop.f32.mrf.mxu0
  %v3999 = vadd.f32 %v3898, %v3998
  %4000 = vmatmul.f32.gmra.mxu0 %v3800
  %v4001 = vpop.f32.mrf.mxu0
  %v4002 = vadd.f32 %v3901, %v4001
  %4003 = vmatmul.f32.gmra.mxu0 %v3803
  %v4004 = vpop.f32.mrf.mxu0
  %v4005 = vadd.f32 %v3904, %v4004
  %4006 = vmatmul.f32.gmra.mxu0 %v3806
  %v4007 = vpop.f32.mrf.mxu0
  %v4008 = vadd.f32 %v3907, %v4007
  %4009 = vmatmul.f32.gmra.mxu0 %v3809
  %v4010 = vpop.f32.mrf.mxu0
  %v4011 = vadd.f32 %v3910, %v4010
  %4012 = vmatmul.f32.gmra.mxu0 %v3812
  %v4013 = vpop.f32.mrf.mxu0
  %v4014 = vadd.f32 %v3913, %v4013
  %4015 = vmatmul.f32.gmra.mxu0 %v3815
  %v4016 = vpop.f32.mrf.mxu0
  %v4017 = vadd.f32 %v3916, %v4016
  %4018 = vmatmul.f32.gmra.mxu0 %v3818
  %v4019 = vpop.f32.mrf.mxu0
  %v4020 = vadd.f32 %v3919, %v4019
  %4021 = vmatmul.f32.gmra.mxu0 %v3821
  %v4022 = vpop.f32.mrf.mxu0
  %v4023 = vadd.f32 %v3922, %v4022
  %4024 = vmatmul.f32.gmra.mxu0 %v3824
  %v4025 = vpop.f32.mrf.mxu0
  %v4026 = vadd.f32 %v3925, %v4025
  %4027 = vmatmul.f32.gmra.mxu0 %v3827
  %v4028 = vpop.f32.mrf.mxu0
  %v4029 = vadd.f32 %v3928, %v4028
  %4030 = vmatmul.f32.gmra.mxu0 %v3830
  %v4031 = vpop.f32.mrf.mxu0
  %v4032 = vadd.f32 %v3931, %v4031
  %4033 = vmatmul.f32.gmra.mxu0 %v3833
  %v4034 = vpop.f32.mrf.mxu0
  %v4035 = vadd.f32 %v3934, %v4034
  %4036 = vmatmul.f32.gmra.mxu0 %v3836
  %v4037 = vpop.f32.mrf.mxu0
  %v4038 = vadd.f32 %v3937, %v4037
  %4039 = vmatmul.f32.gmra.mxu0 %v3839
  %v4040 = vpop.f32.mrf.mxu0
  %v4041 = vadd.f32 %v3940, %v4040
  %4042 = vmatmul.f32.gmra.mxu0 %v3842
  %v4043 = vpop.f32.mrf.mxu0
  %v4044 = vadd.f32 %v3943, %v4043
  %4045 = vmatmul.f32.gmra.mxu0 %v3845
  %v4046 = vpop.f32.mrf.mxu0
  %v4047 = vadd.f32 %v3946, %v4046
  %4048 = vmatmul.f32.gmra.mxu0 %v3848
  %v4049 = vpop.f32.mrf.mxu0
  %v4050 = vadd.f32 %v3949, %v4049
  %4051 = vmatmul.f32.gmra.mxu0 %v3851
  %v4052 = vpop.f32.mrf.mxu0
  %v4053 = vadd.f32 %v3952, %v4052
  %4054 = vmatmul.f32.gmra.mxu0 %v3854
  %v4055 = vpop.f32.mrf.mxu0
  %v4056 = vadd.f32 %v3955, %v4055
  %4057 = vmatmul.f32.gmra.mxu0 %v3857
  %v4058 = vpop.f32.mrf.mxu0
  %v4059 = vadd.f32 %v3958, %v4058
  %4060 = vmatmul.f32.gmra.mxu0 %v3860
  %v4061 = vpop.f32.mrf.mxu0
  %v4062 = vadd.f32 %v3961, %v4061
  %4063 = vmatmul.f32.gmra.mxu0 %v3863
  %v4064 = vpop.f32.mrf.mxu0
  %v4065 = vadd.f32 %v3964, %v4064
  %4066 = vmatmul.f32.gmra.mxu0 %v3866
  %v4067 = vpop.f32.mrf.mxu0
  %v4068 = vadd.f32 %v3967, %v4067
  %4069 = vmatmul.f32.gmra.mxu0 %v3869
  %v4070 = vpop.f32.mrf.mxu0
  %v4071 = vadd.f32 %v3970, %v4070
  %4072 = vdwg.mxu0
  %v4073 = vmul.f32 %v3990, %v3043
  %v4074 = vmul.f32 %v3993, %v3048
  %v4075 = vmul.f32 %v3996, %v3053
  %v4076 = vmul.f32 %v3999, %v3058
  %v4077 = vmul.f32 %v4002, %v3063
  %v4078 = vmul.f32 %v4005, %v3068
  %v4079 = vmul.f32 %v4008, %v3073
  %v4080 = vmul.f32 %v4011, %v3078
  %v4081 = vmul.f32 %v4014, %v3083
  %v4082 = vmul.f32 %v4017, %v3088
  %v4083 = vmul.f32 %v4020, %v3093
  %v4084 = vmul.f32 %v4023, %v3098
  %v4085 = vmul.f32 %v4026, %v3103
  %v4086 = vmul.f32 %v4029, %v3108
  %v4087 = vmul.f32 %v4032, %v3113
  %v4088 = vmul.f32 %v4035, %v3118
  %v4089 = vmul.f32 %v4038, %v3123
  %v4090 = vmul.f32 %v4041, %v3128
  %v4091 = vmul.f32 %v4044, %v3133
  %v4092 = vmul.f32 %v4047, %v3138
  %v4093 = vmul.f32 %v4050, %v3143
  %v4094 = vmul.f32 %v4053, %v3148
  %v4095 = vmul.f32 %v4056, %v3153
  %v4096 = vmul.f32 %v4059, %v3158
  %v4097 = vmul.f32 %v4062, %v3163
  %v4098 = vmul.f32 %v4065, %v3168
  %v4099 = vmul.f32 %v4068, %v3173
  %v4100 = vmul.f32 %v4071, %v3178
  %v4101 = vsel %vm225, %v4073, 0.0
  %v4102 = vsel %vm225, %v4074, 0.0
  %v4103 = vadd.f32 %v4101, %v4102
  %v4104 = vsel %vm225, %v4075, 0.0
  %v4105 = vadd.f32 %v4103, %v4104
  %v4106 = vsel %vm225, %v4076, 0.0
  %v4107 = vadd.f32 %v4105, %v4106
  %v4108 = vsel %vm225, %v4077, 0.0
  %v4109 = vadd.f32 %v4107, %v4108
  %v4110 = vsel %vm225, %v4078, 0.0
  %v4111 = vadd.f32 %v4109, %v4110
  %v4112 = vsel %vm225, %v4079, 0.0
  %v4113 = vadd.f32 %v4111, %v4112
  %v4114 = vsel %vm225, %v4080, 0.0
  %v4115 = vadd.f32 %v4113, %v4114
  %v4116 = vsel %vm225, %v4081, 0.0
  %v4117 = vadd.f32 %v4115, %v4116
  %v4118 = vsel %vm225, %v4082, 0.0
  %v4119 = vadd.f32 %v4117, %v4118
  %v4120 = vsel %vm225, %v4083, 0.0
  %v4121 = vadd.f32 %v4119, %v4120
  %v4122 = vsel %vm225, %v4084, 0.0
  %v4123 = vadd.f32 %v4121, %v4122
  %v4124 = vsel %vm225, %v4085, 0.0
  %v4125 = vadd.f32 %v4123, %v4124
  %v4126 = vsel %vm225, %v4086, 0.0
  %v4127 = vadd.f32 %v4125, %v4126
  %v4128 = vsel %vm225, %v4087, 0.0
  %v4129 = vadd.f32 %v4127, %v4128
  %v4130 = vsel %vm225, %v4088, 0.0
  %v4131 = vadd.f32 %v4129, %v4130
  %v4132 = vsel %vm225, %v4089, 0.0
  %v4133 = vadd.f32 %v4131, %v4132
  %v4134 = vsel %vm225, %v4090, 0.0
  %v4135 = vadd.f32 %v4133, %v4134
  %v4136 = vsel %vm225, %v4091, 0.0
  %v4137 = vadd.f32 %v4135, %v4136
  %v4138 = vsel %vm225, %v4092, 0.0
  %v4139 = vadd.f32 %v4137, %v4138
  %v4140 = vsel %vm225, %v4093, 0.0
  %v4141 = vadd.f32 %v4139, %v4140
  %v4142 = vsel %vm225, %v4094, 0.0
  %v4143 = vadd.f32 %v4141, %v4142
  %v4144 = vsel %vm225, %v4095, 0.0
  %v4145 = vadd.f32 %v4143, %v4144
  %v4146 = vsel %vm225, %v4096, 0.0
  %v4147 = vadd.f32 %v4145, %v4146
  %v4148 = vsel %vm225, %v4097, 0.0
  %v4149 = vadd.f32 %v4147, %v4148
  %v4150 = vsel %vm225, %v4098, 0.0
  %v4151 = vadd.f32 %v4149, %v4150
  %v4152 = vsel %vm225, %v4099, 0.0
  %v4153 = vadd.f32 %v4151, %v4152
  %v4154 = vsel %vm225, %v4100, 0.0
  %v4155 = vadd.f32 %v4153, %v4154
  %v4156 = vrot.slane %v4155, 4
  %v4157 = vadd.f32 %v4155, %v4156
  %v4158 = vrot.slane %v4157, 2
  %v4159 = vadd.f32 %v4157, %v4158
  %v4160 = vrot.slane %v4159, 1
  %v4161 = vadd.f32 %v4159, %v4160
  %v4162 = vmul.f32 %v4073, %v4073
  %v4163 = vmul.f32 %v4074, %v4074
  %v4164 = vmul.f32 %v4075, %v4075
  %v4165 = vmul.f32 %v4076, %v4076
  %v4166 = vmul.f32 %v4077, %v4077
  %v4167 = vmul.f32 %v4078, %v4078
  %v4168 = vmul.f32 %v4079, %v4079
  %v4169 = vmul.f32 %v4080, %v4080
  %v4170 = vmul.f32 %v4081, %v4081
  %v4171 = vmul.f32 %v4082, %v4082
  %v4172 = vmul.f32 %v4083, %v4083
  %v4173 = vmul.f32 %v4084, %v4084
  %v4174 = vmul.f32 %v4085, %v4085
  %v4175 = vmul.f32 %v4086, %v4086
  %v4176 = vmul.f32 %v4087, %v4087
  %v4177 = vmul.f32 %v4088, %v4088
  %v4178 = vmul.f32 %v4089, %v4089
  %v4179 = vmul.f32 %v4090, %v4090
  %v4180 = vmul.f32 %v4091, %v4091
  %v4181 = vmul.f32 %v4092, %v4092
  %v4182 = vmul.f32 %v4093, %v4093
  %v4183 = vmul.f32 %v4094, %v4094
  %v4184 = vmul.f32 %v4095, %v4095
  %v4185 = vmul.f32 %v4096, %v4096
  %v4186 = vmul.f32 %v4097, %v4097
  %v4187 = vmul.f32 %v4098, %v4098
  %v4188 = vmul.f32 %v4099, %v4099
  %v4189 = vmul.f32 %v4100, %v4100
  %v4190 = vsel %vm225, %v4162, 0.0
  %v4191 = vsel %vm225, %v4163, 0.0
  %v4192 = vadd.f32 %v4190, %v4191
  %v4193 = vsel %vm225, %v4164, 0.0
  %v4194 = vadd.f32 %v4192, %v4193
  %v4195 = vsel %vm225, %v4165, 0.0
  %v4196 = vadd.f32 %v4194, %v4195
  %v4197 = vsel %vm225, %v4166, 0.0
  %v4198 = vadd.f32 %v4196, %v4197
  %v4199 = vsel %vm225, %v4167, 0.0
  %v4200 = vadd.f32 %v4198, %v4199
  %v4201 = vsel %vm225, %v4168, 0.0
  %v4202 = vadd.f32 %v4200, %v4201
  %v4203 = vsel %vm225, %v4169, 0.0
  %v4204 = vadd.f32 %v4202, %v4203
  %v4205 = vsel %vm225, %v4170, 0.0
  %v4206 = vadd.f32 %v4204, %v4205
  %v4207 = vsel %vm225, %v4171, 0.0
  %v4208 = vadd.f32 %v4206, %v4207
  %v4209 = vsel %vm225, %v4172, 0.0
  %v4210 = vadd.f32 %v4208, %v4209
  %v4211 = vsel %vm225, %v4173, 0.0
  %v4212 = vadd.f32 %v4210, %v4211
  %v4213 = vsel %vm225, %v4174, 0.0
  %v4214 = vadd.f32 %v4212, %v4213
  %v4215 = vsel %vm225, %v4175, 0.0
  %v4216 = vadd.f32 %v4214, %v4215
  %v4217 = vsel %vm225, %v4176, 0.0
  %v4218 = vadd.f32 %v4216, %v4217
  %v4219 = vsel %vm225, %v4177, 0.0
  %v4220 = vadd.f32 %v4218, %v4219
  %v4221 = vsel %vm225, %v4178, 0.0
  %v4222 = vadd.f32 %v4220, %v4221
  %v4223 = vsel %vm225, %v4179, 0.0
  %v4224 = vadd.f32 %v4222, %v4223
  %v4225 = vsel %vm225, %v4180, 0.0
  %v4226 = vadd.f32 %v4224, %v4225
  %v4227 = vsel %vm225, %v4181, 0.0
  %v4228 = vadd.f32 %v4226, %v4227
  %v4229 = vsel %vm225, %v4182, 0.0
  %v4230 = vadd.f32 %v4228, %v4229
  %v4231 = vsel %vm225, %v4183, 0.0
  %v4232 = vadd.f32 %v4230, %v4231
  %v4233 = vsel %vm225, %v4184, 0.0
  %v4234 = vadd.f32 %v4232, %v4233
  %v4235 = vsel %vm225, %v4185, 0.0
  %v4236 = vadd.f32 %v4234, %v4235
  %v4237 = vsel %vm225, %v4186, 0.0
  %v4238 = vadd.f32 %v4236, %v4237
  %v4239 = vsel %vm225, %v4187, 0.0
  %v4240 = vadd.f32 %v4238, %v4239
  %v4241 = vsel %vm225, %v4188, 0.0
  %v4242 = vadd.f32 %v4240, %v4241
  %v4243 = vsel %vm225, %v4189, 0.0
  %v4244 = vadd.f32 %v4242, %v4243
  %v4245 = vrot.slane %v4244, 4
  %v4246 = vadd.f32 %v4244, %v4245
  %v4247 = vrot.slane %v4246, 2
  %v4248 = vadd.f32 %v4246, %v4247
  %v4249 = vrot.slane %v4248, 1
  %v4250 = vadd.f32 %v4248, %v4249
  %v4251 = vmul.f32 %v4161, 0.0051020407
  %v4252 = vmul.f32 %v4250, 0.0051020407
  %v4253 = vmul.f32 %v4251, %v4251
  %v4254 = vsub.f32 %v4252, %v4253
  %v4255 = vmax.f32 %v4254, 0.0
  %v4256 = vld [vmem:[%s6] sm:$0x1]
  %v4257 = vadd.f32 %v4255, 1e-05
  %v4258 = vrsqrt.pop %v4257
  %v4259 = vmul.f32 %v4258, %v4257
  %v4260 = vmul.f32 %v4259, %v4258
  %v4261 = vmul.f32 0.5, %v4260
  %v4262 = vsub.f32 1.5, %v4261
  %v4263 = vmul.f32 %v4258, %v4262
  %vm4264 = vweird.f32 %v4257
  %vm4265 = vweird.f32 %v4258
  %vm4266 = vmor %vm4264, %vm4265
  %v4267 = vsel %vm4266, %v4258, %v4263
  %v4268 = vmul.f32 %v4256, %v4267
  %v4270 = vperm.slane %v4268, 0
  %v4272 = vmul.f32 %v3990, %v4270
  %v4273 = vmul.f32 %v3993, %v4270
  %v4274 = vmul.f32 %v3996, %v4270
  %v4275 = vmul.f32 %v3999, %v4270
  %v4276 = vmul.f32 %v4002, %v4270
  %v4277 = vmul.f32 %v4005, %v4270
  %v4278 = vmul.f32 %v4008, %v4270
  %v4279 = vmul.f32 %v4011, %v4270
  %v4280 = vmul.f32 %v4014, %v4270
  %v4281 = vmul.f32 %v4017, %v4270
  %v4282 = vmul.f32 %v4020, %v4270
  %v4283 = vmul.f32 %v4023, %v4270
  %v4284 = vmul.f32 %v4026, %v4270
  %v4285 = vmul.f32 %v4029, %v4270
  %v4286 = vmul.f32 %v4032, %v4270
  %v4287 = vmul.f32 %v4035, %v4270
  %v4288 = vmul.f32 %v4038, %v4270
  %v4289 = vmul.f32 %v4041, %v4270
  %v4290 = vmul.f32 %v4044, %v4270
  %v4291 = vmul.f32 %v4047, %v4270
  %v4292 = vmul.f32 %v4050, %v4270
  %v4293 = vmul.f32 %v4053, %v4270
  %v4294 = vmul.f32 %v4056, %v4270
  %v4295 = vmul.f32 %v4059, %v4270
  %v4296 = vmul.f32 %v4062, %v4270
  %v4297 = vmul.f32 %v4065, %v4270
  %v4298 = vmul.f32 %v4068, %v4270
  %v4299 = vmul.f32 %v4071, %v4270
  %v4300 = vld [vmem:[%s7] sm:$0x1]
  %v4301 = vmul.f32 %v4251, %v4268
  %v4302 = vsub.f32 %v4300, %v4301
  %v4304 = vperm.slane %v4302, 0
  %v4306 = vadd.f32 %v4272, %v4304
  %v4307 = vadd.f32 %v4273, %v4304
  %v4308 = vadd.f32 %v4274, %v4304
  %v4309 = vadd.f32 %v4275, %v4304
  %v4310 = vadd.f32 %v4276, %v4304
  %v4311 = vadd.f32 %v4277, %v4304
  %v4312 = vadd.f32 %v4278, %v4304
  %v4313 = vadd.f32 %v4279, %v4304
  %v4314 = vadd.f32 %v4280, %v4304
  %v4315 = vadd.f32 %v4281, %v4304
  %v4316 = vadd.f32 %v4282, %v4304
  %v4317 = vadd.f32 %v4283, %v4304
  %v4318 = vadd.f32 %v4284, %v4304
  %v4319 = vadd.f32 %v4285, %v4304
  %v4320 = vadd.f32 %v4286, %v4304
  %v4321 = vadd.f32 %v4287, %v4304
  %v4322 = vadd.f32 %v4288, %v4304
  %v4323 = vadd.f32 %v4289, %v4304
  %v4324 = vadd.f32 %v4290, %v4304
  %v4325 = vadd.f32 %v4291, %v4304
  %v4326 = vadd.f32 %v4292, %v4304
  %v4327 = vadd.f32 %v4293, %v4304
  %v4328 = vadd.f32 %v4294, %v4304
  %v4329 = vadd.f32 %v4295, %v4304
  %v4330 = vadd.f32 %v4296, %v4304
  %v4331 = vadd.f32 %v4297, %v4304
  %v4332 = vadd.f32 %v4298, %v4304
  %v4333 = vadd.f32 %v4299, %v4304
  %v4334 = vld [vmem:[%s8] sm:$0xff]
  %v4335 = vld [vmem:[%s8 + $0x8] sm:$0xff]
  %v4336 = vld [vmem:[%s8 + $0x10] sm:$0xff]
  %v4337 = vld [vmem:[%s8 + $0x18] sm:$0xff]
  %v4338 = vld [vmem:[%s8 + $0x20] sm:$0xff]
  %v4339 = vld [vmem:[%s8 + $0x28] sm:$0xff]
  %v4340 = vld [vmem:[%s8 + $0x30] sm:$0xff]
  %v4341 = vld [vmem:[%s8 + $0x38] sm:$0xff]
  %v4342 = vld [vmem:[%s8 + $0x40] sm:$0xff]
  %v4343 = vld [vmem:[%s8 + $0x48] sm:$0xff]
  %v4344 = vld [vmem:[%s8 + $0x50] sm:$0xff]
  %v4345 = vld [vmem:[%s8 + $0x58] sm:$0xff]
  %v4346 = vld [vmem:[%s8 + $0x60] sm:$0xff]
  %v4347 = vld [vmem:[%s8 + $0x68] sm:$0xff]
  %v4348 = vld [vmem:[%s8 + $0x70] sm:$0xff]
  %v4349 = vld [vmem:[%s8 + $0x78] sm:$0xff]
  %v4350 = vld [vmem:[%s8 + $0x80] sm:$0xff]
  %v4351 = vld [vmem:[%s8 + $0x88] sm:$0xff]
  %v4352 = vld [vmem:[%s8 + $0x90] sm:$0xff]
  %v4353 = vld [vmem:[%s8 + $0x98] sm:$0xff]
  %v4354 = vld [vmem:[%s8 + $0xa0] sm:$0xff]
  %v4355 = vld [vmem:[%s8 + $0xa8] sm:$0xff]
  %v4356 = vld [vmem:[%s8 + $0xb0] sm:$0xff]
  %v4357 = vld [vmem:[%s8 + $0xb8] sm:$0xff]
  %v4359 = vsel %vm225, %v4306, 0
  %v4362 = vsel %vm225, %v4307, 0
  %v4365 = vsel %vm225, %v4308, 0
  %v4368 = vsel %vm225, %v4309, 0
  %v4371 = vsel %vm225, %v4310, 0
  %v4374 = vsel %vm225, %v4311, 0
  %v4377 = vsel %vm225, %v4312, 0
  %v4380 = vsel %vm225, %v4313, 0
  %v4383 = vsel %vm225, %v4314, 0
  %v4386 = vsel %vm225, %v4315, 0
  %v4389 = vsel %vm225, %v4316, 0
  %v4392 = vsel %vm225, %v4317, 0
  %v4395 = vsel %vm225, %v4318, 0
  %v4398 = vsel %vm225, %v4319, 0
  %v4401 = vsel %vm225, %v4320, 0
  %v4404 = vsel %vm225, %v4321, 0
  %v4407 = vsel %vm225, %v4322, 0
  %v4410 = vsel %vm225, %v4323, 0
  %v4413 = vsel %vm225, %v4324, 0
  %v4416 = vsel %vm225, %v4325, 0
  %v4419 = vsel %vm225, %v4326, 0
  %v4422 = vsel %vm225, %v4327, 0
  %v4425 = vsel %vm225, %v4328, 0
  %v4428 = vsel %vm225, %v4329, 0
  %v4431 = vsel %vm225, %v4330, 0
  %v4434 = vsel %vm225, %v4331, 0
  %v4437 = vsel %vm225, %v4332, 0
  %v4440 = vsel %vm225, %v4333, 0
  %4442 = vmatpush.msra.mxu0 0.0
  %4443 = vmatpush.msra.mxu0 0.0
  %4444 = vmatpush.msra.mxu0 0.0
  %4445 = vmatpush.msra.mxu0 0.0
  %4446 = vmatpush.msra.mxu0 0.0
  %4447 = vmatpush.msra.mxu0 0.0
  %4448 = vmatpush.msra.mxu0 0.0
  %4449 = vmatpush.msra.mxu0 0.0
  %4450 = vmatpush.msra.mxu0 %v4355
  %4451 = vmatpush.msra.mxu0 %v4352
  %4452 = vmatpush.msra.mxu0 %v4349
  %4453 = vmatpush.msra.mxu0 %v4346
  %4454 = vmatpush.msra.mxu0 %v4343
  %4455 = vmatpush.msra.mxu0 %v4340
  %4456 = vmatpush.msra.mxu0 %v4337
  %4457 = vmatpush.msra.mxu0 %v4334
  %4458 = vmatmul.f32.gmra.mxu0 %v4359
  %v4459 = vpop.f32.mrf.mxu0
  %v4460 = vadd.f32 0.0, %v4459
  %4461 = vmatmul.f32.gmra.mxu0 %v4362
  %v4462 = vpop.f32.mrf.mxu0
  %v4463 = vadd.f32 0.0, %v4462
  %4464 = vmatmul.f32.gmra.mxu0 %v4365
  %v4465 = vpop.f32.mrf.mxu0
  %v4466 = vadd.f32 0.0, %v4465
  %4467 = vmatmul.f32.gmra.mxu0 %v4368
  %v4468 = vpop.f32.mrf.mxu0
  %v4469 = vadd.f32 0.0, %v4468
  %4470 = vmatmul.f32.gmra.mxu0 %v4371
  %v4471 = vpop.f32.mrf.mxu0
  %v4472 = vadd.f32 0.0, %v4471
  %4473 = vmatmul.f32.gmra.mxu0 %v4374
  %v4474 = vpop.f32.mrf.mxu0
  %v4475 = vadd.f32 0.0, %v4474
  %4476 = vmatmul.f32.gmra.mxu0 %v4377
  %v4477 = vpop.f32.mrf.mxu0
  %v4478 = vadd.f32 0.0, %v4477
  %4479 = vmatmul.f32.gmra.mxu0 %v4380
  %v4480 = vpop.f32.mrf.mxu0
  %v4481 = vadd.f32 0.0, %v4480
  %4482 = vmatmul.f32.gmra.mxu0 %v4383
  %v4483 = vpop.f32.mrf.mxu0
  %v4484 = vadd.f32 0.0, %v4483
  %4485 = vmatmul.f32.gmra.mxu0 %v4386
  %v4486 = vpop.f32.mrf.mxu0
  %v4487 = vadd.f32 0.0, %v4486
  %4488 = vmatmul.f32.gmra.mxu0 %v4389
  %v4489 = vpop.f32.mrf.mxu0
  %v4490 = vadd.f32 0.0, %v4489
  %4491 = vmatmul.f32.gmra.mxu0 %v4392
  %v4492 = vpop.f32.mrf.mxu0
  %v4493 = vadd.f32 0.0, %v4492
  %4494 = vmatmul.f32.gmra.mxu0 %v4395
  %v4495 = vpop.f32.mrf.mxu0
  %v4496 = vadd.f32 0.0, %v4495
  %4497 = vmatmul.f32.gmra.mxu0 %v4398
  %v4498 = vpop.f32.mrf.mxu0
  %v4499 = vadd.f32 0.0, %v4498
  %4500 = vmatmul.f32.gmra.mxu0 %v4401
  %v4501 = vpop.f32.mrf.mxu0
  %v4502 = vadd.f32 0.0, %v4501
  %4503 = vmatmul.f32.gmra.mxu0 %v4404
  %v4504 = vpop.f32.mrf.mxu0
  %v4505 = vadd.f32 0.0, %v4504
  %4506 = vmatmul.f32.gmra.mxu0 %v4407
  %v4507 = vpop.f32.mrf.mxu0
  %v4508 = vadd.f32 0.0, %v4507
  %4509 = vmatmul.f32.gmra.mxu0 %v4410
  %v4510 = vpop.f32.mrf.mxu0
  %v4511 = vadd.f32 0.0, %v4510
  %4512 = vmatmul.f32.gmra.mxu0 %v4413
  %v4513 = vpop.f32.mrf.mxu0
  %v4514 = vadd.f32 0.0, %v4513
  %4515 = vmatmul.f32.gmra.mxu0 %v4416
  %v4516 = vpop.f32.mrf.mxu0
  %v4517 = vadd.f32 0.0, %v4516
  %4518 = vmatmul.f32.gmra.mxu0 %v4419
  %v4519 = vpop.f32.mrf.mxu0
  %v4520 = vadd.f32 0.0, %v4519
  %4521 = vmatmul.f32.gmra.mxu0 %v4422
  %v4522 = vpop.f32.mrf.mxu0
  %v4523 = vadd.f32 0.0, %v4522
  %4524 = vmatmul.f32.gmra.mxu0 %v4425
  %v4525 = vpop.f32.mrf.mxu0
  %v4526 = vadd.f32 0.0, %v4525
  %4527 = vmatmul.f32.gmra.mxu0 %v4428
  %v4528 = vpop.f32.mrf.mxu0
  %v4529 = vadd.f32 0.0, %v4528
  %4530 = vmatmul.f32.gmra.mxu0 %v4431
  %v4531 = vpop.f32.mrf.mxu0
  %v4532 = vadd.f32 0.0, %v4531
  %4533 = vmatmul.f32.gmra.mxu0 %v4434
  %v4534 = vpop.f32.mrf.mxu0
  %v4535 = vadd.f32 0.0, %v4534
  %4536 = vmatmul.f32.gmra.mxu0 %v4437
  %v4537 = vpop.f32.mrf.mxu0
  %v4538 = vadd.f32 0.0, %v4537
  %4539 = vmatmul.f32.gmra.mxu0 %v4440
  %v4540 = vpop.f32.mrf.mxu0
  %v4541 = vadd.f32 0.0, %v4540
  %4542 = vdwg.mxu0
  %4543 = vmatpush.msra.mxu0 0.0
  %4544 = vmatpush.msra.mxu0 0.0
  %4545 = vmatpush.msra.mxu0 0.0
  %4546 = vmatpush.msra.mxu0 0.0
  %4547 = vmatpush.msra.mxu0 0.0
  %4548 = vmatpush.msra.mxu0 0.0
  %4549 = vmatpush.msra.mxu0 0.0
  %4550 = vmatpush.msra.mxu0 0.0
  %4551 = vmatpush.msra.mxu0 %v4356
  %4552 = vmatpush.msra.mxu0 %v4353
  %4553 = vmatpush.msra.mxu0 %v4350
  %4554 = vmatpush.msra.mxu0 %v4347
  %4555 = vmatpush.msra.mxu0 %v4344
  %4556 = vmatpush.msra.mxu0 %v4341
  %4557 = vmatpush.msra.mxu0 %v4338
  %4558 = vmatpush.msra.mxu0 %v4335
  %4559 = vmatmul.f32.gmra.mxu0 %v4359
  %v4560 = vpop.f32.mrf.mxu0
  %v4561 = vadd.f32 0.0, %v4560
  %4562 = vmatmul.f32.gmra.mxu0 %v4362
  %v4563 = vpop.f32.mrf.mxu0
  %v4564 = vadd.f32 0.0, %v4563
  %4565 = vmatmul.f32.gmra.mxu0 %v4365
  %v4566 = vpop.f32.mrf.mxu0
  %v4567 = vadd.f32 0.0, %v4566
  %4568 = vmatmul.f32.gmra.mxu0 %v4368
  %v4569 = vpop.f32.mrf.mxu0
  %v4570 = vadd.f32 0.0, %v4569
  %4571 = vmatmul.f32.gmra.mxu0 %v4371
  %v4572 = vpop.f32.mrf.mxu0
  %v4573 = vadd.f32 0.0, %v4572
  %4574 = vmatmul.f32.gmra.mxu0 %v4374
  %v4575 = vpop.f32.mrf.mxu0
  %v4576 = vadd.f32 0.0, %v4575
  %4577 = vmatmul.f32.gmra.mxu0 %v4377
  %v4578 = vpop.f32.mrf.mxu0
  %v4579 = vadd.f32 0.0, %v4578
  %4580 = vmatmul.f32.gmra.mxu0 %v4380
  %v4581 = vpop.f32.mrf.mxu0
  %v4582 = vadd.f32 0.0, %v4581
  %4583 = vmatmul.f32.gmra.mxu0 %v4383
  %v4584 = vpop.f32.mrf.mxu0
  %v4585 = vadd.f32 0.0, %v4584
  %4586 = vmatmul.f32.gmra.mxu0 %v4386
  %v4587 = vpop.f32.mrf.mxu0
  %v4588 = vadd.f32 0.0, %v4587
  %4589 = vmatmul.f32.gmra.mxu0 %v4389
  %v4590 = vpop.f32.mrf.mxu0
  %v4591 = vadd.f32 0.0, %v4590
  %4592 = vmatmul.f32.gmra.mxu0 %v4392
  %v4593 = vpop.f32.mrf.mxu0
  %v4594 = vadd.f32 0.0, %v4593
  %4595 = vmatmul.f32.gmra.mxu0 %v4395
  %v4596 = vpop.f32.mrf.mxu0
  %v4597 = vadd.f32 0.0, %v4596
  %4598 = vmatmul.f32.gmra.mxu0 %v4398
  %v4599 = vpop.f32.mrf.mxu0
  %v4600 = vadd.f32 0.0, %v4599
  %4601 = vmatmul.f32.gmra.mxu0 %v4401
  %v4602 = vpop.f32.mrf.mxu0
  %v4603 = vadd.f32 0.0, %v4602
  %4604 = vmatmul.f32.gmra.mxu0 %v4404
  %v4605 = vpop.f32.mrf.mxu0
  %v4606 = vadd.f32 0.0, %v4605
  %4607 = vmatmul.f32.gmra.mxu0 %v4407
  %v4608 = vpop.f32.mrf.mxu0
  %v4609 = vadd.f32 0.0, %v4608
  %4610 = vmatmul.f32.gmra.mxu0 %v4410
  %v4611 = vpop.f32.mrf.mxu0
  %v4612 = vadd.f32 0.0, %v4611
  %4613 = vmatmul.f32.gmra.mxu0 %v4413
  %v4614 = vpop.f32.mrf.mxu0
  %v4615 = vadd.f32 0.0, %v4614
  %4616 = vmatmul.f32.gmra.mxu0 %v4416
  %v4617 = vpop.f32.mrf.mxu0
  %v4618 = vadd.f32 0.0, %v4617
  %4619 = vmatmul.f32.gmra.mxu0 %v4419
  %v4620 = vpop.f32.mrf.mxu0
  %v4621 = vadd.f32 0.0, %v4620
  %4622 = vmatmul.f32.gmra.mxu0 %v4422
  %v4623 = vpop.f32.mrf.mxu0
  %v4624 = vadd.f32 0.0, %v4623
  %4625 = vmatmul.f32.gmra.mxu0 %v4425
  %v4626 = vpop.f32.mrf.mxu0
  %v4627 = vadd.f32 0.0, %v4626
  %4628 = vmatmul.f32.gmra.mxu0 %v4428
  %v4629 = vpop.f32.mrf.mxu0
  %v4630 = vadd.f32 0.0, %v4629
  %4631 = vmatmul.f32.gmra.mxu0 %v4431
  %v4632 = vpop.f32.mrf.mxu0
  %v4633 = vadd.f32 0.0, %v4632
  %4634 = vmatmul.f32.gmra.mxu0 %v4434
  %v4635 = vpop.f32.mrf.mxu0
  %v4636 = vadd.f32 0.0, %v4635
  %4637 = vmatmul.f32.gmra.mxu0 %v4437
  %v4638 = vpop.f32.mrf.mxu0
  %v4639 = vadd.f32 0.0, %v4638
  %4640 = vmatmul.f32.gmra.mxu0 %v4440
  %v4641 = vpop.f32.mrf.mxu0
  %v4642 = vadd.f32 0.0, %v4641
  %4643 = vdwg.mxu0
  %4644 = vmatpush.msra.mxu0 0.0
  %4645 = vmatpush.msra.mxu0 0.0
  %4646 = vmatpush.msra.mxu0 0.0
  %4647 = vmatpush.msra.mxu0 0.0
  %4648 = vmatpush.msra.mxu0 0.0
  %4649 = vmatpush.msra.mxu0 0.0
  %4650 = vmatpush.msra.mxu0 0.0
  %4651 = vmatpush.msra.mxu0 0.0
  %4652 = vmatpush.msra.mxu0 %v4357
  %4653 = vmatpush.msra.mxu0 %v4354
  %4654 = vmatpush.msra.mxu0 %v4351
  %4655 = vmatpush.msra.mxu0 %v4348
  %4656 = vmatpush.msra.mxu0 %v4345
  %4657 = vmatpush.msra.mxu0 %v4342
  %4658 = vmatpush.msra.mxu0 %v4339
  %4659 = vmatpush.msra.mxu0 %v4336
  %4660 = vmatmul.f32.gmra.mxu0 %v4359
  %v4661 = vpop.f32.mrf.mxu0
  %v4662 = vadd.f32 0.0, %v4661
  %4663 = vmatmul.f32.gmra.mxu0 %v4362
  %v4664 = vpop.f32.mrf.mxu0
  %v4665 = vadd.f32 0.0, %v4664
  %4666 = vmatmul.f32.gmra.mxu0 %v4365
  %v4667 = vpop.f32.mrf.mxu0
  %v4668 = vadd.f32 0.0, %v4667
  %4669 = vmatmul.f32.gmra.mxu0 %v4368
  %v4670 = vpop.f32.mrf.mxu0
  %v4671 = vadd.f32 0.0, %v4670
  %4672 = vmatmul.f32.gmra.mxu0 %v4371
  %v4673 = vpop.f32.mrf.mxu0
  %v4674 = vadd.f32 0.0, %v4673
  %4675 = vmatmul.f32.gmra.mxu0 %v4374
  %v4676 = vpop.f32.mrf.mxu0
  %v4677 = vadd.f32 0.0, %v4676
  %4678 = vmatmul.f32.gmra.mxu0 %v4377
  %v4679 = vpop.f32.mrf.mxu0
  %v4680 = vadd.f32 0.0, %v4679
  %4681 = vmatmul.f32.gmra.mxu0 %v4380
  %v4682 = vpop.f32.mrf.mxu0
  %v4683 = vadd.f32 0.0, %v4682
  %4684 = vmatmul.f32.gmra.mxu0 %v4383
  %v4685 = vpop.f32.mrf.mxu0
  %v4686 = vadd.f32 0.0, %v4685
  %4687 = vmatmul.f32.gmra.mxu0 %v4386
  %v4688 = vpop.f32.mrf.mxu0
  %v4689 = vadd.f32 0.0, %v4688
  %4690 = vmatmul.f32.gmra.mxu0 %v4389
  %v4691 = vpop.f32.mrf.mxu0
  %v4692 = vadd.f32 0.0, %v4691
  %4693 = vmatmul.f32.gmra.mxu0 %v4392
  %v4694 = vpop.f32.mrf.mxu0
  %v4695 = vadd.f32 0.0, %v4694
  %4696 = vmatmul.f32.gmra.mxu0 %v4395
  %v4697 = vpop.f32.mrf.mxu0
  %v4698 = vadd.f32 0.0, %v4697
  %4699 = vmatmul.f32.gmra.mxu0 %v4398
  %v4700 = vpop.f32.mrf.mxu0
  %v4701 = vadd.f32 0.0, %v4700
  %4702 = vmatmul.f32.gmra.mxu0 %v4401
  %v4703 = vpop.f32.mrf.mxu0
  %v4704 = vadd.f32 0.0, %v4703
  %4705 = vmatmul.f32.gmra.mxu0 %v4404
  %v4706 = vpop.f32.mrf.mxu0
  %v4707 = vadd.f32 0.0, %v4706
  %4708 = vmatmul.f32.gmra.mxu0 %v4407
  %v4709 = vpop.f32.mrf.mxu0
  %v4710 = vadd.f32 0.0, %v4709
  %4711 = vmatmul.f32.gmra.mxu0 %v4410
  %v4712 = vpop.f32.mrf.mxu0
  %v4713 = vadd.f32 0.0, %v4712
  %4714 = vmatmul.f32.gmra.mxu0 %v4413
  %v4715 = vpop.f32.mrf.mxu0
  %v4716 = vadd.f32 0.0, %v4715
  %4717 = vmatmul.f32.gmra.mxu0 %v4416
  %v4718 = vpop.f32.mrf.mxu0
  %v4719 = vadd.f32 0.0, %v4718
  %4720 = vmatmul.f32.gmra.mxu0 %v4419
  %v4721 = vpop.f32.mrf.mxu0
  %v4722 = vadd.f32 0.0, %v4721
  %4723 = vmatmul.f32.gmra.mxu0 %v4422
  %v4724 = vpop.f32.mrf.mxu0
  %v4725 = vadd.f32 0.0, %v4724
  %4726 = vmatmul.f32.gmra.mxu0 %v4425
  %v4727 = vpop.f32.mrf.mxu0
  %v4728 = vadd.f32 0.0, %v4727
  %4729 = vmatmul.f32.gmra.mxu0 %v4428
  %v4730 = vpop.f32.mrf.mxu0
  %v4731 = vadd.f32 0.0, %v4730
  %4732 = vmatmul.f32.gmra.mxu0 %v4431
  %v4733 = vpop.f32.mrf.mxu0
  %v4734 = vadd.f32 0.0, %v4733
  %4735 = vmatmul.f32.gmra.mxu0 %v4434
  %v4736 = vpop.f32.mrf.mxu0
  %v4737 = vadd.f32 0.0, %v4736
  %4738 = vmatmul.f32.gmra.mxu0 %v4437
  %v4739 = vpop.f32.mrf.mxu0
  %v4740 = vadd.f32 0.0, %v4739
  %4741 = vmatmul.f32.gmra.mxu0 %v4440
  %v4742 = vpop.f32.mrf.mxu0
  %v4743 = vadd.f32 0.0, %v4742
  %4744 = vdwg.mxu0
  %4745 = vst [vmem:[%s9] sm:$0xff] %v4460
  %4746 = vst [vmem:[%s9 + $0x8] sm:$0xff] %v4561
  %4747 = vst [vmem:[%s9 + $0x10] sm:$0xff] %v4662
  %4748 = vst [vmem:[%s9 + $0x18] sm:$0xff] %v4463
  %4749 = vst [vmem:[%s9 + $0x20] sm:$0xff] %v4564
  %4750 = vst [vmem:[%s9 + $0x28] sm:$0xff] %v4665
  %4751 = vst [vmem:[%s9 + $0x30] sm:$0xff] %v4466
  %4752 = vst [vmem:[%s9 + $0x38] sm:$0xff] %v4567
  %4753 = vst [vmem:[%s9 + $0x40] sm:$0xff] %v4668
  %4754 = vst [vmem:[%s9 + $0x48] sm:$0xff] %v4469
  %4755 = vst [vmem:[%s9 + $0x50] sm:$0xff] %v4570
  %4756 = vst [vmem:[%s9 + $0x58] sm:$0xff] %v4671
  %4757 = vst [vmem:[%s9 + $0x60] sm:$0xff] %v4472
  %4758 = vst [vmem:[%s9 + $0x68] sm:$0xff] %v4573
  %4759 = vst [vmem:[%s9 + $0x70] sm:$0xff] %v4674
  %4760 = vst [vmem:[%s9 + $0x78] sm:$0xff] %v4475
  %4761 = vst [vmem:[%s9 + $0x80] sm:$0xff] %v4576
  %4762 = vst [vmem:[%s9 + $0x88] sm:$0xff] %v4677
  %4763 = vst [vmem:[%s9 + $0x90] sm:$0xff] %v4478
  %4764 = vst [vmem:[%s9 + $0x98] sm:$0xff] %v4579
  %4765 = vst [vmem:[%s9 + $0xa0] sm:$0xff] %v4680
  %4766 = vst [vmem:[%s9 + $0xa8] sm:$0xff] %v4481
  %4767 = vst [vmem:[%s9 + $0xb0] sm:$0xff] %v4582
  %4768 = vst [vmem:[%s9 + $0xb8] sm:$0xff] %v4683
  %4769 = vst [vmem:[%s9 + $0xc0] sm:$0xff] %v4484
  %4770 = vst [vmem:[%s9 + $0xc8] sm:$0xff] %v4585
  %4771 = vst [vmem:[%s9 + $0xd0] sm:$0xff] %v4686
  %4772 = vst [vmem:[%s9 + $0xd8] sm:$0xff] %v4487
  %4773 = vst [vmem:[%s9 + $0xe0] sm:$0xff] %v4588
  %4774 = vst [vmem:[%s9 + $0xe8] sm:$0xff] %v4689
  %4775 = vst [vmem:[%s9 + $0xf0] sm:$0xff] %v4490
  %4776 = vst [vmem:[%s9 + $0xf8] sm:$0xff] %v4591
  %4777 = vst [vmem:[%s9 + $0x100] sm:$0xff] %v4692
  %4778 = vst [vmem:[%s9 + $0x108] sm:$0xff] %v4493
  %4779 = vst [vmem:[%s9 + $0x110] sm:$0xff] %v4594
  %4780 = vst [vmem:[%s9 + $0x118] sm:$0xff] %v4695
  %4781 = vst [vmem:[%s9 + $0x120] sm:$0xff] %v4496
  %4782 = vst [vmem:[%s9 + $0x128] sm:$0xff] %v4597
  %4783 = vst [vmem:[%s9 + $0x130] sm:$0xff] %v4698
  %4784 = vst [vmem:[%s9 + $0x138] sm:$0xff] %v4499
  %4785 = vst [vmem:[%s9 + $0x140] sm:$0xff] %v4600
  %4786 = vst [vmem:[%s9 + $0x148] sm:$0xff] %v4701
  %4787 = vst [vmem:[%s9 + $0x150] sm:$0xff] %v4502
  %4788 = vst [vmem:[%s9 + $0x158] sm:$0xff] %v4603
  %4789 = vst [vmem:[%s9 + $0x160] sm:$0xff] %v4704
  %4790 = vst [vmem:[%s9 + $0x168] sm:$0xff] %v4505
  %4791 = vst [vmem:[%s9 + $0x170] sm:$0xff] %v4606
  %4792 = vst [vmem:[%s9 + $0x178] sm:$0xff] %v4707
  %4793 = vst [vmem:[%s9 + $0x180] sm:$0xff] %v4508
  %4794 = vst [vmem:[%s9 + $0x188] sm:$0xff] %v4609
  %4795 = vst [vmem:[%s9 + $0x190] sm:$0xff] %v4710
  %4796 = vst [vmem:[%s9 + $0x198] sm:$0xff] %v4511
  %4797 = vst [vmem:[%s9 + $0x1a0] sm:$0xff] %v4612
  %4798 = vst [vmem:[%s9 + $0x1a8] sm:$0xff] %v4713
  %4799 = vst [vmem:[%s9 + $0x1b0] sm:$0xff] %v4514
  %4800 = vst [vmem:[%s9 + $0x1b8] sm:$0xff] %v4615
  %4801 = vst [vmem:[%s9 + $0x1c0] sm:$0xff] %v4716
  %4802 = vst [vmem:[%s9 + $0x1c8] sm:$0xff] %v4517
  %4803 = vst [vmem:[%s9 + $0x1d0] sm:$0xff] %v4618
  %4804 = vst [vmem:[%s9 + $0x1d8] sm:$0xff] %v4719
  %4805 = vst [vmem:[%s9 + $0x1e0] sm:$0xff] %v4520
  %4806 = vst [vmem:[%s9 + $0x1e8] sm:$0xff] %v4621
  %4807 = vst [vmem:[%s9 + $0x1f0] sm:$0xff] %v4722
  %4808 = vst [vmem:[%s9 + $0x1f8] sm:$0xff] %v4523
  %4809 = vst [vmem:[%s9 + $0x200] sm:$0xff] %v4624
  %4810 = vst [vmem:[%s9 + $0x208] sm:$0xff] %v4725
  %4811 = vst [vmem:[%s9 + $0x210] sm:$0xff] %v4526
  %4812 = vst [vmem:[%s9 + $0x218] sm:$0xff] %v4627
  %4813 = vst [vmem:[%s9 + $0x220] sm:$0xff] %v4728
  %4814 = vst [vmem:[%s9 + $0x228] sm:$0xff] %v4529
  %4815 = vst [vmem:[%s9 + $0x230] sm:$0xff] %v4630
  %4816 = vst [vmem:[%s9 + $0x238] sm:$0xff] %v4731
  %4817 = vst [vmem:[%s9 + $0x240] sm:$0xff] %v4532
  %4818 = vst [vmem:[%s9 + $0x248] sm:$0xff] %v4633
  %4819 = vst [vmem:[%s9 + $0x250] sm:$0xff] %v4734
  %4820 = vst [vmem:[%s9 + $0x258] sm:$0xff] %v4535
  %4821 = vst [vmem:[%s9 + $0x260] sm:$0xff] %v4636
  %4822 = vst [vmem:[%s9 + $0x268] sm:$0xff] %v4737
  %4823 = vst [vmem:[%s9 + $0x270] sm:$0xff] %v4538
  %4824 = vst [vmem:[%s9 + $0x278] sm:$0xff] %v4639
  %4825 = vst [vmem:[%s9 + $0x280] sm:$0xff] %v4740
  %4826 = vst [vmem:[%s9 + $0x288] sm:$0xff] %v4541
  %4827 = vst [vmem:[%s9 + $0x290] sm:$0xff] %v4642
  %4828 = vst [vmem:[%s9 + $0x298] sm:$0xff] %v4743
  // Predicated region
  $region38: #{forward.1} parent=0 // pred_check
    _
  $region39: #{forward.1} parent=0 // pred_check_branch
    %4830 = sbr.rel (0) target = $region41
  $region40: #{forward.1} parent=0 // pred_region
    _
  $region41: #{forward.1} parent=0 // pred_fallthru
    _
  // Predicated region
  $region42: #{forward.1} parent=0 // pred_check
    _
  $region43: #{forward.1} parent=0 // pred_check_branch
    %4832 = sbr.rel (0) target = $region45
  $region44: #{forward.1} parent=0 // pred_region
    _
  $region45: #{forward.1} parent=0 // pred_fallthru
    _

</llo_original>
